<compile_context>
chip_gen: v7x
topology: tpu7x:2x2x1
jax: 0.10.0
libtpu: 0.0.40
codegen_flags: <defaults>
</compile_context>

<pallas_src>
import jax
import jax.numpy as jnp
from jax import lax
from jax.experimental import pallas as pl
from jax.experimental.pallas import tpu as pltpu

# ----------------- model_config / hyperparams (small, consistent with forward) -----
EMBED = 32          # model_config['embedd_dim']
HEADS = 4           # model_config['num_heads']
FFN = 64            # model_config['ffn_dim']
MEASURE = 12        # model_config['measure_dim']
MEASURE_PAD = 16    # padded to a multiple of 8 rows/lanes for tile-aligned slices
MAX_SEQ = 8         # hyperparams['max_seq_len']
NUM_LABELS = 2      # model_config['num_labels']
NUM_STACKS = 2      # model_config['num_stacks']
BATCH = 4
HEAD_DIM = EMBED // HEADS
CLS_HID = EMBED // 4
BT = BATCH * MAX_SEQ
EPS = 1e-5          # nn.LayerNorm default

# ----------------- slab_e layout (rows x EMBED lanes), all offsets multiple of 8 ----
OFF_TEMB = 0                               # pre-tiled time embedding, BT rows
OFF_MW = OFF_TEMB + BT                     # measurement (Conv1d k=1) weight, 16 rows
OFF_VEC = OFF_MW + MEASURE_PAD             # all E-wide bias / LayerNorm vectors
VEC_MB, VEC_LNEG, VEC_LNEB, VEC_BC1, VEC_BC2 = 0, 1, 2, 3, 4
VEC_L0 = 5                                 # per layer: bq,bk,bv,bout,b2,g1,be1,g2,be2
VEC_ROWS = VEC_L0 + 9 * NUM_STACKS
VEC_PAD = 24                               # padded to multiple of 8
PER_LAYER_E = 4 * EMBED + FFN              # wq,wk,wv,wout (E rows each) + w2 (F rows)
OFF_LAYER_E = OFF_VEC + VEC_PAD
OFF_WC1 = OFF_LAYER_E + NUM_STACKS * PER_LAYER_E
OFF_WC2 = OFF_WC1 + EMBED
SLAB_E_ROWS = OFF_WC2 + EMBED              # 520

# ----------------- slab_f layout (rows x FFN lanes) ---------------------------------
PER_LAYER_F = EMBED + 8                    # w1 (E rows) + b1 row (padded block of 8)
SLAB_F_ROWS = NUM_STACKS * PER_LAYER_F     # 80


def _layernorm(y, g, b):
    mu = jnp.mean(y, axis=-1, keepdims=True)
    var = jnp.mean((y - mu) ** 2, axis=-1, keepdims=True)   # biased var (PyTorch)
    return (y - mu) * lax.rsqrt(var + EPS) * g + b


# ----------------------------- fused model kernel ----------------------------------
def nicu_model_kernel(x_ref, se_ref, sf_ref, out_ref):
    E, F, H, Dh, T, B = EMBED, FFN, HEADS, HEAD_DIM, MAX_SEQ, BATCH
    f32 = jnp.float32

    def vrow(i):                       # one E-wide bias / LayerNorm vector
        return se_ref[OFF_VEC + i, :]

    # ---------------- NicuEmbeddings (Conv1d k=1 == matmul over measure_dim) --------
    x = x_ref[...].astype(f32)                                          # (BT, M_pad)
    m = jnp.dot(x, se_ref[OFF_MW:OFF_MW + MEASURE_PAD, :],
                preferred_element_type=f32) + vrow(VEC_MB)
    src = _layernorm(m + se_ref[OFF_TEMB:OFF_TEMB + BT, :],             # pre-tiled temb
                     vrow(VEC_LNEG), vrow(VEC_LNEB))                    # (BT, E)

    # "Same timestep" attention mask, hoisted once.  Slab row i = b*T + t and
    # nn.MultiheadAttention (batch_first=False) attends over the B axis per (t, head):
    # row i may attend to row j iff i % T == j % T.
    rt = lax.broadcasted_iota(jnp.int32, (BT, BT), 0) % T
    ct = lax.broadcasted_iota(jnp.int32, (BT, BT), 1) % T
    neg_mask = jnp.where(rt == ct, 0.0, -1e9).astype(f32)               # (BT, BT)

    scale = 1.0 / jnp.sqrt(jnp.float32(Dh))

    # ---------------- NUM_STACKS x NicuEncoder (statically unrolled, L == 2) --------
    # TODO(synk): if NUM_STACKS grows, switch to lax.fori_loop over the stacked slab.
    for l in range(NUM_STACKS):
        base = OFF_LAYER_E + l * PER_LAYER_E
        vo = VEC_L0 + 9 * l
        bq, bk, bv = vrow(vo + 0), vrow(vo + 1), vrow(vo + 2)
        b_out, b_ff2 = vrow(vo + 3), vrow(vo + 4)
        g1, be1, g2, be2 = vrow(vo + 5), vrow(vo + 6), vrow(vo + 7), vrow(vo + 8)

        # --- MultiheadAttention, eval mode: three lane-0-aligned projections ---
        q = (jnp.dot(src, se_ref[base + 0 * E:base + 1 * E, :],
                     preferred_element_type=f32) + bq) * scale
        k = jnp.dot(src, se_ref[base + 1 * E:base + 2 * E, :],
                    preferred_element_type=f32) + bk
        v = jnp.dot(src, se_ref[base + 2 * E:base + 3 * E, :],
                    preferred_element_type=f32) + bv

        a = None
        for h in range(H):
            sl = slice(h * Dh, (h + 1) * Dh)
            s = lax.dot_general(q[:, sl], k[:, sl], (((1,), (1,)), ((), ())),
                                preferred_element_type=f32) + neg_mask  # (BT, BT)
            s = s - jnp.max(s, axis=-1, keepdims=True)
            p = jnp.exp(s)
            p = p * pl.reciprocal(jnp.sum(p, axis=-1, keepdims=True), approx=True)
            ah = jnp.dot(p, v[:, sl], preferred_element_type=f32)       # (BT, Dh)
            # out_proj per head: concat(heads) @ Wout == sum_h head_h @ Wout[h rows]
            wo_h = se_ref[base + 3 * E + h * Dh:base + 3 * E + (h + 1) * Dh, :]
            ao = jnp.dot(ah, wo_h, preferred_element_type=f32)          # (BT, E)
            a = ao if a is None else a + ao
        a = a + b_out

        src = _layernorm(src + a, g1, be1)          # dropout1 = identity (eval)

        # --- FFN: linear2(relu(linear1(x))) ---
        fb = l * PER_LAYER_F
        hdn = jnp.dot(src, sf_ref[fb:fb + E, :],
                      preferred_element_type=f32) + sf_ref[fb + E, :]
        hdn = jnp.maximum(hdn, 0.0)
        ff = jnp.dot(hdn, se_ref[base + 4 * E:base + 4 * E + F, :],
                     preferred_element_type=f32) + b_ff2
        src = _layernorm(src + ff, g2, be2)         # dropout2 = identity (eval)

    # ---------------- NicuClassifier -------------------------------------------------
    pooled = jnp.mean(src.reshape(B, T, E), axis=1)                     # mean over seq
    hc = jnp.dot(pooled, se_ref[OFF_WC1:OFF_WC1 + E, :],                # zero-padded cols
                 preferred_element_type=f32) + vrow(VEC_BC1)
    hc = jnp.maximum(hc, 0.0)
    logits = jnp.dot(hc, se_ref[OFF_WC2:OFF_WC2 + E, :],                # zero-padded rows/cols
                     preferred_element_type=f32) + vrow(VEC_BC2)
    out_ref[...] = logits[:, :NUM_LABELS].astype(out_ref.dtype)


@jax.jit
def nicu_model(x, slab_e, slab_f):
    """x: (B, T, M) float32.  slab_e / slab_f: host-packed parameter slabs."""
    x2d = jnp.zeros((BT, MEASURE_PAD), x.dtype).at[:, :MEASURE].set(
        x.reshape(BT, MEASURE))                    # lane-padded token-major input slab
    return pl.pallas_call(
        nicu_model_kernel,
        out_shape=jax.ShapeDtypeStruct((BATCH, NUM_LABELS), x.dtype),
        in_specs=[pl.BlockSpec(memory_space=pltpu.MemorySpace.VMEM)] * 3,
        out_specs=pl.BlockSpec(memory_space=pltpu.MemorySpace.VMEM),
    )(x2d, slab_e, slab_f)


# ----------------------------- parameters ------------------------------------------
def init_torch_params(key):
    """PyTorch-layout parameters ((out_features, in_features) weights, etc.)."""
    ks = iter(jax.random.split(key, 64))

    def w(shape, scale=0.05):
        return (scale * jax.random.normal(next(ks), shape)).astype(jnp.float32)

    layers = []
    for _ in range(NUM_STACKS):
        layers.append(dict(
            wqkv=w((3 * EMBED, EMBED)), bqkv=w((3 * EMBED,)),
            wout=w((EMBED, EMBED)), bout=w((EMBED,)),
            w1=w((FFN, EMBED)), b1=w((FFN,)),
            w2=w((EMBED, FFN)), b2=w((EMBED,)),
            g1=jnp.ones((EMBED,), jnp.float32), be1=jnp.zeros((EMBED,), jnp.float32),
            g2=jnp.ones((EMBED,), jnp.float32), be2=jnp.zeros((EMBED,), jnp.float32),
        ))
    return dict(
        t_emb=w((MAX_SEQ, EMBED)),               # nn.Embedding(max_seq_len, E)
        m_w=w((EMBED, MEASURE)),                 # Conv1d(M, E, k=1) weight, squeezed
        m_b=w((EMBED,)),
        ln_e_g=jnp.ones((EMBED,), jnp.float32),
        ln_e_b=jnp.zeros((EMBED,), jnp.float32),
        layers=layers,
        wc1=w((CLS_HID, EMBED)), bc1=w((CLS_HID,)),
        wc2=w((NUM_LABELS, CLS_HID)), bc2=w((NUM_LABELS,)),
    )


def pack_params(p):
    """Host-side packing: pre-transpose all weights to (in, out), pre-tile the time
    embedding to (B*T, E), and pack everything into two lane-dense slabs with
    static, 8-row-aligned offsets (matching the module-level OFF_* constants)."""
    E, F = EMBED, FFN
    se = jnp.zeros((SLAB_E_ROWS, E), jnp.float32)
    sf = jnp.zeros((SLAB_F_ROWS, F), jnp.float32)

    se = se.at[OFF_TEMB:OFF_TEMB + BT].set(jnp.tile(p['t_emb'], (BATCH, 1)))
    se = se.at[OFF_MW:OFF_MW + MEASURE].set(p['m_w'].T)        # rows 12..15 stay zero

    vec = jnp.zeros((VEC_PAD, E), jnp.float32)
    vec = vec.at[VEC_MB].set(p['m_b'])
    vec = vec.at[VEC_LNEG].set(p['ln_e_g'])
    vec = vec.at[VEC_LNEB].set(p['ln_e_b'])
    vec = vec.at[VEC_BC1, :CLS_HID].set(p['bc1'])
    vec = vec.at[VEC_BC2, :NUM_LABELS].set(p['bc2'])

    for l, lp in enumerate(p['layers']):
        o = VEC_L0 + 9 * l
        vec = vec.at[o + 0].set(lp['bqkv'][:E])
        vec = vec.at[o + 1].set(lp['bqkv'][E:2 * E])
        vec = vec.at[o + 2].set(lp['bqkv'][2 * E:])
        vec = vec.at[o + 3].set(lp['bout'])
        vec = vec.at[o + 4].set(lp['b2'])
        vec = vec.at[o + 5].set(lp['g1'])
        vec = vec.at[o + 6].set(lp['be1'])
        vec = vec.at[o + 7].set(lp['g2'])
        vec = vec.at[o + 8].set(lp['be2'])

        base = OFF_LAYER_E + l * PER_LAYER_E
        wqkv_t = lp['wqkv'].T                                  # (E_in, 3E_out)
        se = se.at[base + 0 * E:base + 1 * E].set(wqkv_t[:, :E])        # Wq
        se = se.at[base + 1 * E:base + 2 * E].set(wqkv_t[:, E:2 * E])   # Wk
        se = se.at[base + 2 * E:base + 3 * E].set(wqkv_t[:, 2 * E:])    # Wv
        se = se.at[base + 3 * E:base + 4 * E].set(lp['wout'].T)         # Wout (E, E)
        se = se.at[base + 4 * E:base + 4 * E + F].set(lp['w2'].T)       # W2 (F, E)

        fb = l * PER_LAYER_F
        sf = sf.at[fb:fb + E].set(lp['w1'].T)                           # W1 (E, F)
        sf = sf.at[fb + E].set(lp['b1'])                                # b1 row

    se = se.at[OFF_VEC:OFF_VEC + VEC_PAD].set(vec)
    se = se.at[OFF_WC1:OFF_WC1 + E, :CLS_HID].set(p['wc1'].T)           # zero-padded cols
    se = se.at[OFF_WC2:OFF_WC2 + CLS_HID, :NUM_LABELS].set(p['wc2'].T)  # zero-padded block
    return dict(slab_e=se, slab_f=sf)


# ----------------------------- pure-JAX reference ----------------------------------
def reference(x, p):
    """Replicates PyTorch NicuModel.forward in eval mode (PyTorch-layout params)."""
    B, T, M = x.shape
    E, H, Dh = EMBED, HEADS, HEAD_DIM
    emb = jnp.einsum('btm,em->bte', x, p['m_w']) + p['m_b']
    emb = emb + p['t_emb'][:T][None, :, :]
    emb = _layernorm(emb, p['ln_e_g'], p['ln_e_b'])
    src = emb                                    # (B, T, E); MHA sees seq=B, batch=T
    for lp in p['layers']:
        qkv = src @ lp['wqkv'].T + lp['bqkv']
        q = qkv[..., :E].reshape(B, T, H, Dh) / jnp.sqrt(jnp.float32(Dh))
        k = qkv[..., E:2 * E].reshape(B, T, H, Dh)
        v = qkv[..., 2 * E:].reshape(B, T, H, Dh)
        s = jnp.einsum('ithd,jthd->thij', q, k)
        pr = jax.nn.softmax(s, axis=-1)
        a = jnp.einsum('thij,jthd->ithd', pr, v).reshape(B, T, E)
        a = a @ lp['wout'].T + lp['bout']
        src = _layernorm(src + a, lp['g1'], lp['be1'])
        ff = jnp.maximum(src @ lp['w1'].T + lp['b1'], 0.0) @ lp['w2'].T + lp['b2']
        src = _layernorm(src + ff, lp['g2'], lp['be2'])
    pooled = src.mean(axis=1)                    # NicuClassifier: mean over dim=1
    hc = jnp.maximum(pooled @ p['wc1'].T + p['bc1'], 0.0)
    return hc @ p['wc2'].T + p['bc2']


if __name__ == "__main__":
    key = jax.random.PRNGKey(0)
    kx, kp = jax.random.split(key)
    x = jax.random.normal(kx, (BATCH, MAX_SEQ, MEASURE), dtype=jnp.float32)

    torch_params = init_torch_params(kp)
    packed = pack_params(torch_params)

    out = nicu_model(x, packed['slab_e'], packed['slab_f'])
    out = jax.block_until_ready(out)

    ref = reference(x, torch_params)
    assert out.shape == (BATCH, NUM_LABELS)
    err = jnp.max(jnp.abs(out - ref))
    assert jnp.allclose(out, ref, atol=2e-3, rtol=2e-3), f"mismatch vs reference, max err {err}"
    print("KERNEL_OK")
</pallas_src>

<mosaic_0001>
module attributes {stable_mosaic.version = 11 : i64} {
  func.func @nicu_model_kernel(%arg0: memref<32x16xf32, #tpu.memory_space<vmem>>, %arg1: memref<520x32xf32, #tpu.memory_space<vmem>>, %arg2: memref<80x64xf32, #tpu.memory_space<vmem>>, %arg3: memref<4x2xf32, #tpu.memory_space<vmem>>) attributes {dimension_semantics = [], scalar_prefetch = 0 : i64, scratch_operands = 0 : i64, tpu.core_type = #tpu.core_type<tc>} {
    %c0 = arith.constant 0 : index
    %c0_0 = arith.constant 0 : index
    %0 = vector.load %arg0[%c0, %c0_0] : memref<32x16xf32, #tpu.memory_space<vmem>>, vector<32x16xf32>
    %c32 = arith.constant 32 : index
    %c0_1 = arith.constant 0 : index
    %1 = vector.load %arg1[%c32, %c0_1] : memref<520x32xf32, #tpu.memory_space<vmem>>, vector<16x32xf32>
    %cst = arith.constant dense<0.000000e+00> : vector<32x32xf32>
    %2 = tpu.matmul %0, %1, %cst {dimension_numbers = #tpu.dot_dimension_numbers<[1], [0], [0], [1], [0, 0, 1, 1], [], []>} : vector<32x16xf32>, vector<16x32xf32>, vector<32x32xf32> -> vector<32x32xf32>
    %c48 = arith.constant 48 : index
    %c0_2 = arith.constant 0 : index
    %3 = vector.load %arg1[%c48, %c0_2] : memref<520x32xf32, #tpu.memory_space<vmem>>, vector<1x32xf32>
    %4 = vector.shape_cast %3 : vector<1x32xf32> to vector<32xf32>
    %5 = vector.shape_cast %4 : vector<32xf32> to vector<1x32xf32>
    %6 = vector.broadcast %5 : vector<1x32xf32> to vector<32x32xf32>
    %7 = arith.addf %2, %6 : vector<32x32xf32>
    %c0_3 = arith.constant 0 : index
    %c0_4 = arith.constant 0 : index
    %8 = vector.load %arg1[%c0_3, %c0_4] : memref<520x32xf32, #tpu.memory_space<vmem>>, vector<32x32xf32>
    %9 = arith.addf %7, %8 : vector<32x32xf32>
    %c49 = arith.constant 49 : index
    %c0_5 = arith.constant 0 : index
    %10 = vector.load %arg1[%c49, %c0_5] : memref<520x32xf32, #tpu.memory_space<vmem>>, vector<1x32xf32>
    %11 = vector.shape_cast %10 : vector<1x32xf32> to vector<32xf32>
    %c50 = arith.constant 50 : index
    %c0_6 = arith.constant 0 : index
    %12 = vector.load %arg1[%c50, %c0_6] : memref<520x32xf32, #tpu.memory_space<vmem>>, vector<1x32xf32>
    %13 = vector.shape_cast %12 : vector<1x32xf32> to vector<32xf32>
    %cst_7 = arith.constant dense<0.000000e+00> : vector<32xf32>
    %14 = vector.multi_reduction <add>, %9, %cst_7 [1] : vector<32x32xf32> to vector<32xf32>
    %15 = vector.shape_cast %14 : vector<32xf32> to vector<32x1xf32>
    %cst_8 = arith.constant 3.200000e+01 : f32
    %16 = vector.broadcast %cst_8 : f32 to vector<32x1xf32>
    %17 = arith.divf %15, %16 : vector<32x1xf32>
    %18 = vector.broadcast %17 : vector<32x1xf32> to vector<32x32xf32>
    %19 = arith.subf %9, %18 : vector<32x32xf32>
    %20 = arith.mulf %19, %19 : vector<32x32xf32>
    %cst_9 = arith.constant dense<0.000000e+00> : vector<32xf32>
    %21 = vector.multi_reduction <add>, %20, %cst_9 [1] : vector<32x32xf32> to vector<32xf32>
    %22 = vector.shape_cast %21 : vector<32xf32> to vector<32x1xf32>
    %cst_10 = arith.constant 3.200000e+01 : f32
    %23 = vector.broadcast %cst_10 : f32 to vector<32x1xf32>
    %24 = arith.divf %22, %23 : vector<32x1xf32>
    %25 = vector.broadcast %17 : vector<32x1xf32> to vector<32x32xf32>
    %26 = arith.subf %9, %25 : vector<32x32xf32>
    %cst_11 = arith.constant 9.99999974E-6 : f32
    %27 = vector.broadcast %cst_11 : f32 to vector<32x1xf32>
    %28 = arith.addf %24, %27 : vector<32x1xf32>
    %29 = math.rsqrt %28 : vector<32x1xf32>
    %30 = vector.broadcast %29 : vector<32x1xf32> to vector<32x32xf32>
    %31 = arith.mulf %26, %30 : vector<32x32xf32>
    %32 = vector.shape_cast %11 : vector<32xf32> to vector<1x32xf32>
    %33 = vector.broadcast %32 : vector<1x32xf32> to vector<32x32xf32>
    %34 = arith.mulf %31, %33 : vector<32x32xf32>
    %35 = vector.shape_cast %13 : vector<32xf32> to vector<1x32xf32>
    %36 = vector.broadcast %35 : vector<1x32xf32> to vector<32x32xf32>
    %37 = arith.addf %34, %36 : vector<32x32xf32>
    %38 = tpu.iota {dimensions = array<i32: 0>} : vector<32x32xi32>
    %c8_i32 = arith.constant 8 : i32
    %c0_i32 = arith.constant 0 : i32
    %39 = arith.cmpi eq, %c8_i32, %c0_i32 : i32
    %c1_i32 = arith.constant 1 : i32
    %40 = arith.select %39, %c1_i32, %c8_i32 : i32
    %41 = vector.broadcast %40 : i32 to vector<32x32xi32>
    %42 = arith.remsi %38, %41 : vector<32x32xi32>
    %c0_i32_12 = arith.constant 0 : i32
    %43 = vector.broadcast %c0_i32_12 : i32 to vector<32x32xi32>
    %44 = arith.cmpi ne, %42, %43 : vector<32x32xi32>
    %c0_i32_13 = arith.constant 0 : i32
    %45 = vector.broadcast %c0_i32_13 : i32 to vector<32x32xi32>
    %46 = arith.cmpi slt, %42, %45 : vector<32x32xi32>
    %c0_i32_14 = arith.constant 0 : i32
    %47 = arith.cmpi slt, %40, %c0_i32_14 : i32
    %48 = vector.broadcast %47 : i1 to vector<32x32xi1>
    %49 = vector.broadcast %48 : vector<32x32xi1> to vector<32x32xi1>
    %50 = arith.xori %46, %49 : vector<32x32xi1>
    %51 = arith.andi %50, %44 : vector<32x32xi1>
    %52 = vector.broadcast %40 : i32 to vector<32x32xi32>
    %53 = arith.addi %42, %52 : vector<32x32xi32>
    %54 = arith.select %51, %53, %42 : vector<32x32xi1>, vector<32x32xi32>
    %55 = tpu.iota {dimensions = array<i32: 1>} : vector<32x32xi32>
    %c8_i32_15 = arith.constant 8 : i32
    %c0_i32_16 = arith.constant 0 : i32
    %56 = arith.cmpi eq, %c8_i32_15, %c0_i32_16 : i32
    %c1_i32_17 = arith.constant 1 : i32
    %57 = arith.select %56, %c1_i32_17, %c8_i32_15 : i32
    %58 = vector.broadcast %57 : i32 to vector<32x32xi32>
    %59 = arith.remsi %55, %58 : vector<32x32xi32>
    %c0_i32_18 = arith.constant 0 : i32
    %60 = vector.broadcast %c0_i32_18 : i32 to vector<32x32xi32>
    %61 = arith.cmpi ne, %59, %60 : vector<32x32xi32>
    %c0_i32_19 = arith.constant 0 : i32
    %62 = vector.broadcast %c0_i32_19 : i32 to vector<32x32xi32>
    %63 = arith.cmpi slt, %59, %62 : vector<32x32xi32>
    %c0_i32_20 = arith.constant 0 : i32
    %64 = arith.cmpi slt, %57, %c0_i32_20 : i32
    %65 = vector.broadcast %64 : i1 to vector<32x32xi1>
    %66 = vector.broadcast %65 : vector<32x32xi1> to vector<32x32xi1>
    %67 = arith.xori %63, %66 : vector<32x32xi1>
    %68 = arith.andi %67, %61 : vector<32x32xi1>
    %69 = vector.broadcast %57 : i32 to vector<32x32xi32>
    %70 = arith.addi %59, %69 : vector<32x32xi32>
    %71 = arith.select %68, %70, %59 : vector<32x32xi1>, vector<32x32xi32>
    %72 = arith.cmpi eq, %54, %71 : vector<32x32xi32>
    %cst_21 = arith.constant 0.000000e+00 : f32
    %cst_22 = arith.constant -1.000000e+09 : f32
    %73 = vector.broadcast %cst_21 : f32 to vector<32x32xf32>
    %74 = vector.broadcast %cst_22 : f32 to vector<32x32xf32>
    %75 = arith.select %72, %73, %74 : vector<32x32xi1>, vector<32x32xf32>
    %cst_23 = arith.constant 8.000000e+00 : f32
    %76 = math.sqrt %cst_23 : f32
    %cst_24 = arith.constant 1.000000e+00 : f32
    %77 = arith.divf %cst_24, %76 : f32
    %c53 = arith.constant 53 : index
    %c0_25 = arith.constant 0 : index
    %78 = vector.load %arg1[%c53, %c0_25] : memref<520x32xf32, #tpu.memory_space<vmem>>, vector<1x32xf32>
    %79 = vector.shape_cast %78 : vector<1x32xf32> to vector<32xf32>
    %c54 = arith.constant 54 : index
    %c0_26 = arith.constant 0 : index
    %80 = vector.load %arg1[%c54, %c0_26] : memref<520x32xf32, #tpu.memory_space<vmem>>, vector<1x32xf32>
    %81 = vector.shape_cast %80 : vector<1x32xf32> to vector<32xf32>
    %c55 = arith.constant 55 : index
    %c0_27 = arith.constant 0 : index
    %82 = vector.load %arg1[%c55, %c0_27] : memref<520x32xf32, #tpu.memory_space<vmem>>, vector<1x32xf32>
    %83 = vector.shape_cast %82 : vector<1x32xf32> to vector<32xf32>
    %c56 = arith.constant 56 : index
    %c0_28 = arith.constant 0 : index
    %84 = vector.load %arg1[%c56, %c0_28] : memref<520x32xf32, #tpu.memory_space<vmem>>, vector<1x32xf32>
    %85 = vector.shape_cast %84 : vector<1x32xf32> to vector<32xf32>
    %c57 = arith.constant 57 : index
    %c0_29 = arith.constant 0 : index
    %86 = vector.load %arg1[%c57, %c0_29] : memref<520x32xf32, #tpu.memory_space<vmem>>, vector<1x32xf32>
    %87 = vector.shape_cast %86 : vector<1x32xf32> to vector<32xf32>
    %c58 = arith.constant 58 : index
    %c0_30 = arith.constant 0 : index
    %88 = vector.load %arg1[%c58, %c0_30] : memref<520x32xf32, #tpu.memory_space<vmem>>, vector<1x32xf32>
    %89 = vector.shape_cast %88 : vector<1x32xf32> to vector<32xf32>
    %c59 = arith.constant 59 : index
    %c0_31 = arith.constant 0 : index
    %90 = vector.load %arg1[%c59, %c0_31] : memref<520x32xf32, #tpu.memory_space<vmem>>, vector<1x32xf32>
    %91 = vector.shape_cast %90 : vector<1x32xf32> to vector<32xf32>
    %c60 = arith.constant 60 : index
    %c0_32 = arith.constant 0 : index
    %92 = vector.load %arg1[%c60, %c0_32] : memref<520x32xf32, #tpu.memory_space<vmem>>, vector<1x32xf32>
    %93 = vector.shape_cast %92 : vector<1x32xf32> to vector<32xf32>
    %c61 = arith.constant 61 : index
    %c0_33 = arith.constant 0 : index
    %94 = vector.load %arg1[%c61, %c0_33] : memref<520x32xf32, #tpu.memory_space<vmem>>, vector<1x32xf32>
    %95 = vector.shape_cast %94 : vector<1x32xf32> to vector<32xf32>
    %c72 = arith.constant 72 : index
    %c0_34 = arith.constant 0 : index
    %96 = vector.load %arg1[%c72, %c0_34] : memref<520x32xf32, #tpu.memory_space<vmem>>, vector<32x32xf32>
    %cst_35 = arith.constant dense<0.000000e+00> : vector<32x32xf32>
    %97 = tpu.matmul %37, %96, %cst_35 {dimension_numbers = #tpu.dot_dimension_numbers<[1], [0], [0], [1], [0, 0, 1, 1], [], []>} : vector<32x32xf32>, vector<32x32xf32>, vector<32x32xf32> -> vector<32x32xf32>
    %98 = vector.shape_cast %79 : vector<32xf32> to vector<1x32xf32>
    %99 = vector.broadcast %98 : vector<1x32xf32> to vector<32x32xf32>
    %100 = arith.addf %97, %99 : vector<32x32xf32>
    %101 = vector.broadcast %77 : f32 to vector<32x32xf32>
    %102 = arith.mulf %100, %101 : vector<32x32xf32>
    %c104 = arith.constant 104 : index
    %c0_36 = arith.constant 0 : index
    %103 = vector.load %arg1[%c104, %c0_36] : memref<520x32xf32, #tpu.memory_space<vmem>>, vector<32x32xf32>
    %cst_37 = arith.constant dense<0.000000e+00> : vector<32x32xf32>
    %104 = tpu.matmul %37, %103, %cst_37 {dimension_numbers = #tpu.dot_dimension_numbers<[1], [0], [0], [1], [0, 0, 1, 1], [], []>} : vector<32x32xf32>, vector<32x32xf32>, vector<32x32xf32> -> vector<32x32xf32>
    %105 = vector.shape_cast %81 : vector<32xf32> to vector<1x32xf32>
    %106 = vector.broadcast %105 : vector<1x32xf32> to vector<32x32xf32>
    %107 = arith.addf %104, %106 : vector<32x32xf32>
    %c136 = arith.constant 136 : index
    %c0_38 = arith.constant 0 : index
    %108 = vector.load %arg1[%c136, %c0_38] : memref<520x32xf32, #tpu.memory_space<vmem>>, vector<32x32xf32>
    %cst_39 = arith.constant dense<0.000000e+00> : vector<32x32xf32>
    %109 = tpu.matmul %37, %108, %cst_39 {dimension_numbers = #tpu.dot_dimension_numbers<[1], [0], [0], [1], [0, 0, 1, 1], [], []>} : vector<32x32xf32>, vector<32x32xf32>, vector<32x32xf32> -> vector<32x32xf32>
    %110 = vector.shape_cast %83 : vector<32xf32> to vector<1x32xf32>
    %111 = vector.broadcast %110 : vector<1x32xf32> to vector<32x32xf32>
    %112 = arith.addf %109, %111 : vector<32x32xf32>
    %113 = vector.extract_strided_slice %102 {offsets = [0, 0], sizes = [32, 8], strides = [1, 1]} : vector<32x32xf32> to vector<32x8xf32>
    %114 = vector.extract_strided_slice %107 {offsets = [0, 0], sizes = [32, 8], strides = [1, 1]} : vector<32x32xf32> to vector<32x8xf32>
    %cst_40 = arith.constant dense<0.000000e+00> : vector<32x32xf32>
    %115 = tpu.matmul %113, %114, %cst_40 {dimension_numbers = #tpu.dot_dimension_numbers<[1], [1], [0], [0], [0, 0, 1, 0], [], []>} : vector<32x8xf32>, vector<32x8xf32>, vector<32x32xf32> -> vector<32x32xf32>
    %116 = arith.addf %115, %75 : vector<32x32xf32>
    %cst_41 = arith.constant dense<0xFF800000> : vector<32xf32>
    %117 = vector.multi_reduction <maximumf>, %116, %cst_41 [1] : vector<32x32xf32> to vector<32xf32>
    %118 = vector.shape_cast %117 : vector<32xf32> to vector<32x1xf32>
    %119 = vector.broadcast %118 : vector<32x1xf32> to vector<32x32xf32>
    %120 = arith.subf %116, %119 : vector<32x32xf32>
    %121 = math.exp %120 : vector<32x32xf32>
    %cst_42 = arith.constant dense<0.000000e+00> : vector<32xf32>
    %122 = vector.multi_reduction <add>, %121, %cst_42 [1] : vector<32x32xf32> to vector<32xf32>
    %123 = vector.shape_cast %122 : vector<32xf32> to vector<32x1xf32>
    %124 = tpu.reciprocal %123 {approx = true} : vector<32x1xf32> -> vector<32x1xf32>
    %125 = vector.broadcast %124 : vector<32x1xf32> to vector<32x32xf32>
    %126 = arith.mulf %121, %125 : vector<32x32xf32>
    %127 = vector.extract_strided_slice %112 {offsets = [0, 0], sizes = [32, 8], strides = [1, 1]} : vector<32x32xf32> to vector<32x8xf32>
    %cst_43 = arith.constant dense<0.000000e+00> : vector<32x8xf32>
    %128 = tpu.matmul %126, %127, %cst_43 {dimension_numbers = #tpu.dot_dimension_numbers<[1], [0], [0], [1], [0, 0, 1, 1], [], []>} : vector<32x32xf32>, vector<32x8xf32>, vector<32x8xf32> -> vector<32x8xf32>
    %c168 = arith.constant 168 : index
    %c0_44 = arith.constant 0 : index
    %129 = vector.load %arg1[%c168, %c0_44] : memref<520x32xf32, #tpu.memory_space<vmem>>, vector<8x32xf32>
    %cst_45 = arith.constant dense<0.000000e+00> : vector<32x32xf32>
    %130 = tpu.matmul %128, %129, %cst_45 {dimension_numbers = #tpu.dot_dimension_numbers<[1], [0], [0], [1], [0, 0, 1, 1], [], []>} : vector<32x8xf32>, vector<8x32xf32>, vector<32x32xf32> -> vector<32x32xf32>
    %131 = vector.extract_strided_slice %102 {offsets = [0, 8], sizes = [32, 8], strides = [1, 1]} : vector<32x32xf32> to vector<32x8xf32>
    %132 = vector.extract_strided_slice %107 {offsets = [0, 8], sizes = [32, 8], strides = [1, 1]} : vector<32x32xf32> to vector<32x8xf32>
    %cst_46 = arith.constant dense<0.000000e+00> : vector<32x32xf32>
    %133 = tpu.matmul %131, %132, %cst_46 {dimension_numbers = #tpu.dot_dimension_numbers<[1], [1], [0], [0], [0, 0, 1, 0], [], []>} : vector<32x8xf32>, vector<32x8xf32>, vector<32x32xf32> -> vector<32x32xf32>
    %134 = arith.addf %133, %75 : vector<32x32xf32>
    %cst_47 = arith.constant dense<0xFF800000> : vector<32xf32>
    %135 = vector.multi_reduction <maximumf>, %134, %cst_47 [1] : vector<32x32xf32> to vector<32xf32>
    %136 = vector.shape_cast %135 : vector<32xf32> to vector<32x1xf32>
    %137 = vector.broadcast %136 : vector<32x1xf32> to vector<32x32xf32>
    %138 = arith.subf %134, %137 : vector<32x32xf32>
    %139 = math.exp %138 : vector<32x32xf32>
    %cst_48 = arith.constant dense<0.000000e+00> : vector<32xf32>
    %140 = vector.multi_reduction <add>, %139, %cst_48 [1] : vector<32x32xf32> to vector<32xf32>
    %141 = vector.shape_cast %140 : vector<32xf32> to vector<32x1xf32>
    %142 = tpu.reciprocal %141 {approx = true} : vector<32x1xf32> -> vector<32x1xf32>
    %143 = vector.broadcast %142 : vector<32x1xf32> to vector<32x32xf32>
    %144 = arith.mulf %139, %143 : vector<32x32xf32>
    %145 = vector.extract_strided_slice %112 {offsets = [0, 8], sizes = [32, 8], strides = [1, 1]} : vector<32x32xf32> to vector<32x8xf32>
    %cst_49 = arith.constant dense<0.000000e+00> : vector<32x8xf32>
    %146 = tpu.matmul %144, %145, %cst_49 {dimension_numbers = #tpu.dot_dimension_numbers<[1], [0], [0], [1], [0, 0, 1, 1], [], []>} : vector<32x32xf32>, vector<32x8xf32>, vector<32x8xf32> -> vector<32x8xf32>
    %c176 = arith.constant 176 : index
    %c0_50 = arith.constant 0 : index
    %147 = vector.load %arg1[%c176, %c0_50] : memref<520x32xf32, #tpu.memory_space<vmem>>, vector<8x32xf32>
    %cst_51 = arith.constant dense<0.000000e+00> : vector<32x32xf32>
    %148 = tpu.matmul %146, %147, %cst_51 {dimension_numbers = #tpu.dot_dimension_numbers<[1], [0], [0], [1], [0, 0, 1, 1], [], []>} : vector<32x8xf32>, vector<8x32xf32>, vector<32x32xf32> -> vector<32x32xf32>
    %149 = arith.addf %130, %148 : vector<32x32xf32>
    %150 = vector.extract_strided_slice %102 {offsets = [0, 16], sizes = [32, 8], strides = [1, 1]} : vector<32x32xf32> to vector<32x8xf32>
    %151 = vector.extract_strided_slice %107 {offsets = [0, 16], sizes = [32, 8], strides = [1, 1]} : vector<32x32xf32> to vector<32x8xf32>
    %cst_52 = arith.constant dense<0.000000e+00> : vector<32x32xf32>
    %152 = tpu.matmul %150, %151, %cst_52 {dimension_numbers = #tpu.dot_dimension_numbers<[1], [1], [0], [0], [0, 0, 1, 0], [], []>} : vector<32x8xf32>, vector<32x8xf32>, vector<32x32xf32> -> vector<32x32xf32>
    %153 = arith.addf %152, %75 : vector<32x32xf32>
    %cst_53 = arith.constant dense<0xFF800000> : vector<32xf32>
    %154 = vector.multi_reduction <maximumf>, %153, %cst_53 [1] : vector<32x32xf32> to vector<32xf32>
    %155 = vector.shape_cast %154 : vector<32xf32> to vector<32x1xf32>
    %156 = vector.broadcast %155 : vector<32x1xf32> to vector<32x32xf32>
    %157 = arith.subf %153, %156 : vector<32x32xf32>
    %158 = math.exp %157 : vector<32x32xf32>
    %cst_54 = arith.constant dense<0.000000e+00> : vector<32xf32>
    %159 = vector.multi_reduction <add>, %158, %cst_54 [1] : vector<32x32xf32> to vector<32xf32>
    %160 = vector.shape_cast %159 : vector<32xf32> to vector<32x1xf32>
    %161 = tpu.reciprocal %160 {approx = true} : vector<32x1xf32> -> vector<32x1xf32>
    %162 = vector.broadcast %161 : vector<32x1xf32> to vector<32x32xf32>
    %163 = arith.mulf %158, %162 : vector<32x32xf32>
    %164 = vector.extract_strided_slice %112 {offsets = [0, 16], sizes = [32, 8], strides = [1, 1]} : vector<32x32xf32> to vector<32x8xf32>
    %cst_55 = arith.constant dense<0.000000e+00> : vector<32x8xf32>
    %165 = tpu.matmul %163, %164, %cst_55 {dimension_numbers = #tpu.dot_dimension_numbers<[1], [0], [0], [1], [0, 0, 1, 1], [], []>} : vector<32x32xf32>, vector<32x8xf32>, vector<32x8xf32> -> vector<32x8xf32>
    %c184 = arith.constant 184 : index
    %c0_56 = arith.constant 0 : index
    %166 = vector.load %arg1[%c184, %c0_56] : memref<520x32xf32, #tpu.memory_space<vmem>>, vector<8x32xf32>
    %cst_57 = arith.constant dense<0.000000e+00> : vector<32x32xf32>
    %167 = tpu.matmul %165, %166, %cst_57 {dimension_numbers = #tpu.dot_dimension_numbers<[1], [0], [0], [1], [0, 0, 1, 1], [], []>} : vector<32x8xf32>, vector<8x32xf32>, vector<32x32xf32> -> vector<32x32xf32>
    %168 = arith.addf %149, %167 : vector<32x32xf32>
    %169 = vector.extract_strided_slice %102 {offsets = [0, 24], sizes = [32, 8], strides = [1, 1]} : vector<32x32xf32> to vector<32x8xf32>
    %170 = vector.extract_strided_slice %107 {offsets = [0, 24], sizes = [32, 8], strides = [1, 1]} : vector<32x32xf32> to vector<32x8xf32>
    %cst_58 = arith.constant dense<0.000000e+00> : vector<32x32xf32>
    %171 = tpu.matmul %169, %170, %cst_58 {dimension_numbers = #tpu.dot_dimension_numbers<[1], [1], [0], [0], [0, 0, 1, 0], [], []>} : vector<32x8xf32>, vector<32x8xf32>, vector<32x32xf32> -> vector<32x32xf32>
    %172 = arith.addf %171, %75 : vector<32x32xf32>
    %cst_59 = arith.constant dense<0xFF800000> : vector<32xf32>
    %173 = vector.multi_reduction <maximumf>, %172, %cst_59 [1] : vector<32x32xf32> to vector<32xf32>
    %174 = vector.shape_cast %173 : vector<32xf32> to vector<32x1xf32>
    %175 = vector.broadcast %174 : vector<32x1xf32> to vector<32x32xf32>
    %176 = arith.subf %172, %175 : vector<32x32xf32>
    %177 = math.exp %176 : vector<32x32xf32>
    %cst_60 = arith.constant dense<0.000000e+00> : vector<32xf32>
    %178 = vector.multi_reduction <add>, %177, %cst_60 [1] : vector<32x32xf32> to vector<32xf32>
    %179 = vector.shape_cast %178 : vector<32xf32> to vector<32x1xf32>
    %180 = tpu.reciprocal %179 {approx = true} : vector<32x1xf32> -> vector<32x1xf32>
    %181 = vector.broadcast %180 : vector<32x1xf32> to vector<32x32xf32>
    %182 = arith.mulf %177, %181 : vector<32x32xf32>
    %183 = vector.extract_strided_slice %112 {offsets = [0, 24], sizes = [32, 8], strides = [1, 1]} : vector<32x32xf32> to vector<32x8xf32>
    %cst_61 = arith.constant dense<0.000000e+00> : vector<32x8xf32>
    %184 = tpu.matmul %182, %183, %cst_61 {dimension_numbers = #tpu.dot_dimension_numbers<[1], [0], [0], [1], [0, 0, 1, 1], [], []>} : vector<32x32xf32>, vector<32x8xf32>, vector<32x8xf32> -> vector<32x8xf32>
    %c192 = arith.constant 192 : index
    %c0_62 = arith.constant 0 : index
    %185 = vector.load %arg1[%c192, %c0_62] : memref<520x32xf32, #tpu.memory_space<vmem>>, vector<8x32xf32>
    %cst_63 = arith.constant dense<0.000000e+00> : vector<32x32xf32>
    %186 = tpu.matmul %184, %185, %cst_63 {dimension_numbers = #tpu.dot_dimension_numbers<[1], [0], [0], [1], [0, 0, 1, 1], [], []>} : vector<32x8xf32>, vector<8x32xf32>, vector<32x32xf32> -> vector<32x32xf32>
    %187 = arith.addf %168, %186 : vector<32x32xf32>
    %188 = vector.shape_cast %85 : vector<32xf32> to vector<1x32xf32>
    %189 = vector.broadcast %188 : vector<1x32xf32> to vector<32x32xf32>
    %190 = arith.addf %187, %189 : vector<32x32xf32>
    %191 = arith.addf %37, %190 : vector<32x32xf32>
    %cst_64 = arith.constant dense<0.000000e+00> : vector<32xf32>
    %192 = vector.multi_reduction <add>, %191, %cst_64 [1] : vector<32x32xf32> to vector<32xf32>
    %193 = vector.shape_cast %192 : vector<32xf32> to vector<32x1xf32>
    %cst_65 = arith.constant 3.200000e+01 : f32
    %194 = vector.broadcast %cst_65 : f32 to vector<32x1xf32>
    %195 = arith.divf %193, %194 : vector<32x1xf32>
    %196 = vector.broadcast %195 : vector<32x1xf32> to vector<32x32xf32>
    %197 = arith.subf %191, %196 : vector<32x32xf32>
    %198 = arith.mulf %197, %197 : vector<32x32xf32>
    %cst_66 = arith.constant dense<0.000000e+00> : vector<32xf32>
    %199 = vector.multi_reduction <add>, %198, %cst_66 [1] : vector<32x32xf32> to vector<32xf32>
    %200 = vector.shape_cast %199 : vector<32xf32> to vector<32x1xf32>
    %cst_67 = arith.constant 3.200000e+01 : f32
    %201 = vector.broadcast %cst_67 : f32 to vector<32x1xf32>
    %202 = arith.divf %200, %201 : vector<32x1xf32>
    %203 = vector.broadcast %195 : vector<32x1xf32> to vector<32x32xf32>
    %204 = arith.subf %191, %203 : vector<32x32xf32>
    %cst_68 = arith.constant 9.99999974E-6 : f32
    %205 = vector.broadcast %cst_68 : f32 to vector<32x1xf32>
    %206 = arith.addf %202, %205 : vector<32x1xf32>
    %207 = math.rsqrt %206 : vector<32x1xf32>
    %208 = vector.broadcast %207 : vector<32x1xf32> to vector<32x32xf32>
    %209 = arith.mulf %204, %208 : vector<32x32xf32>
    %210 = vector.shape_cast %89 : vector<32xf32> to vector<1x32xf32>
    %211 = vector.broadcast %210 : vector<1x32xf32> to vector<32x32xf32>
    %212 = arith.mulf %209, %211 : vector<32x32xf32>
    %213 = vector.shape_cast %91 : vector<32xf32> to vector<1x32xf32>
    %214 = vector.broadcast %213 : vector<1x32xf32> to vector<32x32xf32>
    %215 = arith.addf %212, %214 : vector<32x32xf32>
    %c0_69 = arith.constant 0 : index
    %c0_70 = arith.constant 0 : index
    %216 = vector.load %arg2[%c0_69, %c0_70] : memref<80x64xf32, #tpu.memory_space<vmem>>, vector<32x64xf32>
    %cst_71 = arith.constant dense<0.000000e+00> : vector<32x64xf32>
    %217 = tpu.matmul %215, %216, %cst_71 {dimension_numbers = #tpu.dot_dimension_numbers<[1], [0], [0], [1], [0, 0, 1, 1], [], []>} : vector<32x32xf32>, vector<32x64xf32>, vector<32x64xf32> -> vector<32x64xf32>
    %c32_72 = arith.constant 32 : index
    %c0_73 = arith.constant 0 : index
    %218 = vector.load %arg2[%c32_72, %c0_73] : memref<80x64xf32, #tpu.memory_space<vmem>>, vector<1x64xf32>
    %219 = vector.shape_cast %218 : vector<1x64xf32> to vector<64xf32>
    %220 = vector.shape_cast %219 : vector<64xf32> to vector<1x64xf32>
    %221 = vector.broadcast %220 : vector<1x64xf32> to vector<32x64xf32>
    %222 = arith.addf %217, %221 : vector<32x64xf32>
    %cst_74 = arith.constant 0.000000e+00 : f32
    %223 = vector.broadcast %cst_74 : f32 to vector<32x64xf32>
    %224 = arith.maximumf %222, %223 : vector<32x64xf32>
    %c200 = arith.constant 200 : index
    %c0_75 = arith.constant 0 : index
    %225 = vector.load %arg1[%c200, %c0_75] : memref<520x32xf32, #tpu.memory_space<vmem>>, vector<64x32xf32>
    %cst_76 = arith.constant dense<0.000000e+00> : vector<32x32xf32>
    %226 = tpu.matmul %224, %225, %cst_76 {dimension_numbers = #tpu.dot_dimension_numbers<[1], [0], [0], [1], [0, 0, 1, 1], [], []>} : vector<32x64xf32>, vector<64x32xf32>, vector<32x32xf32> -> vector<32x32xf32>
    %227 = vector.shape_cast %87 : vector<32xf32> to vector<1x32xf32>
    %228 = vector.broadcast %227 : vector<1x32xf32> to vector<32x32xf32>
    %229 = arith.addf %226, %228 : vector<32x32xf32>
    %230 = arith.addf %215, %229 : vector<32x32xf32>
    %cst_77 = arith.constant dense<0.000000e+00> : vector<32xf32>
    %231 = vector.multi_reduction <add>, %230, %cst_77 [1] : vector<32x32xf32> to vector<32xf32>
    %232 = vector.shape_cast %231 : vector<32xf32> to vector<32x1xf32>
    %cst_78 = arith.constant 3.200000e+01 : f32
    %233 = vector.broadcast %cst_78 : f32 to vector<32x1xf32>
    %234 = arith.divf %232, %233 : vector<32x1xf32>
    %235 = vector.broadcast %234 : vector<32x1xf32> to vector<32x32xf32>
    %236 = arith.subf %230, %235 : vector<32x32xf32>
    %237 = arith.mulf %236, %236 : vector<32x32xf32>
    %cst_79 = arith.constant dense<0.000000e+00> : vector<32xf32>
    %238 = vector.multi_reduction <add>, %237, %cst_79 [1] : vector<32x32xf32> to vector<32xf32>
    %239 = vector.shape_cast %238 : vector<32xf32> to vector<32x1xf32>
    %cst_80 = arith.constant 3.200000e+01 : f32
    %240 = vector.broadcast %cst_80 : f32 to vector<32x1xf32>
    %241 = arith.divf %239, %240 : vector<32x1xf32>
    %242 = vector.broadcast %234 : vector<32x1xf32> to vector<32x32xf32>
    %243 = arith.subf %230, %242 : vector<32x32xf32>
    %cst_81 = arith.constant 9.99999974E-6 : f32
    %244 = vector.broadcast %cst_81 : f32 to vector<32x1xf32>
    %245 = arith.addf %241, %244 : vector<32x1xf32>
    %246 = math.rsqrt %245 : vector<32x1xf32>
    %247 = vector.broadcast %246 : vector<32x1xf32> to vector<32x32xf32>
    %248 = arith.mulf %243, %247 : vector<32x32xf32>
    %249 = vector.shape_cast %93 : vector<32xf32> to vector<1x32xf32>
    %250 = vector.broadcast %249 : vector<1x32xf32> to vector<32x32xf32>
    %251 = arith.mulf %248, %250 : vector<32x32xf32>
    %252 = vector.shape_cast %95 : vector<32xf32> to vector<1x32xf32>
    %253 = vector.broadcast %252 : vector<1x32xf32> to vector<32x32xf32>
    %254 = arith.addf %251, %253 : vector<32x32xf32>
    %c62 = arith.constant 62 : index
    %c0_82 = arith.constant 0 : index
    %255 = vector.load %arg1[%c62, %c0_82] : memref<520x32xf32, #tpu.memory_space<vmem>>, vector<1x32xf32>
    %256 = vector.shape_cast %255 : vector<1x32xf32> to vector<32xf32>
    %c63 = arith.constant 63 : index
    %c0_83 = arith.constant 0 : index
    %257 = vector.load %arg1[%c63, %c0_83] : memref<520x32xf32, #tpu.memory_space<vmem>>, vector<1x32xf32>
    %258 = vector.shape_cast %257 : vector<1x32xf32> to vector<32xf32>
    %c64 = arith.constant 64 : index
    %c0_84 = arith.constant 0 : index
    %259 = vector.load %arg1[%c64, %c0_84] : memref<520x32xf32, #tpu.memory_space<vmem>>, vector<1x32xf32>
    %260 = vector.shape_cast %259 : vector<1x32xf32> to vector<32xf32>
    %c65 = arith.constant 65 : index
    %c0_85 = arith.constant 0 : index
    %261 = vector.load %arg1[%c65, %c0_85] : memref<520x32xf32, #tpu.memory_space<vmem>>, vector<1x32xf32>
    %262 = vector.shape_cast %261 : vector<1x32xf32> to vector<32xf32>
    %c66 = arith.constant 66 : index
    %c0_86 = arith.constant 0 : index
    %263 = vector.load %arg1[%c66, %c0_86] : memref<520x32xf32, #tpu.memory_space<vmem>>, vector<1x32xf32>
    %264 = vector.shape_cast %263 : vector<1x32xf32> to vector<32xf32>
    %c67 = arith.constant 67 : index
    %c0_87 = arith.constant 0 : index
    %265 = vector.load %arg1[%c67, %c0_87] : memref<520x32xf32, #tpu.memory_space<vmem>>, vector<1x32xf32>
    %266 = vector.shape_cast %265 : vector<1x32xf32> to vector<32xf32>
    %c68 = arith.constant 68 : index
    %c0_88 = arith.constant 0 : index
    %267 = vector.load %arg1[%c68, %c0_88] : memref<520x32xf32, #tpu.memory_space<vmem>>, vector<1x32xf32>
    %268 = vector.shape_cast %267 : vector<1x32xf32> to vector<32xf32>
    %c69 = arith.constant 69 : index
    %c0_89 = arith.constant 0 : index
    %269 = vector.load %arg1[%c69, %c0_89] : memref<520x32xf32, #tpu.memory_space<vmem>>, vector<1x32xf32>
    %270 = vector.shape_cast %269 : vector<1x32xf32> to vector<32xf32>
    %c70 = arith.constant 70 : index
    %c0_90 = arith.constant 0 : index
    %271 = vector.load %arg1[%c70, %c0_90] : memref<520x32xf32, #tpu.memory_space<vmem>>, vector<1x32xf32>
    %272 = vector.shape_cast %271 : vector<1x32xf32> to vector<32xf32>
    %c264 = arith.constant 264 : index
    %c0_91 = arith.constant 0 : index
    %273 = vector.load %arg1[%c264, %c0_91] : memref<520x32xf32, #tpu.memory_space<vmem>>, vector<32x32xf32>
    %cst_92 = arith.constant dense<0.000000e+00> : vector<32x32xf32>
    %274 = tpu.matmul %254, %273, %cst_92 {dimension_numbers = #tpu.dot_dimension_numbers<[1], [0], [0], [1], [0, 0, 1, 1], [], []>} : vector<32x32xf32>, vector<32x32xf32>, vector<32x32xf32> -> vector<32x32xf32>
    %275 = vector.shape_cast %256 : vector<32xf32> to vector<1x32xf32>
    %276 = vector.broadcast %275 : vector<1x32xf32> to vector<32x32xf32>
    %277 = arith.addf %274, %276 : vector<32x32xf32>
    %278 = vector.broadcast %77 : f32 to vector<32x32xf32>
    %279 = arith.mulf %277, %278 : vector<32x32xf32>
    %c296 = arith.constant 296 : index
    %c0_93 = arith.constant 0 : index
    %280 = vector.load %arg1[%c296, %c0_93] : memref<520x32xf32, #tpu.memory_space<vmem>>, vector<32x32xf32>
    %cst_94 = arith.constant dense<0.000000e+00> : vector<32x32xf32>
    %281 = tpu.matmul %254, %280, %cst_94 {dimension_numbers = #tpu.dot_dimension_numbers<[1], [0], [0], [1], [0, 0, 1, 1], [], []>} : vector<32x32xf32>, vector<32x32xf32>, vector<32x32xf32> -> vector<32x32xf32>
    %282 = vector.shape_cast %258 : vector<32xf32> to vector<1x32xf32>
    %283 = vector.broadcast %282 : vector<1x32xf32> to vector<32x32xf32>
    %284 = arith.addf %281, %283 : vector<32x32xf32>
    %c328 = arith.constant 328 : index
    %c0_95 = arith.constant 0 : index
    %285 = vector.load %arg1[%c328, %c0_95] : memref<520x32xf32, #tpu.memory_space<vmem>>, vector<32x32xf32>
    %cst_96 = arith.constant dense<0.000000e+00> : vector<32x32xf32>
    %286 = tpu.matmul %254, %285, %cst_96 {dimension_numbers = #tpu.dot_dimension_numbers<[1], [0], [0], [1], [0, 0, 1, 1], [], []>} : vector<32x32xf32>, vector<32x32xf32>, vector<32x32xf32> -> vector<32x32xf32>
    %287 = vector.shape_cast %260 : vector<32xf32> to vector<1x32xf32>
    %288 = vector.broadcast %287 : vector<1x32xf32> to vector<32x32xf32>
    %289 = arith.addf %286, %288 : vector<32x32xf32>
    %290 = vector.extract_strided_slice %279 {offsets = [0, 0], sizes = [32, 8], strides = [1, 1]} : vector<32x32xf32> to vector<32x8xf32>
    %291 = vector.extract_strided_slice %284 {offsets = [0, 0], sizes = [32, 8], strides = [1, 1]} : vector<32x32xf32> to vector<32x8xf32>
    %cst_97 = arith.constant dense<0.000000e+00> : vector<32x32xf32>
    %292 = tpu.matmul %290, %291, %cst_97 {dimension_numbers = #tpu.dot_dimension_numbers<[1], [1], [0], [0], [0, 0, 1, 0], [], []>} : vector<32x8xf32>, vector<32x8xf32>, vector<32x32xf32> -> vector<32x32xf32>
    %293 = arith.addf %292, %75 : vector<32x32xf32>
    %cst_98 = arith.constant dense<0xFF800000> : vector<32xf32>
    %294 = vector.multi_reduction <maximumf>, %293, %cst_98 [1] : vector<32x32xf32> to vector<32xf32>
    %295 = vector.shape_cast %294 : vector<32xf32> to vector<32x1xf32>
    %296 = vector.broadcast %295 : vector<32x1xf32> to vector<32x32xf32>
    %297 = arith.subf %293, %296 : vector<32x32xf32>
    %298 = math.exp %297 : vector<32x32xf32>
    %cst_99 = arith.constant dense<0.000000e+00> : vector<32xf32>
    %299 = vector.multi_reduction <add>, %298, %cst_99 [1] : vector<32x32xf32> to vector<32xf32>
    %300 = vector.shape_cast %299 : vector<32xf32> to vector<32x1xf32>
    %301 = tpu.reciprocal %300 {approx = true} : vector<32x1xf32> -> vector<32x1xf32>
    %302 = vector.broadcast %301 : vector<32x1xf32> to vector<32x32xf32>
    %303 = arith.mulf %298, %302 : vector<32x32xf32>
    %304 = vector.extract_strided_slice %289 {offsets = [0, 0], sizes = [32, 8], strides = [1, 1]} : vector<32x32xf32> to vector<32x8xf32>
    %cst_100 = arith.constant dense<0.000000e+00> : vector<32x8xf32>
    %305 = tpu.matmul %303, %304, %cst_100 {dimension_numbers = #tpu.dot_dimension_numbers<[1], [0], [0], [1], [0, 0, 1, 1], [], []>} : vector<32x32xf32>, vector<32x8xf32>, vector<32x8xf32> -> vector<32x8xf32>
    %c360 = arith.constant 360 : index
    %c0_101 = arith.constant 0 : index
    %306 = vector.load %arg1[%c360, %c0_101] : memref<520x32xf32, #tpu.memory_space<vmem>>, vector<8x32xf32>
    %cst_102 = arith.constant dense<0.000000e+00> : vector<32x32xf32>
    %307 = tpu.matmul %305, %306, %cst_102 {dimension_numbers = #tpu.dot_dimension_numbers<[1], [0], [0], [1], [0, 0, 1, 1], [], []>} : vector<32x8xf32>, vector<8x32xf32>, vector<32x32xf32> -> vector<32x32xf32>
    %308 = vector.extract_strided_slice %279 {offsets = [0, 8], sizes = [32, 8], strides = [1, 1]} : vector<32x32xf32> to vector<32x8xf32>
    %309 = vector.extract_strided_slice %284 {offsets = [0, 8], sizes = [32, 8], strides = [1, 1]} : vector<32x32xf32> to vector<32x8xf32>
    %cst_103 = arith.constant dense<0.000000e+00> : vector<32x32xf32>
    %310 = tpu.matmul %308, %309, %cst_103 {dimension_numbers = #tpu.dot_dimension_numbers<[1], [1], [0], [0], [0, 0, 1, 0], [], []>} : vector<32x8xf32>, vector<32x8xf32>, vector<32x32xf32> -> vector<32x32xf32>
    %311 = arith.addf %310, %75 : vector<32x32xf32>
    %cst_104 = arith.constant dense<0xFF800000> : vector<32xf32>
    %312 = vector.multi_reduction <maximumf>, %311, %cst_104 [1] : vector<32x32xf32> to vector<32xf32>
    %313 = vector.shape_cast %312 : vector<32xf32> to vector<32x1xf32>
    %314 = vector.broadcast %313 : vector<32x1xf32> to vector<32x32xf32>
    %315 = arith.subf %311, %314 : vector<32x32xf32>
    %316 = math.exp %315 : vector<32x32xf32>
    %cst_105 = arith.constant dense<0.000000e+00> : vector<32xf32>
    %317 = vector.multi_reduction <add>, %316, %cst_105 [1] : vector<32x32xf32> to vector<32xf32>
    %318 = vector.shape_cast %317 : vector<32xf32> to vector<32x1xf32>
    %319 = tpu.reciprocal %318 {approx = true} : vector<32x1xf32> -> vector<32x1xf32>
    %320 = vector.broadcast %319 : vector<32x1xf32> to vector<32x32xf32>
    %321 = arith.mulf %316, %320 : vector<32x32xf32>
    %322 = vector.extract_strided_slice %289 {offsets = [0, 8], sizes = [32, 8], strides = [1, 1]} : vector<32x32xf32> to vector<32x8xf32>
    %cst_106 = arith.constant dense<0.000000e+00> : vector<32x8xf32>
    %323 = tpu.matmul %321, %322, %cst_106 {dimension_numbers = #tpu.dot_dimension_numbers<[1], [0], [0], [1], [0, 0, 1, 1], [], []>} : vector<32x32xf32>, vector<32x8xf32>, vector<32x8xf32> -> vector<32x8xf32>
    %c368 = arith.constant 368 : index
    %c0_107 = arith.constant 0 : index
    %324 = vector.load %arg1[%c368, %c0_107] : memref<520x32xf32, #tpu.memory_space<vmem>>, vector<8x32xf32>
    %cst_108 = arith.constant dense<0.000000e+00> : vector<32x32xf32>
    %325 = tpu.matmul %323, %324, %cst_108 {dimension_numbers = #tpu.dot_dimension_numbers<[1], [0], [0], [1], [0, 0, 1, 1], [], []>} : vector<32x8xf32>, vector<8x32xf32>, vector<32x32xf32> -> vector<32x32xf32>
    %326 = arith.addf %307, %325 : vector<32x32xf32>
    %327 = vector.extract_strided_slice %279 {offsets = [0, 16], sizes = [32, 8], strides = [1, 1]} : vector<32x32xf32> to vector<32x8xf32>
    %328 = vector.extract_strided_slice %284 {offsets = [0, 16], sizes = [32, 8], strides = [1, 1]} : vector<32x32xf32> to vector<32x8xf32>
    %cst_109 = arith.constant dense<0.000000e+00> : vector<32x32xf32>
    %329 = tpu.matmul %327, %328, %cst_109 {dimension_numbers = #tpu.dot_dimension_numbers<[1], [1], [0], [0], [0, 0, 1, 0], [], []>} : vector<32x8xf32>, vector<32x8xf32>, vector<32x32xf32> -> vector<32x32xf32>
    %330 = arith.addf %329, %75 : vector<32x32xf32>
    %cst_110 = arith.constant dense<0xFF800000> : vector<32xf32>
    %331 = vector.multi_reduction <maximumf>, %330, %cst_110 [1] : vector<32x32xf32> to vector<32xf32>
    %332 = vector.shape_cast %331 : vector<32xf32> to vector<32x1xf32>
    %333 = vector.broadcast %332 : vector<32x1xf32> to vector<32x32xf32>
    %334 = arith.subf %330, %333 : vector<32x32xf32>
    %335 = math.exp %334 : vector<32x32xf32>
    %cst_111 = arith.constant dense<0.000000e+00> : vector<32xf32>
    %336 = vector.multi_reduction <add>, %335, %cst_111 [1] : vector<32x32xf32> to vector<32xf32>
    %337 = vector.shape_cast %336 : vector<32xf32> to vector<32x1xf32>
    %338 = tpu.reciprocal %337 {approx = true} : vector<32x1xf32> -> vector<32x1xf32>
    %339 = vector.broadcast %338 : vector<32x1xf32> to vector<32x32xf32>
    %340 = arith.mulf %335, %339 : vector<32x32xf32>
    %341 = vector.extract_strided_slice %289 {offsets = [0, 16], sizes = [32, 8], strides = [1, 1]} : vector<32x32xf32> to vector<32x8xf32>
    %cst_112 = arith.constant dense<0.000000e+00> : vector<32x8xf32>
    %342 = tpu.matmul %340, %341, %cst_112 {dimension_numbers = #tpu.dot_dimension_numbers<[1], [0], [0], [1], [0, 0, 1, 1], [], []>} : vector<32x32xf32>, vector<32x8xf32>, vector<32x8xf32> -> vector<32x8xf32>
    %c376 = arith.constant 376 : index
    %c0_113 = arith.constant 0 : index
    %343 = vector.load %arg1[%c376, %c0_113] : memref<520x32xf32, #tpu.memory_space<vmem>>, vector<8x32xf32>
    %cst_114 = arith.constant dense<0.000000e+00> : vector<32x32xf32>
    %344 = tpu.matmul %342, %343, %cst_114 {dimension_numbers = #tpu.dot_dimension_numbers<[1], [0], [0], [1], [0, 0, 1, 1], [], []>} : vector<32x8xf32>, vector<8x32xf32>, vector<32x32xf32> -> vector<32x32xf32>
    %345 = arith.addf %326, %344 : vector<32x32xf32>
    %346 = vector.extract_strided_slice %279 {offsets = [0, 24], sizes = [32, 8], strides = [1, 1]} : vector<32x32xf32> to vector<32x8xf32>
    %347 = vector.extract_strided_slice %284 {offsets = [0, 24], sizes = [32, 8], strides = [1, 1]} : vector<32x32xf32> to vector<32x8xf32>
    %cst_115 = arith.constant dense<0.000000e+00> : vector<32x32xf32>
    %348 = tpu.matmul %346, %347, %cst_115 {dimension_numbers = #tpu.dot_dimension_numbers<[1], [1], [0], [0], [0, 0, 1, 0], [], []>} : vector<32x8xf32>, vector<32x8xf32>, vector<32x32xf32> -> vector<32x32xf32>
    %349 = arith.addf %348, %75 : vector<32x32xf32>
    %cst_116 = arith.constant dense<0xFF800000> : vector<32xf32>
    %350 = vector.multi_reduction <maximumf>, %349, %cst_116 [1] : vector<32x32xf32> to vector<32xf32>
    %351 = vector.shape_cast %350 : vector<32xf32> to vector<32x1xf32>
    %352 = vector.broadcast %351 : vector<32x1xf32> to vector<32x32xf32>
    %353 = arith.subf %349, %352 : vector<32x32xf32>
    %354 = math.exp %353 : vector<32x32xf32>
    %cst_117 = arith.constant dense<0.000000e+00> : vector<32xf32>
    %355 = vector.multi_reduction <add>, %354, %cst_117 [1] : vector<32x32xf32> to vector<32xf32>
    %356 = vector.shape_cast %355 : vector<32xf32> to vector<32x1xf32>
    %357 = tpu.reciprocal %356 {approx = true} : vector<32x1xf32> -> vector<32x1xf32>
    %358 = vector.broadcast %357 : vector<32x1xf32> to vector<32x32xf32>
    %359 = arith.mulf %354, %358 : vector<32x32xf32>
    %360 = vector.extract_strided_slice %289 {offsets = [0, 24], sizes = [32, 8], strides = [1, 1]} : vector<32x32xf32> to vector<32x8xf32>
    %cst_118 = arith.constant dense<0.000000e+00> : vector<32x8xf32>
    %361 = tpu.matmul %359, %360, %cst_118 {dimension_numbers = #tpu.dot_dimension_numbers<[1], [0], [0], [1], [0, 0, 1, 1], [], []>} : vector<32x32xf32>, vector<32x8xf32>, vector<32x8xf32> -> vector<32x8xf32>
    %c384 = arith.constant 384 : index
    %c0_119 = arith.constant 0 : index
    %362 = vector.load %arg1[%c384, %c0_119] : memref<520x32xf32, #tpu.memory_space<vmem>>, vector<8x32xf32>
    %cst_120 = arith.constant dense<0.000000e+00> : vector<32x32xf32>
    %363 = tpu.matmul %361, %362, %cst_120 {dimension_numbers = #tpu.dot_dimension_numbers<[1], [0], [0], [1], [0, 0, 1, 1], [], []>} : vector<32x8xf32>, vector<8x32xf32>, vector<32x32xf32> -> vector<32x32xf32>
    %364 = arith.addf %345, %363 : vector<32x32xf32>
    %365 = vector.shape_cast %262 : vector<32xf32> to vector<1x32xf32>
    %366 = vector.broadcast %365 : vector<1x32xf32> to vector<32x32xf32>
    %367 = arith.addf %364, %366 : vector<32x32xf32>
    %368 = arith.addf %254, %367 : vector<32x32xf32>
    %cst_121 = arith.constant dense<0.000000e+00> : vector<32xf32>
    %369 = vector.multi_reduction <add>, %368, %cst_121 [1] : vector<32x32xf32> to vector<32xf32>
    %370 = vector.shape_cast %369 : vector<32xf32> to vector<32x1xf32>
    %cst_122 = arith.constant 3.200000e+01 : f32
    %371 = vector.broadcast %cst_122 : f32 to vector<32x1xf32>
    %372 = arith.divf %370, %371 : vector<32x1xf32>
    %373 = vector.broadcast %372 : vector<32x1xf32> to vector<32x32xf32>
    %374 = arith.subf %368, %373 : vector<32x32xf32>
    %375 = arith.mulf %374, %374 : vector<32x32xf32>
    %cst_123 = arith.constant dense<0.000000e+00> : vector<32xf32>
    %376 = vector.multi_reduction <add>, %375, %cst_123 [1] : vector<32x32xf32> to vector<32xf32>
    %377 = vector.shape_cast %376 : vector<32xf32> to vector<32x1xf32>
    %cst_124 = arith.constant 3.200000e+01 : f32
    %378 = vector.broadcast %cst_124 : f32 to vector<32x1xf32>
    %379 = arith.divf %377, %378 : vector<32x1xf32>
    %380 = vector.broadcast %372 : vector<32x1xf32> to vector<32x32xf32>
    %381 = arith.subf %368, %380 : vector<32x32xf32>
    %cst_125 = arith.constant 9.99999974E-6 : f32
    %382 = vector.broadcast %cst_125 : f32 to vector<32x1xf32>
    %383 = arith.addf %379, %382 : vector<32x1xf32>
    %384 = math.rsqrt %383 : vector<32x1xf32>
    %385 = vector.broadcast %384 : vector<32x1xf32> to vector<32x32xf32>
    %386 = arith.mulf %381, %385 : vector<32x32xf32>
    %387 = vector.shape_cast %266 : vector<32xf32> to vector<1x32xf32>
    %388 = vector.broadcast %387 : vector<1x32xf32> to vector<32x32xf32>
    %389 = arith.mulf %386, %388 : vector<32x32xf32>
    %390 = vector.shape_cast %268 : vector<32xf32> to vector<1x32xf32>
    %391 = vector.broadcast %390 : vector<1x32xf32> to vector<32x32xf32>
    %392 = arith.addf %389, %391 : vector<32x32xf32>
    %c40 = arith.constant 40 : index
    %c0_126 = arith.constant 0 : index
    %393 = vector.load %arg2[%c40, %c0_126] : memref<80x64xf32, #tpu.memory_space<vmem>>, vector<32x64xf32>
    %cst_127 = arith.constant dense<0.000000e+00> : vector<32x64xf32>
    %394 = tpu.matmul %392, %393, %cst_127 {dimension_numbers = #tpu.dot_dimension_numbers<[1], [0], [0], [1], [0, 0, 1, 1], [], []>} : vector<32x32xf32>, vector<32x64xf32>, vector<32x64xf32> -> vector<32x64xf32>
    %c72_128 = arith.constant 72 : index
    %c0_129 = arith.constant 0 : index
    %395 = vector.load %arg2[%c72_128, %c0_129] : memref<80x64xf32, #tpu.memory_space<vmem>>, vector<1x64xf32>
    %396 = vector.shape_cast %395 : vector<1x64xf32> to vector<64xf32>
    %397 = vector.shape_cast %396 : vector<64xf32> to vector<1x64xf32>
    %398 = vector.broadcast %397 : vector<1x64xf32> to vector<32x64xf32>
    %399 = arith.addf %394, %398 : vector<32x64xf32>
    %cst_130 = arith.constant 0.000000e+00 : f32
    %400 = vector.broadcast %cst_130 : f32 to vector<32x64xf32>
    %401 = arith.maximumf %399, %400 : vector<32x64xf32>
    %c392 = arith.constant 392 : index
    %c0_131 = arith.constant 0 : index
    %402 = vector.load %arg1[%c392, %c0_131] : memref<520x32xf32, #tpu.memory_space<vmem>>, vector<64x32xf32>
    %cst_132 = arith.constant dense<0.000000e+00> : vector<32x32xf32>
    %403 = tpu.matmul %401, %402, %cst_132 {dimension_numbers = #tpu.dot_dimension_numbers<[1], [0], [0], [1], [0, 0, 1, 1], [], []>} : vector<32x64xf32>, vector<64x32xf32>, vector<32x32xf32> -> vector<32x32xf32>
    %404 = vector.shape_cast %264 : vector<32xf32> to vector<1x32xf32>
    %405 = vector.broadcast %404 : vector<1x32xf32> to vector<32x32xf32>
    %406 = arith.addf %403, %405 : vector<32x32xf32>
    %407 = arith.addf %392, %406 : vector<32x32xf32>
    %cst_133 = arith.constant dense<0.000000e+00> : vector<32xf32>
    %408 = vector.multi_reduction <add>, %407, %cst_133 [1] : vector<32x32xf32> to vector<32xf32>
    %409 = vector.shape_cast %408 : vector<32xf32> to vector<32x1xf32>
    %cst_134 = arith.constant 3.200000e+01 : f32
    %410 = vector.broadcast %cst_134 : f32 to vector<32x1xf32>
    %411 = arith.divf %409, %410 : vector<32x1xf32>
    %412 = vector.broadcast %411 : vector<32x1xf32> to vector<32x32xf32>
    %413 = arith.subf %407, %412 : vector<32x32xf32>
    %414 = arith.mulf %413, %413 : vector<32x32xf32>
    %cst_135 = arith.constant dense<0.000000e+00> : vector<32xf32>
    %415 = vector.multi_reduction <add>, %414, %cst_135 [1] : vector<32x32xf32> to vector<32xf32>
    %416 = vector.shape_cast %415 : vector<32xf32> to vector<32x1xf32>
    %cst_136 = arith.constant 3.200000e+01 : f32
    %417 = vector.broadcast %cst_136 : f32 to vector<32x1xf32>
    %418 = arith.divf %416, %417 : vector<32x1xf32>
    %419 = vector.broadcast %411 : vector<32x1xf32> to vector<32x32xf32>
    %420 = arith.subf %407, %419 : vector<32x32xf32>
    %cst_137 = arith.constant 9.99999974E-6 : f32
    %421 = vector.broadcast %cst_137 : f32 to vector<32x1xf32>
    %422 = arith.addf %418, %421 : vector<32x1xf32>
    %423 = math.rsqrt %422 : vector<32x1xf32>
    %424 = vector.broadcast %423 : vector<32x1xf32> to vector<32x32xf32>
    %425 = arith.mulf %420, %424 : vector<32x32xf32>
    %426 = vector.shape_cast %270 : vector<32xf32> to vector<1x32xf32>
    %427 = vector.broadcast %426 : vector<1x32xf32> to vector<32x32xf32>
    %428 = arith.mulf %425, %427 : vector<32x32xf32>
    %429 = vector.shape_cast %272 : vector<32xf32> to vector<1x32xf32>
    %430 = vector.broadcast %429 : vector<1x32xf32> to vector<32x32xf32>
    %431 = arith.addf %428, %430 : vector<32x32xf32>
    %432 = vector.shape_cast %431 : vector<32x32xf32> to vector<4x8x32xf32>
    %cst_138 = arith.constant dense<0.000000e+00> : vector<4x32xf32>
    %433 = vector.multi_reduction <add>, %432, %cst_138 [1] : vector<4x8x32xf32> to vector<4x32xf32>
    %cst_139 = arith.constant 8.000000e+00 : f32
    %434 = vector.broadcast %cst_139 : f32 to vector<4x32xf32>
    %435 = arith.divf %433, %434 : vector<4x32xf32>
    %c456 = arith.constant 456 : index
    %c0_140 = arith.constant 0 : index
    %436 = vector.load %arg1[%c456, %c0_140] : memref<520x32xf32, #tpu.memory_space<vmem>>, vector<32x32xf32>
    %cst_141 = arith.constant dense<0.000000e+00> : vector<4x32xf32>
    %437 = tpu.matmul %435, %436, %cst_141 {dimension_numbers = #tpu.dot_dimension_numbers<[1], [0], [0], [1], [0, 0, 1, 1], [], []>} : vector<4x32xf32>, vector<32x32xf32>, vector<4x32xf32> -> vector<4x32xf32>
    %c51 = arith.constant 51 : index
    %c0_142 = arith.constant 0 : index
    %438 = vector.load %arg1[%c51, %c0_142] : memref<520x32xf32, #tpu.memory_space<vmem>>, vector<1x32xf32>
    %439 = vector.shape_cast %438 : vector<1x32xf32> to vector<32xf32>
    %440 = vector.shape_cast %439 : vector<32xf32> to vector<1x32xf32>
    %441 = vector.broadcast %440 : vector<1x32xf32> to vector<4x32xf32>
    %442 = arith.addf %437, %441 : vector<4x32xf32>
    %cst_143 = arith.constant 0.000000e+00 : f32
    %443 = vector.broadcast %cst_143 : f32 to vector<4x32xf32>
    %444 = arith.maximumf %442, %443 : vector<4x32xf32>
    %c488 = arith.constant 488 : index
    %c0_144 = arith.constant 0 : index
    %445 = vector.load %arg1[%c488, %c0_144] : memref<520x32xf32, #tpu.memory_space<vmem>>, vector<32x32xf32>
    %cst_145 = arith.constant dense<0.000000e+00> : vector<4x32xf32>
    %446 = tpu.matmul %444, %445, %cst_145 {dimension_numbers = #tpu.dot_dimension_numbers<[1], [0], [0], [1], [0, 0, 1, 1], [], []>} : vector<4x32xf32>, vector<32x32xf32>, vector<4x32xf32> -> vector<4x32xf32>
    %c52 = arith.constant 52 : index
    %c0_146 = arith.constant 0 : index
    %447 = vector.load %arg1[%c52, %c0_146] : memref<520x32xf32, #tpu.memory_space<vmem>>, vector<1x32xf32>
    %448 = vector.shape_cast %447 : vector<1x32xf32> to vector<32xf32>
    %449 = vector.shape_cast %448 : vector<32xf32> to vector<1x32xf32>
    %450 = vector.broadcast %449 : vector<1x32xf32> to vector<4x32xf32>
    %451 = arith.addf %446, %450 : vector<4x32xf32>
    %452 = vector.extract_strided_slice %451 {offsets = [0, 0], sizes = [4, 2], strides = [1, 1]} : vector<4x32xf32> to vector<4x2xf32>
    %c0_147 = arith.constant 0 : index
    %c0_148 = arith.constant 0 : index
    %453 = vector.load %arg3[%c0_147, %c0_148] : memref<4x2xf32, #tpu.memory_space<vmem>>, vector<4x2xf32>
    tpu.vector_store %arg3[%c0_147, %c0_148], %452 {strides = array<i32>} : memref<4x2xf32, #tpu.memory_space<vmem>>, vector<4x2xf32>,
    return
  }
}

</mosaic_0001>

<llo_original>
// kernel: nicu_model.1
$region0: #{nicu_model.1}
  #allocation0 [shape = 'u32[]', space=smem, size = 0x4, offset = 0x4, fixed_abs, tag = 'smem constant byte address 0x4 - core index']
  #allocation1 [shape = 'u32[144,128]{1,0:T(1,128)}', space=vmem, size = 0x12000, scoped, tag = 'internal scratch']
  %s0 = inlined_call_operand.vmem [shape: f32[32,16], index: 0, kind: input, shape index: {}]
  %s1 = inlined_call_operand.vmem [shape: f32[520,32], index: 1, kind: input, shape index: {}]
  %s2 = inlined_call_operand.vmem [shape: f32[80,64], index: 2, kind: input, shape index: {}]
  %s3 = inlined_call_operand.vmem [shape: f32[4,2], index: 3, kind: output, shape index: {}]
  %s4 = sld [smem:[#allocation0]]
  $region22: #{nicu_model.1} parent=0
    _
  %s6 = ssub.s32 1, %s4
  %s7 = scalar_select 0, %s6, %s4
  // Predicated region
  $region2: #{nicu_model.1} parent=0 // pred_check
    _
  $region3: #{nicu_model.1} parent=0 // pred_check_branch
    %9 = sbr.rel (0) target = $region5
  $region4: #{nicu_model.1} parent=0 // pred_region
    _
  $region5: #{nicu_model.1} parent=0 // pred_fallthru
    _
  // Predicated region
  $region6: #{nicu_model.1} parent=0 // pred_check
    _
  $region7: #{nicu_model.1} parent=0 // pred_check_branch
    %11 = sbr.rel (0) target = $region9
  $region8: #{nicu_model.1} parent=0 // pred_region
    _
  $region9: #{nicu_model.1} parent=0 // pred_fallthru
    _
  // Predicated region
  $region10: #{nicu_model.1} parent=0 // pred_check
    _
  $region11: #{nicu_model.1} parent=0 // pred_check_branch
    %13 = sbr.rel (0) target = $region13
  $region12: #{nicu_model.1} parent=0 // pred_region
    _
  $region13: #{nicu_model.1} parent=0 // pred_fallthru
    _
  %v14 = vld [vmem:[%s0] sm:$0xff]
  %v15 = vld [vmem:[%s0 + $0x8] sm:$0xff]
  %v16 = vld [vmem:[%s0 + $0x10] sm:$0xff]
  %v17 = vld [vmem:[%s0 + $0x18] sm:$0xff]
  %v18 = vld [vmem:[%s1 + $0x20] sm:$0xff]
  %v19 = vld [vmem:[%s1 + $0x28] sm:$0xff]
  %v20 = vld [vmem:[%s1 + $0x30] sm:$0x1]
  %v21 = vlaneseq
  %v22 = vshrl.u32 %v21, 7
  %v23 = vsub.s32 0, %v22
  %v24 = vrot.slane %v20, %v23
  %vm25 = vcmask 130048
  %v27 = vsel %vm25, %v14, 0
  %v30 = vsel %vm25, %v15, 0
  %v33 = vsel %vm25, %v16, 0
  %v36 = vsel %vm25, %v17, 0
  %38 = vmatprep.subr.mxu0 0.0
  %39 = vmatpush1.msra.mxu0 %v18
  %40 = vmatprep.subr.mxu0 0.0
  %41 = vmatpush1.msra.mxu0 %v19
  %42 = vmatprep.subr.mxu0 0.0
  %43 = vmatpush1.msra.mxu0 0.0
  %44 = vmatprep.subr.mxu0 0.0
  %45 = vmatpush1.msra.mxu0 0.0
  %46 = vmatprep.subr.mxu0 0.0
  %47 = vmatpush1.msra.mxu0 0.0
  %48 = vmatprep.subr.mxu0 0.0
  %49 = vmatpush1.msra.mxu0 0.0
  %50 = vmatprep.subr.mxu0 0.0
  %51 = vmatpush1.msra.mxu0 0.0
  %52 = vmatprep.subr.mxu0 0.0
  %53 = vmatpush1.msra.mxu0 0.0
  %54 = vmatprep.subr.mxu0 0.0
  %55 = vmatpush1.msra.mxu0 0.0
  %56 = vmatprep.subr.mxu0 0.0
  %57 = vmatpush1.msra.mxu0 0.0
  %58 = vmatprep.subr.mxu0 0.0
  %59 = vmatpush1.msra.mxu0 0.0
  %60 = vmatprep.subr.mxu0 0.0
  %61 = vmatpush1.msra.mxu0 0.0
  %62 = vmatprep.subr.mxu0 0.0
  %63 = vmatpush1.msra.mxu0 0.0
  %64 = vmatprep.subr.mxu0 0.0
  %65 = vmatpush1.msra.mxu0 0.0
  %66 = vmatprep.subr.mxu0 0.0
  %67 = vmatpush1.msra.mxu0 0.0
  %68 = vmatprep.subr.mxu0 0.0
  %69 = vmatpush1.msra.mxu0 0.0
  %70 = vmatprep.subr.mxu0 0.0
  %71 = vmatpush1.msra.mxu0 0.0
  %72 = vmatprep.subr.mxu0 0.0
  %73 = vmatpush1.msra.mxu0 0.0
  %74 = vmatprep.subr.mxu0 0.0
  %75 = vmatpush1.msra.mxu0 0.0
  %76 = vmatprep.subr.mxu0 0.0
  %77 = vmatpush1.msra.mxu0 0.0
  %78 = vmatprep.subr.mxu0 0.0
  %79 = vmatpush1.msra.mxu0 0.0
  %80 = vmatprep.subr.mxu0 0.0
  %81 = vmatpush1.msra.mxu0 0.0
  %82 = vmatprep.subr.mxu0 0.0
  %83 = vmatpush1.msra.mxu0 0.0
  %84 = vmatprep.subr.mxu0 0.0
  %85 = vmatpush1.msra.mxu0 0.0
  %86 = vmatprep.subr.mxu0 0.0
  %87 = vmatpush1.msra.mxu0 0.0
  %88 = vmatprep.subr.mxu0 0.0
  %89 = vmatpush1.msra.mxu0 0.0
  %90 = vmatprep.subr.mxu0 0.0
  %91 = vmatpush1.msra.mxu0 0.0
  %92 = vmatprep.subr.mxu0 0.0
  %93 = vmatpush1.msra.mxu0 0.0
  %94 = vmatprep.subr.mxu0 0.0
  %95 = vmatpush1.msra.mxu0 0.0
  %96 = vmatprep.subr.mxu0 0.0
  %97 = vmatpush1.msra.mxu0 0.0
  %98 = vmatprep.subr.mxu0 0.0
  %99 = vmatpush1.msra.mxu0 0.0
  %100 = vmatprep.subr.mxu0 0.0
  %101 = vmatpush1.msra.mxu0 0.0
  %102 = vmatprep.mubr.f32.mxu0 0.0
  %103 = vmatmul.mubr.f32.gmra.mrb[0].mxu0 %v27
  %v104 = vpop.f32.mrb[0].mxu0
  %v105 = vadd.f32 %v24, %v104
  %v106 = vpop.f32.mrb[0].mxu0
  %107 = vmatprep.mubr.f32.mxu0 0.0
  %108 = vmatmul.mubr.f32.gmra.mrb[0].mxu0 %v30
  %v109 = vpop.f32.mrb[0].mxu0
  %v110 = vadd.f32 %v24, %v109
  %v111 = vpop.f32.mrb[0].mxu0
  %112 = vmatprep.mubr.f32.mxu0 0.0
  %113 = vmatmul.mubr.f32.gmra.mrb[0].mxu0 %v33
  %v114 = vpop.f32.mrb[0].mxu0
  %v115 = vadd.f32 %v24, %v114
  %v116 = vpop.f32.mrb[0].mxu0
  %117 = vmatprep.mubr.f32.mxu0 0.0
  %118 = vmatmul.mubr.f32.gmra.mrb[0].mxu0 %v36
  %v119 = vpop.f32.mrb[0].mxu0
  %v120 = vadd.f32 %v24, %v119
  %v121 = vpop.f32.mrb[0].mxu0
  %122 = vdwg.mxu0
  %v123 = vld [vmem:[%s1] sm:$0xff]
  %v124 = vld [vmem:[%s1 + $0x8] sm:$0xff]
  %v125 = vld [vmem:[%s1 + $0x10] sm:$0xff]
  %v126 = vld [vmem:[%s1 + $0x18] sm:$0xff]
  %v127 = vadd.f32 %v105, %v123
  %v128 = vadd.f32 %v110, %v124
  %v129 = vadd.f32 %v115, %v125
  %v130 = vadd.f32 %v120, %v126
  %v131 = vld [vmem:[%s1 + $0x31] sm:$0x1]
  %v132 = vld [vmem:[%s1 + $0x32] sm:$0x1]
  %vm133 = vcmask 261120
  %v134 = vsel %vm133, %v127, 0.0
  %135 = vadd.xlane.f32.xlu0 %v134
  %v136 = vpop.xlane.xlu0 %135
  %v137 = vsel %vm133, %v128, 0.0
  %138 = vadd.xlane.f32.xlu0 %v137
  %v139 = vpop.xlane.xlu0 %138
  %v140 = vsel %vm133, %v129, 0.0
  %141 = vadd.xlane.f32.xlu0 %v140
  %v142 = vpop.xlane.xlu0 %141
  %v143 = vsel %vm133, %v130, 0.0
  %144 = vadd.xlane.f32.xlu0 %v143
  %v145 = vpop.xlane.xlu0 %144
  %v146 = vrcp.pop 32.0
  %v147 = vmul.f32 %v136, %v146
  %v148 = vmul.f32 %v139, %v146
  %v149 = vmul.f32 %v142, %v146
  %v150 = vmul.f32 %v145, %v146
  %v151 = vsub.f32 %v127, %v147
  %v152 = vsub.f32 %v128, %v148
  %v153 = vsub.f32 %v129, %v149
  %v154 = vsub.f32 %v130, %v150
  %v155 = vmul.f32 %v151, %v151
  %v156 = vmul.f32 %v152, %v152
  %v157 = vmul.f32 %v153, %v153
  %v158 = vmul.f32 %v154, %v154
  %v159 = vsel %vm133, %v155, 0.0
  %160 = vadd.xlane.f32.xlu0 %v159
  %v161 = vpop.xlane.xlu0 %160
  %v162 = vsel %vm133, %v156, 0.0
  %163 = vadd.xlane.f32.xlu0 %v162
  %v164 = vpop.xlane.xlu0 %163
  %v165 = vsel %vm133, %v157, 0.0
  %166 = vadd.xlane.f32.xlu0 %v165
  %v167 = vpop.xlane.xlu0 %166
  %v168 = vsel %vm133, %v158, 0.0
  %169 = vadd.xlane.f32.xlu0 %v168
  %v170 = vpop.xlane.xlu0 %169
  %v171 = vmul.f32 %v161, %v146
  %v172 = vmul.f32 %v164, %v146
  %v173 = vmul.f32 %v167, %v146
  %v174 = vmul.f32 %v170, %v146
  %v175 = vadd.f32 %v171, 1e-05
  %v176 = vadd.f32 %v172, 1e-05
  %v177 = vadd.f32 %v173, 1e-05
  %v178 = vadd.f32 %v174, 1e-05
  %v179 = vrsqrt.pop %v175
  %v180 = vrsqrt.pop %v176
  %v181 = vrsqrt.pop %v177
  %v182 = vrsqrt.pop %v178
  %v183 = vmul.f32 %v151, %v179
  %v184 = vmul.f32 %v152, %v180
  %v185 = vmul.f32 %v153, %v181
  %v186 = vmul.f32 %v154, %v182
  %v187 = vlaneseq
  %v188 = vshrl.u32 %v187, 7
  %v189 = vsub.s32 0, %v188
  %v190 = vrot.slane %v131, %v189
  %v191 = vmul.f32 %v183, %v190
  %v192 = vmul.f32 %v184, %v190
  %v193 = vmul.f32 %v185, %v190
  %v194 = vmul.f32 %v186, %v190
  %v195 = vlaneseq
  %v196 = vshrl.u32 %v195, 7
  %v197 = vsub.s32 0, %v196
  %v198 = vrot.slane %v132, %v197
  %v199 = vadd.f32 %v191, %v198
  %v200 = vadd.f32 %v192, %v198
  %v201 = vadd.f32 %v193, %v198
  %v202 = vadd.f32 %v194, %v198
  %v203 = vlaneseq
  %v204 = vshrl.u32 %v203, 7
  %v205 = vadd.s32 %v204, 8
  %v206 = vadd.s32 %v204, 16
  %v207 = vadd.s32 %v204, 24
  %vm208 = vcmp.lt.s32.totalorder %v204, 0
  %v209 = vsub.s32 0, %v204
  %v210 = vsel %vm208, %v209, %v204
  %v211 = vshrl.u32 %v210, 3
  %v212 = vand.u32 %v210, 7
  %v213 = vsub.s32 0, %v212
  %v214 = vsel %vm208, %v213, %v212
  %vm215 = vcmp.lt.s32.totalorder %v205, 0
  %v216 = vsub.s32 0, %v205
  %v217 = vsel %vm215, %v216, %v205
  %v218 = vshrl.u32 %v217, 3
  %v219 = vand.u32 %v217, 7
  %v220 = vsub.s32 0, %v219
  %v221 = vsel %vm215, %v220, %v219
  %vm222 = vcmp.lt.s32.totalorder %v206, 0
  %v223 = vsub.s32 0, %v206
  %v224 = vsel %vm222, %v223, %v206
  %v225 = vshrl.u32 %v224, 3
  %v226 = vand.u32 %v224, 7
  %v227 = vsub.s32 0, %v226
  %v228 = vsel %vm222, %v227, %v226
  %vm229 = vcmp.lt.s32.totalorder %v207, 0
  %v230 = vsub.s32 0, %v207
  %v231 = vsel %vm229, %v230, %v207
  %v232 = vshrl.u32 %v231, 3
  %v233 = vand.u32 %v231, 7
  %v234 = vsub.s32 0, %v233
  %v235 = vsel %vm229, %v234, %v233
  %vm236 = vcmp.ne.s32.totalorder %v214, 0
  %vm237 = vcmp.ne.s32.totalorder %v221, 0
  %vm238 = vcmp.ne.s32.totalorder %v228, 0
  %vm239 = vcmp.ne.s32.totalorder %v235, 0
  %vm240 = vcmp.lt.s32.totalorder %v214, 0
  %vm241 = vcmp.lt.s32.totalorder %v221, 0
  %vm242 = vcmp.lt.s32.totalorder %v228, 0
  %vm243 = vcmp.lt.s32.totalorder %v235, 0
  %vm244 = vmand %vm240, %vm236
  %vm245 = vmand %vm241, %vm237
  %vm246 = vmand %vm242, %vm238
  %vm247 = vmand %vm243, %vm239
  %v248 = vadd.s32 %v214, 8
  %v249 = vadd.s32 %v221, 8
  %v250 = vadd.s32 %v228, 8
  %v251 = vadd.s32 %v235, 8
  %v252 = vsel %vm244, %v248, %v214
  %v253 = vsel %vm245, %v249, %v221
  %v254 = vsel %vm246, %v250, %v228
  %v255 = vsel %vm247, %v251, %v235
  %v256 = vlaneseq
  %v257 = vand.u32 %v256, 127
  %vm258 = vcmp.lt.s32.totalorder %v257, 0
  %v259 = vsub.s32 0, %v257
  %v260 = vsel %vm258, %v259, %v257
  %v261 = vshrl.u32 %v260, 3
  %v262 = vand.u32 %v260, 7
  %v263 = vsub.s32 0, %v262
  %v264 = vsel %vm258, %v263, %v262
  %vm265 = vcmp.ne.s32.totalorder %v264, 0
  %vm266 = vcmp.lt.s32.totalorder %v264, 0
  %vm267 = vmand %vm266, %vm265
  %v268 = vadd.s32 %v264, 8
  %v269 = vsel %vm267, %v268, %v264
  %vm270 = vcmp.eq.s32.totalorder %v252, %v269
  %vm271 = vcmp.eq.s32.totalorder %v253, %v269
  %vm272 = vcmp.eq.s32.totalorder %v254, %v269
  %vm273 = vcmp.eq.s32.totalorder %v255, %v269
  %v274 = vsel %vm270, 0.0, -1e+09
  %v275 = vsel %vm271, 0.0, -1e+09
  %v276 = vsel %vm272, 0.0, -1e+09
  %v277 = vsel %vm273, 0.0, -1e+09
  %v278 = vld [vmem:[%s1 + $0x35] sm:$0x1]
  %v279 = vld [vmem:[%s1 + $0x36] sm:$0x1]
  %v280 = vld [vmem:[%s1 + $0x37] sm:$0x1]
  %v281 = vld [vmem:[%s1 + $0x38] sm:$0x1]
  %v282 = vld [vmem:[%s1 + $0x39] sm:$0x1]
  %v283 = vld [vmem:[%s1 + $0x3a] sm:$0x1]
  %v284 = vld [vmem:[%s1 + $0x3b] sm:$0x1]
  %v285 = vld [vmem:[%s1 + $0x3c] sm:$0x1]
  %v286 = vld [vmem:[%s1 + $0x3d] sm:$0x1]
  %v287 = vld [vmem:[%s1 + $0x48] sm:$0xff]
  %v288 = vld [vmem:[%s1 + $0x50] sm:$0xff]
  %v289 = vld [vmem:[%s1 + $0x58] sm:$0xff]
  %v290 = vld [vmem:[%s1 + $0x60] sm:$0xff]
  %v291 = vlaneseq
  %v292 = vshrl.u32 %v291, 7
  %v293 = vsub.s32 0, %v292
  %v294 = vrot.slane %v278, %v293
  %v296 = vsel %vm133, %v199, 0
  %v299 = vsel %vm133, %v200, 0
  %v302 = vsel %vm133, %v201, 0
  %v305 = vsel %vm133, %v202, 0
  %307 = vmatprep.subr.mxu0 0.0
  %308 = vmatpush1.msra.mxu0 %v287
  %309 = vmatprep.subr.mxu0 0.0
  %310 = vmatpush1.msra.mxu0 %v288
  %311 = vmatprep.subr.mxu0 0.0
  %312 = vmatpush1.msra.mxu0 %v289
  %313 = vmatprep.subr.mxu0 0.0
  %314 = vmatpush1.msra.mxu0 %v290
  %315 = vmatprep.subr.mxu0 0.0
  %316 = vmatpush1.msra.mxu0 0.0
  %317 = vmatprep.subr.mxu0 0.0
  %318 = vmatpush1.msra.mxu0 0.0
  %319 = vmatprep.subr.mxu0 0.0
  %320 = vmatpush1.msra.mxu0 0.0
  %321 = vmatprep.subr.mxu0 0.0
  %322 = vmatpush1.msra.mxu0 0.0
  %323 = vmatprep.subr.mxu0 0.0
  %324 = vmatpush1.msra.mxu0 0.0
  %325 = vmatprep.subr.mxu0 0.0
  %326 = vmatpush1.msra.mxu0 0.0
  %327 = vmatprep.subr.mxu0 0.0
  %328 = vmatpush1.msra.mxu0 0.0
  %329 = vmatprep.subr.mxu0 0.0
  %330 = vmatpush1.msra.mxu0 0.0
  %331 = vmatprep.subr.mxu0 0.0
  %332 = vmatpush1.msra.mxu0 0.0
  %333 = vmatprep.subr.mxu0 0.0
  %334 = vmatpush1.msra.mxu0 0.0
  %335 = vmatprep.subr.mxu0 0.0
  %336 = vmatpush1.msra.mxu0 0.0
  %337 = vmatprep.subr.mxu0 0.0
  %338 = vmatpush1.msra.mxu0 0.0
  %339 = vmatprep.subr.mxu0 0.0
  %340 = vmatpush1.msra.mxu0 0.0
  %341 = vmatprep.subr.mxu0 0.0
  %342 = vmatpush1.msra.mxu0 0.0
  %343 = vmatprep.subr.mxu0 0.0
  %344 = vmatpush1.msra.mxu0 0.0
  %345 = vmatprep.subr.mxu0 0.0
  %346 = vmatpush1.msra.mxu0 0.0
  %347 = vmatprep.subr.mxu0 0.0
  %348 = vmatpush1.msra.mxu0 0.0
  %349 = vmatprep.subr.mxu0 0.0
  %350 = vmatpush1.msra.mxu0 0.0
  %351 = vmatprep.subr.mxu0 0.0
  %352 = vmatpush1.msra.mxu0 0.0
  %353 = vmatprep.subr.mxu0 0.0
  %354 = vmatpush1.msra.mxu0 0.0
  %355 = vmatprep.subr.mxu0 0.0
  %356 = vmatpush1.msra.mxu0 0.0
  %357 = vmatprep.subr.mxu0 0.0
  %358 = vmatpush1.msra.mxu0 0.0
  %359 = vmatprep.subr.mxu0 0.0
  %360 = vmatpush1.msra.mxu0 0.0
  %361 = vmatprep.subr.mxu0 0.0
  %362 = vmatpush1.msra.mxu0 0.0
  %363 = vmatprep.subr.mxu0 0.0
  %364 = vmatpush1.msra.mxu0 0.0
  %365 = vmatprep.subr.mxu0 0.0
  %366 = vmatpush1.msra.mxu0 0.0
  %367 = vmatprep.subr.mxu0 0.0
  %368 = vmatpush1.msra.mxu0 0.0
  %369 = vmatprep.subr.mxu0 0.0
  %370 = vmatpush1.msra.mxu0 0.0
  %371 = vmatprep.mubr.f32.mxu0 0.0
  %372 = vmatmul.mubr.f32.gmra.mrb[0].mxu0 %v296
  %v373 = vpop.f32.mrb[0].mxu0
  %v374 = vadd.f32 %v294, %v373
  %v375 = vpop.f32.mrb[0].mxu0
  %376 = vmatprep.mubr.f32.mxu0 0.0
  %377 = vmatmul.mubr.f32.gmra.mrb[0].mxu0 %v299
  %v378 = vpop.f32.mrb[0].mxu0
  %v379 = vadd.f32 %v294, %v378
  %v380 = vpop.f32.mrb[0].mxu0
  %381 = vmatprep.mubr.f32.mxu0 0.0
  %382 = vmatmul.mubr.f32.gmra.mrb[0].mxu0 %v302
  %v383 = vpop.f32.mrb[0].mxu0
  %v384 = vadd.f32 %v294, %v383
  %v385 = vpop.f32.mrb[0].mxu0
  %386 = vmatprep.mubr.f32.mxu0 0.0
  %387 = vmatmul.mubr.f32.gmra.mrb[0].mxu0 %v305
  %v388 = vpop.f32.mrb[0].mxu0
  %v389 = vadd.f32 %v294, %v388
  %v390 = vpop.f32.mrb[0].mxu0
  %391 = vdwg.mxu0
  %v392 = vmul.f32 %v374, 0.35355338
  %v393 = vmul.f32 %v379, 0.35355338
  %v394 = vmul.f32 %v384, 0.35355338
  %v395 = vmul.f32 %v389, 0.35355338
  %v396 = vld [vmem:[%s1 + $0x68] sm:$0xff]
  %v397 = vld [vmem:[%s1 + $0x70] sm:$0xff]
  %v398 = vld [vmem:[%s1 + $0x78] sm:$0xff]
  %v399 = vld [vmem:[%s1 + $0x80] sm:$0xff]
  %v400 = vlaneseq
  %v401 = vshrl.u32 %v400, 7
  %v402 = vsub.s32 0, %v401
  %v403 = vrot.slane %v279, %v402
  %404 = vmatprep.subr.mxu0 0.0
  %405 = vmatpush1.msra.mxu0 %v396
  %406 = vmatprep.subr.mxu0 0.0
  %407 = vmatpush1.msra.mxu0 %v397
  %408 = vmatprep.subr.mxu0 0.0
  %409 = vmatpush1.msra.mxu0 %v398
  %410 = vmatprep.subr.mxu0 0.0
  %411 = vmatpush1.msra.mxu0 %v399
  %412 = vmatprep.subr.mxu0 0.0
  %413 = vmatpush1.msra.mxu0 0.0
  %414 = vmatprep.subr.mxu0 0.0
  %415 = vmatpush1.msra.mxu0 0.0
  %416 = vmatprep.subr.mxu0 0.0
  %417 = vmatpush1.msra.mxu0 0.0
  %418 = vmatprep.subr.mxu0 0.0
  %419 = vmatpush1.msra.mxu0 0.0
  %420 = vmatprep.subr.mxu0 0.0
  %421 = vmatpush1.msra.mxu0 0.0
  %422 = vmatprep.subr.mxu0 0.0
  %423 = vmatpush1.msra.mxu0 0.0
  %424 = vmatprep.subr.mxu0 0.0
  %425 = vmatpush1.msra.mxu0 0.0
  %426 = vmatprep.subr.mxu0 0.0
  %427 = vmatpush1.msra.mxu0 0.0
  %428 = vmatprep.subr.mxu0 0.0
  %429 = vmatpush1.msra.mxu0 0.0
  %430 = vmatprep.subr.mxu0 0.0
  %431 = vmatpush1.msra.mxu0 0.0
  %432 = vmatprep.subr.mxu0 0.0
  %433 = vmatpush1.msra.mxu0 0.0
  %434 = vmatprep.subr.mxu0 0.0
  %435 = vmatpush1.msra.mxu0 0.0
  %436 = vmatprep.subr.mxu0 0.0
  %437 = vmatpush1.msra.mxu0 0.0
  %438 = vmatprep.subr.mxu0 0.0
  %439 = vmatpush1.msra.mxu0 0.0
  %440 = vmatprep.subr.mxu0 0.0
  %441 = vmatpush1.msra.mxu0 0.0
  %442 = vmatprep.subr.mxu0 0.0
  %443 = vmatpush1.msra.mxu0 0.0
  %444 = vmatprep.subr.mxu0 0.0
  %445 = vmatpush1.msra.mxu0 0.0
  %446 = vmatprep.subr.mxu0 0.0
  %447 = vmatpush1.msra.mxu0 0.0
  %448 = vmatprep.subr.mxu0 0.0
  %449 = vmatpush1.msra.mxu0 0.0
  %450 = vmatprep.subr.mxu0 0.0
  %451 = vmatpush1.msra.mxu0 0.0
  %452 = vmatprep.subr.mxu0 0.0
  %453 = vmatpush1.msra.mxu0 0.0
  %454 = vmatprep.subr.mxu0 0.0
  %455 = vmatpush1.msra.mxu0 0.0
  %456 = vmatprep.subr.mxu0 0.0
  %457 = vmatpush1.msra.mxu0 0.0
  %458 = vmatprep.subr.mxu0 0.0
  %459 = vmatpush1.msra.mxu0 0.0
  %460 = vmatprep.subr.mxu0 0.0
  %461 = vmatpush1.msra.mxu0 0.0
  %462 = vmatprep.subr.mxu0 0.0
  %463 = vmatpush1.msra.mxu0 0.0
  %464 = vmatprep.subr.mxu0 0.0
  %465 = vmatpush1.msra.mxu0 0.0
  %466 = vmatprep.subr.mxu0 0.0
  %467 = vmatpush1.msra.mxu0 0.0
  %468 = vmatprep.mubr.f32.mxu0 0.0
  %469 = vmatmul.mubr.f32.gmra.mrb[0].mxu0 %v296
  %v470 = vpop.f32.mrb[0].mxu0
  %v471 = vadd.f32 %v403, %v470
  %v472 = vpop.f32.mrb[0].mxu0
  %473 = vmatprep.mubr.f32.mxu0 0.0
  %474 = vmatmul.mubr.f32.gmra.mrb[0].mxu0 %v299
  %v475 = vpop.f32.mrb[0].mxu0
  %v476 = vadd.f32 %v403, %v475
  %v477 = vpop.f32.mrb[0].mxu0
  %478 = vmatprep.mubr.f32.mxu0 0.0
  %479 = vmatmul.mubr.f32.gmra.mrb[0].mxu0 %v302
  %v480 = vpop.f32.mrb[0].mxu0
  %v481 = vadd.f32 %v403, %v480
  %v482 = vpop.f32.mrb[0].mxu0
  %483 = vmatprep.mubr.f32.mxu0 0.0
  %484 = vmatmul.mubr.f32.gmra.mrb[0].mxu0 %v305
  %v485 = vpop.f32.mrb[0].mxu0
  %v486 = vadd.f32 %v403, %v485
  %v487 = vpop.f32.mrb[0].mxu0
  %488 = vdwg.mxu0
  %v489 = vld [vmem:[%s1 + $0x88] sm:$0xff]
  %v490 = vld [vmem:[%s1 + $0x90] sm:$0xff]
  %v491 = vld [vmem:[%s1 + $0x98] sm:$0xff]
  %v492 = vld [vmem:[%s1 + $0xa0] sm:$0xff]
  %v493 = vlaneseq
  %v494 = vshrl.u32 %v493, 7
  %v495 = vsub.s32 0, %v494
  %v496 = vrot.slane %v280, %v495
  %497 = vmatprep.subr.mxu0 0.0
  %498 = vmatpush1.msra.mxu0 %v489
  %499 = vmatprep.subr.mxu0 0.0
  %500 = vmatpush1.msra.mxu0 %v490
  %501 = vmatprep.subr.mxu0 0.0
  %502 = vmatpush1.msra.mxu0 %v491
  %503 = vmatprep.subr.mxu0 0.0
  %504 = vmatpush1.msra.mxu0 %v492
  %505 = vmatprep.subr.mxu0 0.0
  %506 = vmatpush1.msra.mxu0 0.0
  %507 = vmatprep.subr.mxu0 0.0
  %508 = vmatpush1.msra.mxu0 0.0
  %509 = vmatprep.subr.mxu0 0.0
  %510 = vmatpush1.msra.mxu0 0.0
  %511 = vmatprep.subr.mxu0 0.0
  %512 = vmatpush1.msra.mxu0 0.0
  %513 = vmatprep.subr.mxu0 0.0
  %514 = vmatpush1.msra.mxu0 0.0
  %515 = vmatprep.subr.mxu0 0.0
  %516 = vmatpush1.msra.mxu0 0.0
  %517 = vmatprep.subr.mxu0 0.0
  %518 = vmatpush1.msra.mxu0 0.0
  %519 = vmatprep.subr.mxu0 0.0
  %520 = vmatpush1.msra.mxu0 0.0
  %521 = vmatprep.subr.mxu0 0.0
  %522 = vmatpush1.msra.mxu0 0.0
  %523 = vmatprep.subr.mxu0 0.0
  %524 = vmatpush1.msra.mxu0 0.0
  %525 = vmatprep.subr.mxu0 0.0
  %526 = vmatpush1.msra.mxu0 0.0
  %527 = vmatprep.subr.mxu0 0.0
  %528 = vmatpush1.msra.mxu0 0.0
  %529 = vmatprep.subr.mxu0 0.0
  %530 = vmatpush1.msra.mxu0 0.0
  %531 = vmatprep.subr.mxu0 0.0
  %532 = vmatpush1.msra.mxu0 0.0
  %533 = vmatprep.subr.mxu0 0.0
  %534 = vmatpush1.msra.mxu0 0.0
  %535 = vmatprep.subr.mxu0 0.0
  %536 = vmatpush1.msra.mxu0 0.0
  %537 = vmatprep.subr.mxu0 0.0
  %538 = vmatpush1.msra.mxu0 0.0
  %539 = vmatprep.subr.mxu0 0.0
  %540 = vmatpush1.msra.mxu0 0.0
  %541 = vmatprep.subr.mxu0 0.0
  %542 = vmatpush1.msra.mxu0 0.0
  %543 = vmatprep.subr.mxu0 0.0
  %544 = vmatpush1.msra.mxu0 0.0
  %545 = vmatprep.subr.mxu0 0.0
  %546 = vmatpush1.msra.mxu0 0.0
  %547 = vmatprep.subr.mxu0 0.0
  %548 = vmatpush1.msra.mxu0 0.0
  %549 = vmatprep.subr.mxu0 0.0
  %550 = vmatpush1.msra.mxu0 0.0
  %551 = vmatprep.subr.mxu0 0.0
  %552 = vmatpush1.msra.mxu0 0.0
  %553 = vmatprep.subr.mxu0 0.0
  %554 = vmatpush1.msra.mxu0 0.0
  %555 = vmatprep.subr.mxu0 0.0
  %556 = vmatpush1.msra.mxu0 0.0
  %557 = vmatprep.subr.mxu0 0.0
  %558 = vmatpush1.msra.mxu0 0.0
  %559 = vmatprep.subr.mxu0 0.0
  %560 = vmatpush1.msra.mxu0 0.0
  %561 = vmatprep.mubr.f32.mxu0 0.0
  %562 = vmatmul.mubr.f32.gmra.mrb[0].mxu0 %v296
  %v563 = vpop.f32.mrb[0].mxu0
  %v564 = vadd.f32 %v496, %v563
  %v565 = vpop.f32.mrb[0].mxu0
  %566 = vmatprep.mubr.f32.mxu0 0.0
  %567 = vmatmul.mubr.f32.gmra.mrb[0].mxu0 %v299
  %v568 = vpop.f32.mrb[0].mxu0
  %v569 = vadd.f32 %v496, %v568
  %v570 = vpop.f32.mrb[0].mxu0
  %571 = vmatprep.mubr.f32.mxu0 0.0
  %572 = vmatmul.mubr.f32.gmra.mrb[0].mxu0 %v302
  %v573 = vpop.f32.mrb[0].mxu0
  %v574 = vadd.f32 %v496, %v573
  %v575 = vpop.f32.mrb[0].mxu0
  %576 = vmatprep.mubr.f32.mxu0 0.0
  %577 = vmatmul.mubr.f32.gmra.mrb[0].mxu0 %v305
  %v578 = vpop.f32.mrb[0].mxu0
  %v579 = vadd.f32 %v496, %v578
  %v580 = vpop.f32.mrb[0].mxu0
  %581 = vdwg.mxu0
  %vm582 = vcmask 64512
  %v584 = vsel %vm582, %v392, 0
  %v587 = vsel %vm582, %v393, 0
  %v590 = vsel %vm582, %v394, 0
  %v593 = vsel %vm582, %v395, 0
  %v596 = vsel %vm582, %v471, 0
  %v599 = vsel %vm582, %v476, 0
  %v602 = vsel %vm582, %v481, 0
  %v605 = vsel %vm582, %v486, 0
  %607 = vmatprep.subr.mxu0 0.0
  %608 = vmatpush1.xpose.msra.mxu0 %v596
  %609 = vmatprep.subr.mxu0 0.0
  %610 = vmatpush1.xpose.msra.mxu0 %v599
  %611 = vmatprep.subr.mxu0 0.0
  %612 = vmatpush1.xpose.msra.mxu0 %v602
  %613 = vmatprep.subr.mxu0 0.0
  %614 = vmatpush1.xpose.msra.mxu0 %v605
  %615 = vmatprep.subr.mxu0 0.0
  %616 = vmatpush1.xpose.msra.mxu0 0.0
  %617 = vmatprep.subr.mxu0 0.0
  %618 = vmatpush1.xpose.msra.mxu0 0.0
  %619 = vmatprep.subr.mxu0 0.0
  %620 = vmatpush1.xpose.msra.mxu0 0.0
  %621 = vmatprep.subr.mxu0 0.0
  %622 = vmatpush1.xpose.msra.mxu0 0.0
  %623 = vmatprep.subr.mxu0 0.0
  %624 = vmatpush1.xpose.msra.mxu0 0.0
  %625 = vmatprep.subr.mxu0 0.0
  %626 = vmatpush1.xpose.msra.mxu0 0.0
  %627 = vmatprep.subr.mxu0 0.0
  %628 = vmatpush1.xpose.msra.mxu0 0.0
  %629 = vmatprep.subr.mxu0 0.0
  %630 = vmatpush1.xpose.msra.mxu0 0.0
  %631 = vmatprep.subr.mxu0 0.0
  %632 = vmatpush1.xpose.msra.mxu0 0.0
  %633 = vmatprep.subr.mxu0 0.0
  %634 = vmatpush1.xpose.msra.mxu0 0.0
  %635 = vmatprep.subr.mxu0 0.0
  %636 = vmatpush1.xpose.msra.mxu0 0.0
  %637 = vmatprep.subr.mxu0 0.0
  %638 = vmatpush1.xpose.msra.mxu0 0.0
  %639 = vmatprep.subr.mxu0 0.0
  %640 = vmatpush1.xpose.msra.mxu0 0.0
  %641 = vmatprep.subr.mxu0 0.0
  %642 = vmatpush1.xpose.msra.mxu0 0.0
  %643 = vmatprep.subr.mxu0 0.0
  %644 = vmatpush1.xpose.msra.mxu0 0.0
  %645 = vmatprep.subr.mxu0 0.0
  %646 = vmatpush1.xpose.msra.mxu0 0.0
  %647 = vmatprep.subr.mxu0 0.0
  %648 = vmatpush1.xpose.msra.mxu0 0.0
  %649 = vmatprep.subr.mxu0 0.0
  %650 = vmatpush1.xpose.msra.mxu0 0.0
  %651 = vmatprep.subr.mxu0 0.0
  %652 = vmatpush1.xpose.msra.mxu0 0.0
  %653 = vmatprep.subr.mxu0 0.0
  %654 = vmatpush1.xpose.msra.mxu0 0.0
  %655 = vmatprep.subr.mxu0 0.0
  %656 = vmatpush1.xpose.msra.mxu0 0.0
  %657 = vmatprep.subr.mxu0 0.0
  %658 = vmatpush1.xpose.msra.mxu0 0.0
  %659 = vmatprep.subr.mxu0 0.0
  %660 = vmatpush1.xpose.msra.mxu0 0.0
  %661 = vmatprep.subr.mxu0 0.0
  %662 = vmatpush1.xpose.msra.mxu0 0.0
  %663 = vmatprep.subr.mxu0 0.0
  %664 = vmatpush1.xpose.msra.mxu0 0.0
  %665 = vmatprep.subr.mxu0 0.0
  %666 = vmatpush1.xpose.msra.mxu0 0.0
  %667 = vmatprep.subr.mxu0 0.0
  %668 = vmatpush1.xpose.msra.mxu0 0.0
  %669 = vmatprep.subr.mxu0 0.0
  %670 = vmatpush1.xpose.msra.mxu0 0.0
  %671 = vmatprep.mubr.f32.mxu0 0.0
  %672 = vmatmul.mubr.f32.gmra.mrb[0].mxu0 %v584
  %v673 = vpop.f32.mrb[0].mxu0
  %v674 = vadd.f32 %v274, %v673
  %v675 = vpop.f32.mrb[0].mxu0
  %676 = vmatprep.mubr.f32.mxu0 0.0
  %677 = vmatmul.mubr.f32.gmra.mrb[0].mxu0 %v587
  %v678 = vpop.f32.mrb[0].mxu0
  %v679 = vadd.f32 %v275, %v678
  %v680 = vpop.f32.mrb[0].mxu0
  %681 = vmatprep.mubr.f32.mxu0 0.0
  %682 = vmatmul.mubr.f32.gmra.mrb[0].mxu0 %v590
  %v683 = vpop.f32.mrb[0].mxu0
  %v684 = vadd.f32 %v276, %v683
  %v685 = vpop.f32.mrb[0].mxu0
  %686 = vmatprep.mubr.f32.mxu0 0.0
  %687 = vmatmul.mubr.f32.gmra.mrb[0].mxu0 %v593
  %v688 = vpop.f32.mrb[0].mxu0
  %v689 = vadd.f32 %v277, %v688
  %v690 = vpop.f32.mrb[0].mxu0
  %691 = vdwg.mxu0
  %v692 = vsel %vm133, %v674, -inf
  %693 = vmax.xlane.f32.xlu0 %v692
  %v694 = vpop.xlane.xlu0 %693
  %v695 = vsel %vm133, %v679, -inf
  %696 = vmax.xlane.f32.xlu0 %v695
  %v697 = vpop.xlane.xlu0 %696
  %v698 = vsel %vm133, %v684, -inf
  %699 = vmax.xlane.f32.xlu0 %v698
  %v700 = vpop.xlane.xlu0 %699
  %v701 = vsel %vm133, %v689, -inf
  %702 = vmax.xlane.f32.xlu0 %v701
  %v703 = vpop.xlane.xlu0 %702
  %v704 = vsub.f32 %v674, %v694
  %v705 = vsub.f32 %v679, %v697
  %v706 = vsub.f32 %v684, %v700
  %v707 = vsub.f32 %v689, %v703
  %v708 = vmul.f32 %v704, 1.442695
  %v709 = vpow.pop %v708
  %v710 = vmul.f32 %v705, 1.442695
  %v711 = vpow.pop %v710
  %v712 = vmul.f32 %v706, 1.442695
  %v713 = vpow.pop %v712
  %v714 = vmul.f32 %v707, 1.442695
  %v715 = vpow.pop %v714
  %v716 = vsel %vm133, %v709, 0.0
  %717 = vadd.xlane.f32.xlu0 %v716
  %v718 = vpop.xlane.xlu0 %717
  %v719 = vsel %vm133, %v711, 0.0
  %720 = vadd.xlane.f32.xlu0 %v719
  %v721 = vpop.xlane.xlu0 %720
  %v722 = vsel %vm133, %v713, 0.0
  %723 = vadd.xlane.f32.xlu0 %v722
  %v724 = vpop.xlane.xlu0 %723
  %v725 = vsel %vm133, %v715, 0.0
  %726 = vadd.xlane.f32.xlu0 %v725
  %v727 = vpop.xlane.xlu0 %726
  %v728 = vrcp.pop %v718
  %v729 = vrcp.pop %v721
  %v730 = vrcp.pop %v724
  %v731 = vrcp.pop %v727
  %v732 = vmul.f32 %v709, %v728
  %v733 = vmul.f32 %v711, %v729
  %v734 = vmul.f32 %v713, %v730
  %v735 = vmul.f32 %v715, %v731
  %v737 = vsel %vm133, %v732, 0
  %v740 = vsel %vm133, %v733, 0
  %v743 = vsel %vm133, %v734, 0
  %v746 = vsel %vm133, %v735, 0
  %748 = vmatprep.subr.mxu0 0.0
  %749 = vmatpush1.msra.mxu0 %v564
  %750 = vmatprep.subr.mxu0 0.0
  %751 = vmatpush1.msra.mxu0 %v569
  %752 = vmatprep.subr.mxu0 0.0
  %753 = vmatpush1.msra.mxu0 %v574
  %754 = vmatprep.subr.mxu0 0.0
  %755 = vmatpush1.msra.mxu0 %v579
  %756 = vmatprep.subr.mxu0 0.0
  %757 = vmatpush1.msra.mxu0 0.0
  %758 = vmatprep.subr.mxu0 0.0
  %759 = vmatpush1.msra.mxu0 0.0
  %760 = vmatprep.subr.mxu0 0.0
  %761 = vmatpush1.msra.mxu0 0.0
  %762 = vmatprep.subr.mxu0 0.0
  %763 = vmatpush1.msra.mxu0 0.0
  %764 = vmatprep.subr.mxu0 0.0
  %765 = vmatpush1.msra.mxu0 0.0
  %766 = vmatprep.subr.mxu0 0.0
  %767 = vmatpush1.msra.mxu0 0.0
  %768 = vmatprep.subr.mxu0 0.0
  %769 = vmatpush1.msra.mxu0 0.0
  %770 = vmatprep.subr.mxu0 0.0
  %771 = vmatpush1.msra.mxu0 0.0
  %772 = vmatprep.subr.mxu0 0.0
  %773 = vmatpush1.msra.mxu0 0.0
  %774 = vmatprep.subr.mxu0 0.0
  %775 = vmatpush1.msra.mxu0 0.0
  %776 = vmatprep.subr.mxu0 0.0
  %777 = vmatpush1.msra.mxu0 0.0
  %778 = vmatprep.subr.mxu0 0.0
  %779 = vmatpush1.msra.mxu0 0.0
  %780 = vmatprep.subr.mxu0 0.0
  %781 = vmatpush1.msra.mxu0 0.0
  %782 = vmatprep.subr.mxu0 0.0
  %783 = vmatpush1.msra.mxu0 0.0
  %784 = vmatprep.subr.mxu0 0.0
  %785 = vmatpush1.msra.mxu0 0.0
  %786 = vmatprep.subr.mxu0 0.0
  %787 = vmatpush1.msra.mxu0 0.0
  %788 = vmatprep.subr.mxu0 0.0
  %789 = vmatpush1.msra.mxu0 0.0
  %790 = vmatprep.subr.mxu0 0.0
  %791 = vmatpush1.msra.mxu0 0.0
  %792 = vmatprep.subr.mxu0 0.0
  %793 = vmatpush1.msra.mxu0 0.0
  %794 = vmatprep.subr.mxu0 0.0
  %795 = vmatpush1.msra.mxu0 0.0
  %796 = vmatprep.subr.mxu0 0.0
  %797 = vmatpush1.msra.mxu0 0.0
  %798 = vmatprep.subr.mxu0 0.0
  %799 = vmatpush1.msra.mxu0 0.0
  %800 = vmatprep.subr.mxu0 0.0
  %801 = vmatpush1.msra.mxu0 0.0
  %802 = vmatprep.subr.mxu0 0.0
  %803 = vmatpush1.msra.mxu0 0.0
  %804 = vmatprep.subr.mxu0 0.0
  %805 = vmatpush1.msra.mxu0 0.0
  %806 = vmatprep.subr.mxu0 0.0
  %807 = vmatpush1.msra.mxu0 0.0
  %808 = vmatprep.subr.mxu0 0.0
  %809 = vmatpush1.msra.mxu0 0.0
  %810 = vmatprep.subr.mxu0 0.0
  %811 = vmatpush1.msra.mxu0 0.0
  %812 = vmatprep.mubr.f32.mxu0 0.0
  %813 = vmatmul.mubr.f32.gmra.mrb[0].mxu0 %v737
  %v814 = vpop.f32.mrb[0].mxu0
  %v815 = vadd.f32 0.0, %v814
  %v816 = vpop.f32.mrb[0].mxu0
  %817 = vmatprep.mubr.f32.mxu0 0.0
  %818 = vmatmul.mubr.f32.gmra.mrb[0].mxu0 %v740
  %v819 = vpop.f32.mrb[0].mxu0
  %v820 = vadd.f32 0.0, %v819
  %v821 = vpop.f32.mrb[0].mxu0
  %822 = vmatprep.mubr.f32.mxu0 0.0
  %823 = vmatmul.mubr.f32.gmra.mrb[0].mxu0 %v743
  %v824 = vpop.f32.mrb[0].mxu0
  %v825 = vadd.f32 0.0, %v824
  %v826 = vpop.f32.mrb[0].mxu0
  %827 = vmatprep.mubr.f32.mxu0 0.0
  %828 = vmatmul.mubr.f32.gmra.mrb[0].mxu0 %v746
  %v829 = vpop.f32.mrb[0].mxu0
  %v830 = vadd.f32 0.0, %v829
  %v831 = vpop.f32.mrb[0].mxu0
  %832 = vdwg.mxu0
  %v833 = vld [vmem:[%s1 + $0xa8] sm:$0xff]
  %834 = vrot.lane.b32.xlu0 %v392, 120
  %v835 = vpop.permute.xlu0 %834
  %836 = vrot.lane.b32.xlu0 %v393, 120
  %v837 = vpop.permute.xlu0 %836
  %838 = vrot.lane.b32.xlu0 %v394, 120
  %v839 = vpop.permute.xlu0 %838
  %840 = vrot.lane.b32.xlu0 %v395, 120
  %v841 = vpop.permute.xlu0 %840
  %842 = vrot.lane.b32.xlu0 %v471, 120
  %v843 = vpop.permute.xlu0 %842
  %844 = vrot.lane.b32.xlu0 %v476, 120
  %v845 = vpop.permute.xlu0 %844
  %846 = vrot.lane.b32.xlu0 %v481, 120
  %v847 = vpop.permute.xlu0 %846
  %848 = vrot.lane.b32.xlu0 %v486, 120
  %v849 = vpop.permute.xlu0 %848
  %v850 = vsel %vm582, %v835, 0
  %v852 = vsel %vm582, %v837, 0
  %v854 = vsel %vm582, %v839, 0
  %v856 = vsel %vm582, %v841, 0
  %v858 = vsel %vm582, %v843, 0
  %v860 = vsel %vm582, %v845, 0
  %v862 = vsel %vm582, %v847, 0
  %v864 = vsel %vm582, %v849, 0
  %866 = vmatprep.subr.mxu0 0.0
  %867 = vmatpush1.xpose.msra.mxu0 %v858
  %868 = vmatprep.subr.mxu0 0.0
  %869 = vmatpush1.xpose.msra.mxu0 %v860
  %870 = vmatprep.subr.mxu0 0.0
  %871 = vmatpush1.xpose.msra.mxu0 %v862
  %872 = vmatprep.subr.mxu0 0.0
  %873 = vmatpush1.xpose.msra.mxu0 %v864
  %874 = vmatprep.subr.mxu0 0.0
  %875 = vmatpush1.xpose.msra.mxu0 0.0
  %876 = vmatprep.subr.mxu0 0.0
  %877 = vmatpush1.xpose.msra.mxu0 0.0
  %878 = vmatprep.subr.mxu0 0.0
  %879 = vmatpush1.xpose.msra.mxu0 0.0
  %880 = vmatprep.subr.mxu0 0.0
  %881 = vmatpush1.xpose.msra.mxu0 0.0
  %882 = vmatprep.subr.mxu0 0.0
  %883 = vmatpush1.xpose.msra.mxu0 0.0
  %884 = vmatprep.subr.mxu0 0.0
  %885 = vmatpush1.xpose.msra.mxu0 0.0
  %886 = vmatprep.subr.mxu0 0.0
  %887 = vmatpush1.xpose.msra.mxu0 0.0
  %888 = vmatprep.subr.mxu0 0.0
  %889 = vmatpush1.xpose.msra.mxu0 0.0
  %890 = vmatprep.subr.mxu0 0.0
  %891 = vmatpush1.xpose.msra.mxu0 0.0
  %892 = vmatprep.subr.mxu0 0.0
  %893 = vmatpush1.xpose.msra.mxu0 0.0
  %894 = vmatprep.subr.mxu0 0.0
  %895 = vmatpush1.xpose.msra.mxu0 0.0
  %896 = vmatprep.subr.mxu0 0.0
  %897 = vmatpush1.xpose.msra.mxu0 0.0
  %898 = vmatprep.subr.mxu0 0.0
  %899 = vmatpush1.xpose.msra.mxu0 0.0
  %900 = vmatprep.subr.mxu0 0.0
  %901 = vmatpush1.xpose.msra.mxu0 0.0
  %902 = vmatprep.subr.mxu0 0.0
  %903 = vmatpush1.xpose.msra.mxu0 0.0
  %904 = vmatprep.subr.mxu0 0.0
  %905 = vmatpush1.xpose.msra.mxu0 0.0
  %906 = vmatprep.subr.mxu0 0.0
  %907 = vmatpush1.xpose.msra.mxu0 0.0
  %908 = vmatprep.subr.mxu0 0.0
  %909 = vmatpush1.xpose.msra.mxu0 0.0
  %910 = vmatprep.subr.mxu0 0.0
  %911 = vmatpush1.xpose.msra.mxu0 0.0
  %912 = vmatprep.subr.mxu0 0.0
  %913 = vmatpush1.xpose.msra.mxu0 0.0
  %914 = vmatprep.subr.mxu0 0.0
  %915 = vmatpush1.xpose.msra.mxu0 0.0
  %916 = vmatprep.subr.mxu0 0.0
  %917 = vmatpush1.xpose.msra.mxu0 0.0
  %918 = vmatprep.subr.mxu0 0.0
  %919 = vmatpush1.xpose.msra.mxu0 0.0
  %920 = vmatprep.subr.mxu0 0.0
  %921 = vmatpush1.xpose.msra.mxu0 0.0
  %922 = vmatprep.subr.mxu0 0.0
  %923 = vmatpush1.xpose.msra.mxu0 0.0
  %924 = vmatprep.subr.mxu0 0.0
  %925 = vmatpush1.xpose.msra.mxu0 0.0
  %926 = vmatprep.subr.mxu0 0.0
  %927 = vmatpush1.xpose.msra.mxu0 0.0
  %928 = vmatprep.subr.mxu0 0.0
  %929 = vmatpush1.xpose.msra.mxu0 0.0
  %930 = vmatprep.mubr.f32.mxu0 0.0
  %931 = vmatmul.mubr.f32.gmra.mrb[0].mxu0 %v850
  %v932 = vpop.f32.mrb[0].mxu0
  %v933 = vadd.f32 %v274, %v932
  %v934 = vpop.f32.mrb[0].mxu0
  %935 = vmatprep.mubr.f32.mxu0 0.0
  %936 = vmatmul.mubr.f32.gmra.mrb[0].mxu0 %v852
  %v937 = vpop.f32.mrb[0].mxu0
  %v938 = vadd.f32 %v275, %v937
  %v939 = vpop.f32.mrb[0].mxu0
  %940 = vmatprep.mubr.f32.mxu0 0.0
  %941 = vmatmul.mubr.f32.gmra.mrb[0].mxu0 %v854
  %v942 = vpop.f32.mrb[0].mxu0
  %v943 = vadd.f32 %v276, %v942
  %v944 = vpop.f32.mrb[0].mxu0
  %945 = vmatprep.mubr.f32.mxu0 0.0
  %946 = vmatmul.mubr.f32.gmra.mrb[0].mxu0 %v856
  %v947 = vpop.f32.mrb[0].mxu0
  %v948 = vadd.f32 %v277, %v947
  %v949 = vpop.f32.mrb[0].mxu0
  %950 = vdwg.mxu0
  %v951 = vsel %vm133, %v933, -inf
  %952 = vmax.xlane.f32.xlu0 %v951
  %v953 = vpop.xlane.xlu0 %952
  %v954 = vsel %vm133, %v938, -inf
  %955 = vmax.xlane.f32.xlu0 %v954
  %v956 = vpop.xlane.xlu0 %955
  %v957 = vsel %vm133, %v943, -inf
  %958 = vmax.xlane.f32.xlu0 %v957
  %v959 = vpop.xlane.xlu0 %958
  %v960 = vsel %vm133, %v948, -inf
  %961 = vmax.xlane.f32.xlu0 %v960
  %v962 = vpop.xlane.xlu0 %961
  %v963 = vsub.f32 %v933, %v953
  %v964 = vsub.f32 %v938, %v956
  %v965 = vsub.f32 %v943, %v959
  %v966 = vsub.f32 %v948, %v962
  %v967 = vmul.f32 %v963, 1.442695
  %v968 = vpow.pop %v967
  %v969 = vmul.f32 %v964, 1.442695
  %v970 = vpow.pop %v969
  %v971 = vmul.f32 %v965, 1.442695
  %v972 = vpow.pop %v971
  %v973 = vmul.f32 %v966, 1.442695
  %v974 = vpow.pop %v973
  %v975 = vsel %vm133, %v968, 0.0
  %976 = vadd.xlane.f32.xlu0 %v975
  %v977 = vpop.xlane.xlu0 %976
  %v978 = vsel %vm133, %v970, 0.0
  %979 = vadd.xlane.f32.xlu0 %v978
  %v980 = vpop.xlane.xlu0 %979
  %v981 = vsel %vm133, %v972, 0.0
  %982 = vadd.xlane.f32.xlu0 %v981
  %v983 = vpop.xlane.xlu0 %982
  %v984 = vsel %vm133, %v974, 0.0
  %985 = vadd.xlane.f32.xlu0 %v984
  %v986 = vpop.xlane.xlu0 %985
  %v987 = vrcp.pop %v977
  %v988 = vrcp.pop %v980
  %v989 = vrcp.pop %v983
  %v990 = vrcp.pop %v986
  %v991 = vmul.f32 %v968, %v987
  %v992 = vmul.f32 %v970, %v988
  %v993 = vmul.f32 %v972, %v989
  %v994 = vmul.f32 %v974, %v990
  %999 = vrot.lane.b32.xlu0 %v564, 120
  %v1000 = vpop.permute.xlu0 %999
  %1001 = vrot.lane.b32.xlu0 %v569, 120
  %v1002 = vpop.permute.xlu0 %1001
  %1003 = vrot.lane.b32.xlu0 %v574, 120
  %v1004 = vpop.permute.xlu0 %1003
  %1005 = vrot.lane.b32.xlu0 %v579, 120
  %v1006 = vpop.permute.xlu0 %1005
  %v1012 = vsel %vm133, %v991, 0
  %v1015 = vsel %vm133, %v992, 0
  %v1018 = vsel %vm133, %v993, 0
  %v1021 = vsel %vm133, %v994, 0
  %1023 = vmatprep.subr.mxu0 0.0
  %1024 = vmatpush1.msra.mxu0 %v1000
  %1025 = vmatprep.subr.mxu0 0.0
  %1026 = vmatpush1.msra.mxu0 %v1002
  %1027 = vmatprep.subr.mxu0 0.0
  %1028 = vmatpush1.msra.mxu0 %v1004
  %1029 = vmatprep.subr.mxu0 0.0
  %1030 = vmatpush1.msra.mxu0 %v1006
  %1031 = vmatprep.subr.mxu0 0.0
  %1032 = vmatpush1.msra.mxu0 0.0
  %1033 = vmatprep.subr.mxu0 0.0
  %1034 = vmatpush1.msra.mxu0 0.0
  %1035 = vmatprep.subr.mxu0 0.0
  %1036 = vmatpush1.msra.mxu0 0.0
  %1037 = vmatprep.subr.mxu0 0.0
  %1038 = vmatpush1.msra.mxu0 0.0
  %1039 = vmatprep.subr.mxu0 0.0
  %1040 = vmatpush1.msra.mxu0 0.0
  %1041 = vmatprep.subr.mxu0 0.0
  %1042 = vmatpush1.msra.mxu0 0.0
  %1043 = vmatprep.subr.mxu0 0.0
  %1044 = vmatpush1.msra.mxu0 0.0
  %1045 = vmatprep.subr.mxu0 0.0
  %1046 = vmatpush1.msra.mxu0 0.0
  %1047 = vmatprep.subr.mxu0 0.0
  %1048 = vmatpush1.msra.mxu0 0.0
  %1049 = vmatprep.subr.mxu0 0.0
  %1050 = vmatpush1.msra.mxu0 0.0
  %1051 = vmatprep.subr.mxu0 0.0
  %1052 = vmatpush1.msra.mxu0 0.0
  %1053 = vmatprep.subr.mxu0 0.0
  %1054 = vmatpush1.msra.mxu0 0.0
  %1055 = vmatprep.subr.mxu0 0.0
  %1056 = vmatpush1.msra.mxu0 0.0
  %1057 = vmatprep.subr.mxu0 0.0
  %1058 = vmatpush1.msra.mxu0 0.0
  %1059 = vmatprep.subr.mxu0 0.0
  %1060 = vmatpush1.msra.mxu0 0.0
  %1061 = vmatprep.subr.mxu0 0.0
  %1062 = vmatpush1.msra.mxu0 0.0
  %1063 = vmatprep.subr.mxu0 0.0
  %1064 = vmatpush1.msra.mxu0 0.0
  %1065 = vmatprep.subr.mxu0 0.0
  %1066 = vmatpush1.msra.mxu0 0.0
  %1067 = vmatprep.subr.mxu0 0.0
  %1068 = vmatpush1.msra.mxu0 0.0
  %1069 = vmatprep.subr.mxu0 0.0
  %1070 = vmatpush1.msra.mxu0 0.0
  %1071 = vmatprep.subr.mxu0 0.0
  %1072 = vmatpush1.msra.mxu0 0.0
  %1073 = vmatprep.subr.mxu0 0.0
  %1074 = vmatpush1.msra.mxu0 0.0
  %1075 = vmatprep.subr.mxu0 0.0
  %1076 = vmatpush1.msra.mxu0 0.0
  %1077 = vmatprep.subr.mxu0 0.0
  %1078 = vmatpush1.msra.mxu0 0.0
  %1079 = vmatprep.subr.mxu0 0.0
  %1080 = vmatpush1.msra.mxu0 0.0
  %1081 = vmatprep.subr.mxu0 0.0
  %1082 = vmatpush1.msra.mxu0 0.0
  %1083 = vmatprep.subr.mxu0 0.0
  %1084 = vmatpush1.msra.mxu0 0.0
  %1085 = vmatprep.subr.mxu0 0.0
  %1086 = vmatpush1.msra.mxu0 0.0
  %1087 = vmatprep.mubr.f32.mxu0 0.0
  %1088 = vmatmul.mubr.f32.gmra.mrb[0].mxu0 %v1012
  %v1089 = vpop.f32.mrb[0].mxu0
  %v1090 = vadd.f32 0.0, %v1089
  %v1091 = vpop.f32.mrb[0].mxu0
  %1092 = vmatprep.mubr.f32.mxu0 0.0
  %1093 = vmatmul.mubr.f32.gmra.mrb[0].mxu0 %v1015
  %v1094 = vpop.f32.mrb[0].mxu0
  %v1095 = vadd.f32 0.0, %v1094
  %v1096 = vpop.f32.mrb[0].mxu0
  %1097 = vmatprep.mubr.f32.mxu0 0.0
  %1098 = vmatmul.mubr.f32.gmra.mrb[0].mxu0 %v1018
  %v1099 = vpop.f32.mrb[0].mxu0
  %v1100 = vadd.f32 0.0, %v1099
  %v1101 = vpop.f32.mrb[0].mxu0
  %1102 = vmatprep.mubr.f32.mxu0 0.0
  %1103 = vmatmul.mubr.f32.gmra.mrb[0].mxu0 %v1021
  %v1104 = vpop.f32.mrb[0].mxu0
  %v1105 = vadd.f32 0.0, %v1104
  %v1106 = vpop.f32.mrb[0].mxu0
  %1107 = vdwg.mxu0
  %v1108 = vld [vmem:[%s1 + $0xb0] sm:$0xff]
  %v1110 = vsel %vm582, %v1090, 0
  %v1113 = vsel %vm582, %v1095, 0
  %v1116 = vsel %vm582, %v1100, 0
  %v1119 = vsel %vm582, %v1105, 0
  %1121 = vmatprep.subr.mxu0 0.0
  %1122 = vmatpush1.msra.mxu0 %v1108
  %1123 = vmatprep.subr.mxu0 0.0
  %1124 = vmatpush1.msra.mxu0 0.0
  %1125 = vmatprep.subr.mxu0 0.0
  %1126 = vmatpush1.msra.mxu0 0.0
  %1127 = vmatprep.subr.mxu0 0.0
  %1128 = vmatpush1.msra.mxu0 0.0
  %1129 = vmatprep.subr.mxu0 0.0
  %1130 = vmatpush1.msra.mxu0 0.0
  %1131 = vmatprep.subr.mxu0 0.0
  %1132 = vmatpush1.msra.mxu0 0.0
  %1133 = vmatprep.subr.mxu0 0.0
  %1134 = vmatpush1.msra.mxu0 0.0
  %1135 = vmatprep.subr.mxu0 0.0
  %1136 = vmatpush1.msra.mxu0 0.0
  %1137 = vmatprep.subr.mxu0 0.0
  %1138 = vmatpush1.msra.mxu0 0.0
  %1139 = vmatprep.subr.mxu0 0.0
  %1140 = vmatpush1.msra.mxu0 0.0
  %1141 = vmatprep.subr.mxu0 0.0
  %1142 = vmatpush1.msra.mxu0 0.0
  %1143 = vmatprep.subr.mxu0 0.0
  %1144 = vmatpush1.msra.mxu0 0.0
  %1145 = vmatprep.subr.mxu0 0.0
  %1146 = vmatpush1.msra.mxu0 0.0
  %1147 = vmatprep.subr.mxu0 0.0
  %1148 = vmatpush1.msra.mxu0 0.0
  %1149 = vmatprep.subr.mxu0 0.0
  %1150 = vmatpush1.msra.mxu0 0.0
  %1151 = vmatprep.subr.mxu0 0.0
  %1152 = vmatpush1.msra.mxu0 0.0
  %1153 = vmatprep.subr.mxu0 0.0
  %1154 = vmatpush1.msra.mxu0 0.0
  %1155 = vmatprep.subr.mxu0 0.0
  %1156 = vmatpush1.msra.mxu0 0.0
  %1157 = vmatprep.subr.mxu0 0.0
  %1158 = vmatpush1.msra.mxu0 0.0
  %1159 = vmatprep.subr.mxu0 0.0
  %1160 = vmatpush1.msra.mxu0 0.0
  %1161 = vmatprep.subr.mxu0 0.0
  %1162 = vmatpush1.msra.mxu0 0.0
  %1163 = vmatprep.subr.mxu0 0.0
  %1164 = vmatpush1.msra.mxu0 0.0
  %1165 = vmatprep.subr.mxu0 0.0
  %1166 = vmatpush1.msra.mxu0 0.0
  %1167 = vmatprep.subr.mxu0 0.0
  %1168 = vmatpush1.msra.mxu0 0.0
  %1169 = vmatprep.subr.mxu0 0.0
  %1170 = vmatpush1.msra.mxu0 0.0
  %1171 = vmatprep.subr.mxu0 0.0
  %1172 = vmatpush1.msra.mxu0 0.0
  %1173 = vmatprep.subr.mxu0 0.0
  %1174 = vmatpush1.msra.mxu0 0.0
  %1175 = vmatprep.subr.mxu0 0.0
  %1176 = vmatpush1.msra.mxu0 0.0
  %1177 = vmatprep.subr.mxu0 0.0
  %1178 = vmatpush1.msra.mxu0 0.0
  %1179 = vmatprep.subr.mxu0 0.0
  %1180 = vmatpush1.msra.mxu0 0.0
  %1181 = vmatprep.subr.mxu0 0.0
  %1182 = vmatpush1.msra.mxu0 0.0
  %1183 = vmatprep.subr.mxu0 0.0
  %1184 = vmatpush1.msra.mxu0 0.0
  %1185 = vmatprep.mubr.f32.mxu0 0.0
  %1186 = vmatmul.mubr.f32.gmra.mrb[0].mxu0 %v1110
  %v1187 = vpop.f32.mrb[0].mxu0
  %v1188 = vadd.f32 0.0, %v1187
  %v1189 = vpop.f32.mrb[0].mxu0
  %1190 = vmatprep.mubr.f32.mxu0 0.0
  %1191 = vmatmul.mubr.f32.gmra.mrb[0].mxu0 %v1113
  %v1192 = vpop.f32.mrb[0].mxu0
  %v1193 = vadd.f32 0.0, %v1192
  %v1194 = vpop.f32.mrb[0].mxu0
  %1195 = vmatprep.mubr.f32.mxu0 0.0
  %1196 = vmatmul.mubr.f32.gmra.mrb[0].mxu0 %v1116
  %v1197 = vpop.f32.mrb[0].mxu0
  %v1198 = vadd.f32 0.0, %v1197
  %v1199 = vpop.f32.mrb[0].mxu0
  %1200 = vmatprep.mubr.f32.mxu0 0.0
  %1201 = vmatmul.mubr.f32.gmra.mrb[0].mxu0 %v1119
  %v1202 = vpop.f32.mrb[0].mxu0
  %v1203 = vadd.f32 0.0, %v1202
  %v1204 = vpop.f32.mrb[0].mxu0
  %1205 = vdwg.mxu0
  %v1207 = vsel %vm582, %v815, 0
  %v1210 = vsel %vm582, %v820, 0
  %v1213 = vsel %vm582, %v825, 0
  %v1216 = vsel %vm582, %v830, 0
  %1218 = vmatprep.subr.mxu0 0.0
  %1219 = vmatpush1.msra.mxu0 %v833
  %1220 = vmatprep.subr.mxu0 0.0
  %1221 = vmatpush1.msra.mxu0 0.0
  %1222 = vmatprep.subr.mxu0 0.0
  %1223 = vmatpush1.msra.mxu0 0.0
  %1224 = vmatprep.subr.mxu0 0.0
  %1225 = vmatpush1.msra.mxu0 0.0
  %1226 = vmatprep.subr.mxu0 0.0
  %1227 = vmatpush1.msra.mxu0 0.0
  %1228 = vmatprep.subr.mxu0 0.0
  %1229 = vmatpush1.msra.mxu0 0.0
  %1230 = vmatprep.subr.mxu0 0.0
  %1231 = vmatpush1.msra.mxu0 0.0
  %1232 = vmatprep.subr.mxu0 0.0
  %1233 = vmatpush1.msra.mxu0 0.0
  %1234 = vmatprep.subr.mxu0 0.0
  %1235 = vmatpush1.msra.mxu0 0.0
  %1236 = vmatprep.subr.mxu0 0.0
  %1237 = vmatpush1.msra.mxu0 0.0
  %1238 = vmatprep.subr.mxu0 0.0
  %1239 = vmatpush1.msra.mxu0 0.0
  %1240 = vmatprep.subr.mxu0 0.0
  %1241 = vmatpush1.msra.mxu0 0.0
  %1242 = vmatprep.subr.mxu0 0.0
  %1243 = vmatpush1.msra.mxu0 0.0
  %1244 = vmatprep.subr.mxu0 0.0
  %1245 = vmatpush1.msra.mxu0 0.0
  %1246 = vmatprep.subr.mxu0 0.0
  %1247 = vmatpush1.msra.mxu0 0.0
  %1248 = vmatprep.subr.mxu0 0.0
  %1249 = vmatpush1.msra.mxu0 0.0
  %1250 = vmatprep.subr.mxu0 0.0
  %1251 = vmatpush1.msra.mxu0 0.0
  %1252 = vmatprep.subr.mxu0 0.0
  %1253 = vmatpush1.msra.mxu0 0.0
  %1254 = vmatprep.subr.mxu0 0.0
  %1255 = vmatpush1.msra.mxu0 0.0
  %1256 = vmatprep.subr.mxu0 0.0
  %1257 = vmatpush1.msra.mxu0 0.0
  %1258 = vmatprep.subr.mxu0 0.0
  %1259 = vmatpush1.msra.mxu0 0.0
  %1260 = vmatprep.subr.mxu0 0.0
  %1261 = vmatpush1.msra.mxu0 0.0
  %1262 = vmatprep.subr.mxu0 0.0
  %1263 = vmatpush1.msra.mxu0 0.0
  %1264 = vmatprep.subr.mxu0 0.0
  %1265 = vmatpush1.msra.mxu0 0.0
  %1266 = vmatprep.subr.mxu0 0.0
  %1267 = vmatpush1.msra.mxu0 0.0
  %1268 = vmatprep.subr.mxu0 0.0
  %1269 = vmatpush1.msra.mxu0 0.0
  %1270 = vmatprep.subr.mxu0 0.0
  %1271 = vmatpush1.msra.mxu0 0.0
  %1272 = vmatprep.subr.mxu0 0.0
  %1273 = vmatpush1.msra.mxu0 0.0
  %1274 = vmatprep.subr.mxu0 0.0
  %1275 = vmatpush1.msra.mxu0 0.0
  %1276 = vmatprep.subr.mxu0 0.0
  %1277 = vmatpush1.msra.mxu0 0.0
  %1278 = vmatprep.subr.mxu0 0.0
  %1279 = vmatpush1.msra.mxu0 0.0
  %1280 = vmatprep.subr.mxu0 0.0
  %1281 = vmatpush1.msra.mxu0 0.0
  %1282 = vmatprep.mubr.f32.mxu0 0.0
  %1283 = vmatmul.mubr.f32.gmra.mrb[0].mxu0 %v1207
  %v1284 = vpop.f32.mrb[0].mxu0
  %v1285 = vadd.f32 %v1188, %v1284
  %v1286 = vpop.f32.mrb[0].mxu0
  %1287 = vmatprep.mubr.f32.mxu0 0.0
  %1288 = vmatmul.mubr.f32.gmra.mrb[0].mxu0 %v1210
  %v1289 = vpop.f32.mrb[0].mxu0
  %v1290 = vadd.f32 %v1193, %v1289
  %v1291 = vpop.f32.mrb[0].mxu0
  %1292 = vmatprep.mubr.f32.mxu0 0.0
  %1293 = vmatmul.mubr.f32.gmra.mrb[0].mxu0 %v1213
  %v1294 = vpop.f32.mrb[0].mxu0
  %v1295 = vadd.f32 %v1198, %v1294
  %v1296 = vpop.f32.mrb[0].mxu0
  %1297 = vmatprep.mubr.f32.mxu0 0.0
  %1298 = vmatmul.mubr.f32.gmra.mrb[0].mxu0 %v1216
  %v1299 = vpop.f32.mrb[0].mxu0
  %v1300 = vadd.f32 %v1203, %v1299
  %v1301 = vpop.f32.mrb[0].mxu0
  %1302 = vdwg.mxu0
  %1303 = vrot.lane.b32.xlu0 %v392, 112
  %v1304 = vpop.permute.xlu0 %1303
  %1305 = vrot.lane.b32.xlu0 %v393, 112
  %v1306 = vpop.permute.xlu0 %1305
  %1307 = vrot.lane.b32.xlu0 %v394, 112
  %v1308 = vpop.permute.xlu0 %1307
  %1309 = vrot.lane.b32.xlu0 %v395, 112
  %v1310 = vpop.permute.xlu0 %1309
  %1311 = vrot.lane.b32.xlu0 %v471, 112
  %v1312 = vpop.permute.xlu0 %1311
  %1313 = vrot.lane.b32.xlu0 %v476, 112
  %v1314 = vpop.permute.xlu0 %1313
  %1315 = vrot.lane.b32.xlu0 %v481, 112
  %v1316 = vpop.permute.xlu0 %1315
  %1317 = vrot.lane.b32.xlu0 %v486, 112
  %v1318 = vpop.permute.xlu0 %1317
  %v1319 = vsel %vm582, %v1304, 0
  %v1321 = vsel %vm582, %v1306, 0
  %v1323 = vsel %vm582, %v1308, 0
  %v1325 = vsel %vm582, %v1310, 0
  %v1327 = vsel %vm582, %v1312, 0
  %v1329 = vsel %vm582, %v1314, 0
  %v1331 = vsel %vm582, %v1316, 0
  %v1333 = vsel %vm582, %v1318, 0
  %1335 = vmatprep.subr.mxu0 0.0
  %1336 = vmatpush1.xpose.msra.mxu0 %v1327
  %1337 = vmatprep.subr.mxu0 0.0
  %1338 = vmatpush1.xpose.msra.mxu0 %v1329
  %1339 = vmatprep.subr.mxu0 0.0
  %1340 = vmatpush1.xpose.msra.mxu0 %v1331
  %1341 = vmatprep.subr.mxu0 0.0
  %1342 = vmatpush1.xpose.msra.mxu0 %v1333
  %1343 = vmatprep.subr.mxu0 0.0
  %1344 = vmatpush1.xpose.msra.mxu0 0.0
  %1345 = vmatprep.subr.mxu0 0.0
  %1346 = vmatpush1.xpose.msra.mxu0 0.0
  %1347 = vmatprep.subr.mxu0 0.0
  %1348 = vmatpush1.xpose.msra.mxu0 0.0
  %1349 = vmatprep.subr.mxu0 0.0
  %1350 = vmatpush1.xpose.msra.mxu0 0.0
  %1351 = vmatprep.subr.mxu0 0.0
  %1352 = vmatpush1.xpose.msra.mxu0 0.0
  %1353 = vmatprep.subr.mxu0 0.0
  %1354 = vmatpush1.xpose.msra.mxu0 0.0
  %1355 = vmatprep.subr.mxu0 0.0
  %1356 = vmatpush1.xpose.msra.mxu0 0.0
  %1357 = vmatprep.subr.mxu0 0.0
  %1358 = vmatpush1.xpose.msra.mxu0 0.0
  %1359 = vmatprep.subr.mxu0 0.0
  %1360 = vmatpush1.xpose.msra.mxu0 0.0
  %1361 = vmatprep.subr.mxu0 0.0
  %1362 = vmatpush1.xpose.msra.mxu0 0.0
  %1363 = vmatprep.subr.mxu0 0.0
  %1364 = vmatpush1.xpose.msra.mxu0 0.0
  %1365 = vmatprep.subr.mxu0 0.0
  %1366 = vmatpush1.xpose.msra.mxu0 0.0
  %1367 = vmatprep.subr.mxu0 0.0
  %1368 = vmatpush1.xpose.msra.mxu0 0.0
  %1369 = vmatprep.subr.mxu0 0.0
  %1370 = vmatpush1.xpose.msra.mxu0 0.0
  %1371 = vmatprep.subr.mxu0 0.0
  %1372 = vmatpush1.xpose.msra.mxu0 0.0
  %1373 = vmatprep.subr.mxu0 0.0
  %1374 = vmatpush1.xpose.msra.mxu0 0.0
  %1375 = vmatprep.subr.mxu0 0.0
  %1376 = vmatpush1.xpose.msra.mxu0 0.0
  %1377 = vmatprep.subr.mxu0 0.0
  %1378 = vmatpush1.xpose.msra.mxu0 0.0
  %1379 = vmatprep.subr.mxu0 0.0
  %1380 = vmatpush1.xpose.msra.mxu0 0.0
  %1381 = vmatprep.subr.mxu0 0.0
  %1382 = vmatpush1.xpose.msra.mxu0 0.0
  %1383 = vmatprep.subr.mxu0 0.0
  %1384 = vmatpush1.xpose.msra.mxu0 0.0
  %1385 = vmatprep.subr.mxu0 0.0
  %1386 = vmatpush1.xpose.msra.mxu0 0.0
  %1387 = vmatprep.subr.mxu0 0.0
  %1388 = vmatpush1.xpose.msra.mxu0 0.0
  %1389 = vmatprep.subr.mxu0 0.0
  %1390 = vmatpush1.xpose.msra.mxu0 0.0
  %1391 = vmatprep.subr.mxu0 0.0
  %1392 = vmatpush1.xpose.msra.mxu0 0.0
  %1393 = vmatprep.subr.mxu0 0.0
  %1394 = vmatpush1.xpose.msra.mxu0 0.0
  %1395 = vmatprep.subr.mxu0 0.0
  %1396 = vmatpush1.xpose.msra.mxu0 0.0
  %1397 = vmatprep.subr.mxu0 0.0
  %1398 = vmatpush1.xpose.msra.mxu0 0.0
  %1399 = vmatprep.mubr.f32.mxu0 0.0
  %1400 = vmatmul.mubr.f32.gmra.mrb[0].mxu0 %v1319
  %v1401 = vpop.f32.mrb[0].mxu0
  %v1402 = vadd.f32 %v274, %v1401
  %v1403 = vpop.f32.mrb[0].mxu0
  %1404 = vmatprep.mubr.f32.mxu0 0.0
  %1405 = vmatmul.mubr.f32.gmra.mrb[0].mxu0 %v1321
  %v1406 = vpop.f32.mrb[0].mxu0
  %v1407 = vadd.f32 %v275, %v1406
  %v1408 = vpop.f32.mrb[0].mxu0
  %1409 = vmatprep.mubr.f32.mxu0 0.0
  %1410 = vmatmul.mubr.f32.gmra.mrb[0].mxu0 %v1323
  %v1411 = vpop.f32.mrb[0].mxu0
  %v1412 = vadd.f32 %v276, %v1411
  %v1413 = vpop.f32.mrb[0].mxu0
  %1414 = vmatprep.mubr.f32.mxu0 0.0
  %1415 = vmatmul.mubr.f32.gmra.mrb[0].mxu0 %v1325
  %v1416 = vpop.f32.mrb[0].mxu0
  %v1417 = vadd.f32 %v277, %v1416
  %v1418 = vpop.f32.mrb[0].mxu0
  %1419 = vdwg.mxu0
  %v1420 = vsel %vm133, %v1402, -inf
  %1421 = vmax.xlane.f32.xlu0 %v1420
  %v1422 = vpop.xlane.xlu0 %1421
  %v1423 = vsel %vm133, %v1407, -inf
  %1424 = vmax.xlane.f32.xlu0 %v1423
  %v1425 = vpop.xlane.xlu0 %1424
  %v1426 = vsel %vm133, %v1412, -inf
  %1427 = vmax.xlane.f32.xlu0 %v1426
  %v1428 = vpop.xlane.xlu0 %1427
  %v1429 = vsel %vm133, %v1417, -inf
  %1430 = vmax.xlane.f32.xlu0 %v1429
  %v1431 = vpop.xlane.xlu0 %1430
  %v1432 = vsub.f32 %v1402, %v1422
  %v1433 = vsub.f32 %v1407, %v1425
  %v1434 = vsub.f32 %v1412, %v1428
  %v1435 = vsub.f32 %v1417, %v1431
  %v1436 = vmul.f32 %v1432, 1.442695
  %v1437 = vpow.pop %v1436
  %v1438 = vmul.f32 %v1433, 1.442695
  %v1439 = vpow.pop %v1438
  %v1440 = vmul.f32 %v1434, 1.442695
  %v1441 = vpow.pop %v1440
  %v1442 = vmul.f32 %v1435, 1.442695
  %v1443 = vpow.pop %v1442
  %v1444 = vsel %vm133, %v1437, 0.0
  %1445 = vadd.xlane.f32.xlu0 %v1444
  %v1446 = vpop.xlane.xlu0 %1445
  %v1447 = vsel %vm133, %v1439, 0.0
  %1448 = vadd.xlane.f32.xlu0 %v1447
  %v1449 = vpop.xlane.xlu0 %1448
  %v1450 = vsel %vm133, %v1441, 0.0
  %1451 = vadd.xlane.f32.xlu0 %v1450
  %v1452 = vpop.xlane.xlu0 %1451
  %v1453 = vsel %vm133, %v1443, 0.0
  %1454 = vadd.xlane.f32.xlu0 %v1453
  %v1455 = vpop.xlane.xlu0 %1454
  %v1456 = vrcp.pop %v1446
  %v1457 = vrcp.pop %v1449
  %v1458 = vrcp.pop %v1452
  %v1459 = vrcp.pop %v1455
  %v1460 = vmul.f32 %v1437, %v1456
  %v1461 = vmul.f32 %v1439, %v1457
  %v1462 = vmul.f32 %v1441, %v1458
  %v1463 = vmul.f32 %v1443, %v1459
  %1464 = vrot.lane.b32.xlu0 %v564, 112
  %v1465 = vpop.permute.xlu0 %1464
  %1466 = vrot.lane.b32.xlu0 %v569, 112
  %v1467 = vpop.permute.xlu0 %1466
  %1468 = vrot.lane.b32.xlu0 %v574, 112
  %v1469 = vpop.permute.xlu0 %1468
  %1470 = vrot.lane.b32.xlu0 %v579, 112
  %v1471 = vpop.permute.xlu0 %1470
  %v1477 = vsel %vm133, %v1460, 0
  %v1480 = vsel %vm133, %v1461, 0
  %v1483 = vsel %vm133, %v1462, 0
  %v1486 = vsel %vm133, %v1463, 0
  %1488 = vmatprep.subr.mxu0 0.0
  %1489 = vmatpush1.msra.mxu0 %v1465
  %1490 = vmatprep.subr.mxu0 0.0
  %1491 = vmatpush1.msra.mxu0 %v1467
  %1492 = vmatprep.subr.mxu0 0.0
  %1493 = vmatpush1.msra.mxu0 %v1469
  %1494 = vmatprep.subr.mxu0 0.0
  %1495 = vmatpush1.msra.mxu0 %v1471
  %1496 = vmatprep.subr.mxu0 0.0
  %1497 = vmatpush1.msra.mxu0 0.0
  %1498 = vmatprep.subr.mxu0 0.0
  %1499 = vmatpush1.msra.mxu0 0.0
  %1500 = vmatprep.subr.mxu0 0.0
  %1501 = vmatpush1.msra.mxu0 0.0
  %1502 = vmatprep.subr.mxu0 0.0
  %1503 = vmatpush1.msra.mxu0 0.0
  %1504 = vmatprep.subr.mxu0 0.0
  %1505 = vmatpush1.msra.mxu0 0.0
  %1506 = vmatprep.subr.mxu0 0.0
  %1507 = vmatpush1.msra.mxu0 0.0
  %1508 = vmatprep.subr.mxu0 0.0
  %1509 = vmatpush1.msra.mxu0 0.0
  %1510 = vmatprep.subr.mxu0 0.0
  %1511 = vmatpush1.msra.mxu0 0.0
  %1512 = vmatprep.subr.mxu0 0.0
  %1513 = vmatpush1.msra.mxu0 0.0
  %1514 = vmatprep.subr.mxu0 0.0
  %1515 = vmatpush1.msra.mxu0 0.0
  %1516 = vmatprep.subr.mxu0 0.0
  %1517 = vmatpush1.msra.mxu0 0.0
  %1518 = vmatprep.subr.mxu0 0.0
  %1519 = vmatpush1.msra.mxu0 0.0
  %1520 = vmatprep.subr.mxu0 0.0
  %1521 = vmatpush1.msra.mxu0 0.0
  %1522 = vmatprep.subr.mxu0 0.0
  %1523 = vmatpush1.msra.mxu0 0.0
  %1524 = vmatprep.subr.mxu0 0.0
  %1525 = vmatpush1.msra.mxu0 0.0
  %1526 = vmatprep.subr.mxu0 0.0
  %1527 = vmatpush1.msra.mxu0 0.0
  %1528 = vmatprep.subr.mxu0 0.0
  %1529 = vmatpush1.msra.mxu0 0.0
  %1530 = vmatprep.subr.mxu0 0.0
  %1531 = vmatpush1.msra.mxu0 0.0
  %1532 = vmatprep.subr.mxu0 0.0
  %1533 = vmatpush1.msra.mxu0 0.0
  %1534 = vmatprep.subr.mxu0 0.0
  %1535 = vmatpush1.msra.mxu0 0.0
  %1536 = vmatprep.subr.mxu0 0.0
  %1537 = vmatpush1.msra.mxu0 0.0
  %1538 = vmatprep.subr.mxu0 0.0
  %1539 = vmatpush1.msra.mxu0 0.0
  %1540 = vmatprep.subr.mxu0 0.0
  %1541 = vmatpush1.msra.mxu0 0.0
  %1542 = vmatprep.subr.mxu0 0.0
  %1543 = vmatpush1.msra.mxu0 0.0
  %1544 = vmatprep.subr.mxu0 0.0
  %1545 = vmatpush1.msra.mxu0 0.0
  %1546 = vmatprep.subr.mxu0 0.0
  %1547 = vmatpush1.msra.mxu0 0.0
  %1548 = vmatprep.subr.mxu0 0.0
  %1549 = vmatpush1.msra.mxu0 0.0
  %1550 = vmatprep.subr.mxu0 0.0
  %1551 = vmatpush1.msra.mxu0 0.0
  %1552 = vmatprep.mubr.f32.mxu0 0.0
  %1553 = vmatmul.mubr.f32.gmra.mrb[0].mxu0 %v1477
  %v1554 = vpop.f32.mrb[0].mxu0
  %v1555 = vadd.f32 0.0, %v1554
  %v1556 = vpop.f32.mrb[0].mxu0
  %1557 = vmatprep.mubr.f32.mxu0 0.0
  %1558 = vmatmul.mubr.f32.gmra.mrb[0].mxu0 %v1480
  %v1559 = vpop.f32.mrb[0].mxu0
  %v1560 = vadd.f32 0.0, %v1559
  %v1561 = vpop.f32.mrb[0].mxu0
  %1562 = vmatprep.mubr.f32.mxu0 0.0
  %1563 = vmatmul.mubr.f32.gmra.mrb[0].mxu0 %v1483
  %v1564 = vpop.f32.mrb[0].mxu0
  %v1565 = vadd.f32 0.0, %v1564
  %v1566 = vpop.f32.mrb[0].mxu0
  %1567 = vmatprep.mubr.f32.mxu0 0.0
  %1568 = vmatmul.mubr.f32.gmra.mrb[0].mxu0 %v1486
  %v1569 = vpop.f32.mrb[0].mxu0
  %v1570 = vadd.f32 0.0, %v1569
  %v1571 = vpop.f32.mrb[0].mxu0
  %1572 = vdwg.mxu0
  %v1573 = vld [vmem:[%s1 + $0xb8] sm:$0xff]
  %v1575 = vsel %vm582, %v1555, 0
  %v1578 = vsel %vm582, %v1560, 0
  %v1581 = vsel %vm582, %v1565, 0
  %v1584 = vsel %vm582, %v1570, 0
  %1586 = vmatprep.subr.mxu0 0.0
  %1587 = vmatpush1.msra.mxu0 %v1573
  %1588 = vmatprep.subr.mxu0 0.0
  %1589 = vmatpush1.msra.mxu0 0.0
  %1590 = vmatprep.subr.mxu0 0.0
  %1591 = vmatpush1.msra.mxu0 0.0
  %1592 = vmatprep.subr.mxu0 0.0
  %1593 = vmatpush1.msra.mxu0 0.0
  %1594 = vmatprep.subr.mxu0 0.0
  %1595 = vmatpush1.msra.mxu0 0.0
  %1596 = vmatprep.subr.mxu0 0.0
  %1597 = vmatpush1.msra.mxu0 0.0
  %1598 = vmatprep.subr.mxu0 0.0
  %1599 = vmatpush1.msra.mxu0 0.0
  %1600 = vmatprep.subr.mxu0 0.0
  %1601 = vmatpush1.msra.mxu0 0.0
  %1602 = vmatprep.subr.mxu0 0.0
  %1603 = vmatpush1.msra.mxu0 0.0
  %1604 = vmatprep.subr.mxu0 0.0
  %1605 = vmatpush1.msra.mxu0 0.0
  %1606 = vmatprep.subr.mxu0 0.0
  %1607 = vmatpush1.msra.mxu0 0.0
  %1608 = vmatprep.subr.mxu0 0.0
  %1609 = vmatpush1.msra.mxu0 0.0
  %1610 = vmatprep.subr.mxu0 0.0
  %1611 = vmatpush1.msra.mxu0 0.0
  %1612 = vmatprep.subr.mxu0 0.0
  %1613 = vmatpush1.msra.mxu0 0.0
  %1614 = vmatprep.subr.mxu0 0.0
  %1615 = vmatpush1.msra.mxu0 0.0
  %1616 = vmatprep.subr.mxu0 0.0
  %1617 = vmatpush1.msra.mxu0 0.0
  %1618 = vmatprep.subr.mxu0 0.0
  %1619 = vmatpush1.msra.mxu0 0.0
  %1620 = vmatprep.subr.mxu0 0.0
  %1621 = vmatpush1.msra.mxu0 0.0
  %1622 = vmatprep.subr.mxu0 0.0
  %1623 = vmatpush1.msra.mxu0 0.0
  %1624 = vmatprep.subr.mxu0 0.0
  %1625 = vmatpush1.msra.mxu0 0.0
  %1626 = vmatprep.subr.mxu0 0.0
  %1627 = vmatpush1.msra.mxu0 0.0
  %1628 = vmatprep.subr.mxu0 0.0
  %1629 = vmatpush1.msra.mxu0 0.0
  %1630 = vmatprep.subr.mxu0 0.0
  %1631 = vmatpush1.msra.mxu0 0.0
  %1632 = vmatprep.subr.mxu0 0.0
  %1633 = vmatpush1.msra.mxu0 0.0
  %1634 = vmatprep.subr.mxu0 0.0
  %1635 = vmatpush1.msra.mxu0 0.0
  %1636 = vmatprep.subr.mxu0 0.0
  %1637 = vmatpush1.msra.mxu0 0.0
  %1638 = vmatprep.subr.mxu0 0.0
  %1639 = vmatpush1.msra.mxu0 0.0
  %1640 = vmatprep.subr.mxu0 0.0
  %1641 = vmatpush1.msra.mxu0 0.0
  %1642 = vmatprep.subr.mxu0 0.0
  %1643 = vmatpush1.msra.mxu0 0.0
  %1644 = vmatprep.subr.mxu0 0.0
  %1645 = vmatpush1.msra.mxu0 0.0
  %1646 = vmatprep.subr.mxu0 0.0
  %1647 = vmatpush1.msra.mxu0 0.0
  %1648 = vmatprep.subr.mxu0 0.0
  %1649 = vmatpush1.msra.mxu0 0.0
  %1650 = vmatprep.mubr.f32.mxu0 0.0
  %1651 = vmatmul.mubr.f32.gmra.mrb[0].mxu0 %v1575
  %v1652 = vpop.f32.mrb[0].mxu0
  %v1653 = vadd.f32 0.0, %v1652
  %v1654 = vpop.f32.mrb[0].mxu0
  %1655 = vmatprep.mubr.f32.mxu0 0.0
  %1656 = vmatmul.mubr.f32.gmra.mrb[0].mxu0 %v1578
  %v1657 = vpop.f32.mrb[0].mxu0
  %v1658 = vadd.f32 0.0, %v1657
  %v1659 = vpop.f32.mrb[0].mxu0
  %1660 = vmatprep.mubr.f32.mxu0 0.0
  %1661 = vmatmul.mubr.f32.gmra.mrb[0].mxu0 %v1581
  %v1662 = vpop.f32.mrb[0].mxu0
  %v1663 = vadd.f32 0.0, %v1662
  %v1664 = vpop.f32.mrb[0].mxu0
  %1665 = vmatprep.mubr.f32.mxu0 0.0
  %1666 = vmatmul.mubr.f32.gmra.mrb[0].mxu0 %v1584
  %v1667 = vpop.f32.mrb[0].mxu0
  %v1668 = vadd.f32 0.0, %v1667
  %v1669 = vpop.f32.mrb[0].mxu0
  %1670 = vdwg.mxu0
  %v1671 = vadd.f32 %v1285, %v1653
  %v1672 = vadd.f32 %v1290, %v1658
  %v1673 = vadd.f32 %v1295, %v1663
  %v1674 = vadd.f32 %v1300, %v1668
  %1675 = vrot.lane.b32.xlu0 %v392, 104
  %v1676 = vpop.permute.xlu0 %1675
  %1677 = vrot.lane.b32.xlu0 %v393, 104
  %v1678 = vpop.permute.xlu0 %1677
  %1679 = vrot.lane.b32.xlu0 %v394, 104
  %v1680 = vpop.permute.xlu0 %1679
  %1681 = vrot.lane.b32.xlu0 %v395, 104
  %v1682 = vpop.permute.xlu0 %1681
  %1683 = vrot.lane.b32.xlu0 %v471, 104
  %v1684 = vpop.permute.xlu0 %1683
  %1685 = vrot.lane.b32.xlu0 %v476, 104
  %v1686 = vpop.permute.xlu0 %1685
  %1687 = vrot.lane.b32.xlu0 %v481, 104
  %v1688 = vpop.permute.xlu0 %1687
  %1689 = vrot.lane.b32.xlu0 %v486, 104
  %v1690 = vpop.permute.xlu0 %1689
  %v1691 = vsel %vm582, %v1676, 0
  %v1693 = vsel %vm582, %v1678, 0
  %v1695 = vsel %vm582, %v1680, 0
  %v1697 = vsel %vm582, %v1682, 0
  %v1699 = vsel %vm582, %v1684, 0
  %v1701 = vsel %vm582, %v1686, 0
  %v1703 = vsel %vm582, %v1688, 0
  %v1705 = vsel %vm582, %v1690, 0
  %1707 = vmatprep.subr.mxu0 0.0
  %1708 = vmatpush1.xpose.msra.mxu0 %v1699
  %1709 = vmatprep.subr.mxu0 0.0
  %1710 = vmatpush1.xpose.msra.mxu0 %v1701
  %1711 = vmatprep.subr.mxu0 0.0
  %1712 = vmatpush1.xpose.msra.mxu0 %v1703
  %1713 = vmatprep.subr.mxu0 0.0
  %1714 = vmatpush1.xpose.msra.mxu0 %v1705
  %1715 = vmatprep.subr.mxu0 0.0
  %1716 = vmatpush1.xpose.msra.mxu0 0.0
  %1717 = vmatprep.subr.mxu0 0.0
  %1718 = vmatpush1.xpose.msra.mxu0 0.0
  %1719 = vmatprep.subr.mxu0 0.0
  %1720 = vmatpush1.xpose.msra.mxu0 0.0
  %1721 = vmatprep.subr.mxu0 0.0
  %1722 = vmatpush1.xpose.msra.mxu0 0.0
  %1723 = vmatprep.subr.mxu0 0.0
  %1724 = vmatpush1.xpose.msra.mxu0 0.0
  %1725 = vmatprep.subr.mxu0 0.0
  %1726 = vmatpush1.xpose.msra.mxu0 0.0
  %1727 = vmatprep.subr.mxu0 0.0
  %1728 = vmatpush1.xpose.msra.mxu0 0.0
  %1729 = vmatprep.subr.mxu0 0.0
  %1730 = vmatpush1.xpose.msra.mxu0 0.0
  %1731 = vmatprep.subr.mxu0 0.0
  %1732 = vmatpush1.xpose.msra.mxu0 0.0
  %1733 = vmatprep.subr.mxu0 0.0
  %1734 = vmatpush1.xpose.msra.mxu0 0.0
  %1735 = vmatprep.subr.mxu0 0.0
  %1736 = vmatpush1.xpose.msra.mxu0 0.0
  %1737 = vmatprep.subr.mxu0 0.0
  %1738 = vmatpush1.xpose.msra.mxu0 0.0
  %1739 = vmatprep.subr.mxu0 0.0
  %1740 = vmatpush1.xpose.msra.mxu0 0.0
  %1741 = vmatprep.subr.mxu0 0.0
  %1742 = vmatpush1.xpose.msra.mxu0 0.0
  %1743 = vmatprep.subr.mxu0 0.0
  %1744 = vmatpush1.xpose.msra.mxu0 0.0
  %1745 = vmatprep.subr.mxu0 0.0
  %1746 = vmatpush1.xpose.msra.mxu0 0.0
  %1747 = vmatprep.subr.mxu0 0.0
  %1748 = vmatpush1.xpose.msra.mxu0 0.0
  %1749 = vmatprep.subr.mxu0 0.0
  %1750 = vmatpush1.xpose.msra.mxu0 0.0
  %1751 = vmatprep.subr.mxu0 0.0
  %1752 = vmatpush1.xpose.msra.mxu0 0.0
  %1753 = vmatprep.subr.mxu0 0.0
  %1754 = vmatpush1.xpose.msra.mxu0 0.0
  %1755 = vmatprep.subr.mxu0 0.0
  %1756 = vmatpush1.xpose.msra.mxu0 0.0
  %1757 = vmatprep.subr.mxu0 0.0
  %1758 = vmatpush1.xpose.msra.mxu0 0.0
  %1759 = vmatprep.subr.mxu0 0.0
  %1760 = vmatpush1.xpose.msra.mxu0 0.0
  %1761 = vmatprep.subr.mxu0 0.0
  %1762 = vmatpush1.xpose.msra.mxu0 0.0
  %1763 = vmatprep.subr.mxu0 0.0
  %1764 = vmatpush1.xpose.msra.mxu0 0.0
  %1765 = vmatprep.subr.mxu0 0.0
  %1766 = vmatpush1.xpose.msra.mxu0 0.0
  %1767 = vmatprep.subr.mxu0 0.0
  %1768 = vmatpush1.xpose.msra.mxu0 0.0
  %1769 = vmatprep.subr.mxu0 0.0
  %1770 = vmatpush1.xpose.msra.mxu0 0.0
  %1771 = vmatprep.mubr.f32.mxu0 0.0
  %1772 = vmatmul.mubr.f32.gmra.mrb[0].mxu0 %v1691
  %v1773 = vpop.f32.mrb[0].mxu0
  %v1774 = vadd.f32 %v274, %v1773
  %v1775 = vpop.f32.mrb[0].mxu0
  %1776 = vmatprep.mubr.f32.mxu0 0.0
  %1777 = vmatmul.mubr.f32.gmra.mrb[0].mxu0 %v1693
  %v1778 = vpop.f32.mrb[0].mxu0
  %v1779 = vadd.f32 %v275, %v1778
  %v1780 = vpop.f32.mrb[0].mxu0
  %1781 = vmatprep.mubr.f32.mxu0 0.0
  %1782 = vmatmul.mubr.f32.gmra.mrb[0].mxu0 %v1695
  %v1783 = vpop.f32.mrb[0].mxu0
  %v1784 = vadd.f32 %v276, %v1783
  %v1785 = vpop.f32.mrb[0].mxu0
  %1786 = vmatprep.mubr.f32.mxu0 0.0
  %1787 = vmatmul.mubr.f32.gmra.mrb[0].mxu0 %v1697
  %v1788 = vpop.f32.mrb[0].mxu0
  %v1789 = vadd.f32 %v277, %v1788
  %v1790 = vpop.f32.mrb[0].mxu0
  %1791 = vdwg.mxu0
  %v1792 = vsel %vm133, %v1774, -inf
  %1793 = vmax.xlane.f32.xlu0 %v1792
  %v1794 = vpop.xlane.xlu0 %1793
  %v1795 = vsel %vm133, %v1779, -inf
  %1796 = vmax.xlane.f32.xlu0 %v1795
  %v1797 = vpop.xlane.xlu0 %1796
  %v1798 = vsel %vm133, %v1784, -inf
  %1799 = vmax.xlane.f32.xlu0 %v1798
  %v1800 = vpop.xlane.xlu0 %1799
  %v1801 = vsel %vm133, %v1789, -inf
  %1802 = vmax.xlane.f32.xlu0 %v1801
  %v1803 = vpop.xlane.xlu0 %1802
  %v1804 = vsub.f32 %v1774, %v1794
  %v1805 = vsub.f32 %v1779, %v1797
  %v1806 = vsub.f32 %v1784, %v1800
  %v1807 = vsub.f32 %v1789, %v1803
  %v1808 = vmul.f32 %v1804, 1.442695
  %v1809 = vpow.pop %v1808
  %v1810 = vmul.f32 %v1805, 1.442695
  %v1811 = vpow.pop %v1810
  %v1812 = vmul.f32 %v1806, 1.442695
  %v1813 = vpow.pop %v1812
  %v1814 = vmul.f32 %v1807, 1.442695
  %v1815 = vpow.pop %v1814
  %v1816 = vsel %vm133, %v1809, 0.0
  %1817 = vadd.xlane.f32.xlu0 %v1816
  %v1818 = vpop.xlane.xlu0 %1817
  %v1819 = vsel %vm133, %v1811, 0.0
  %1820 = vadd.xlane.f32.xlu0 %v1819
  %v1821 = vpop.xlane.xlu0 %1820
  %v1822 = vsel %vm133, %v1813, 0.0
  %1823 = vadd.xlane.f32.xlu0 %v1822
  %v1824 = vpop.xlane.xlu0 %1823
  %v1825 = vsel %vm133, %v1815, 0.0
  %1826 = vadd.xlane.f32.xlu0 %v1825
  %v1827 = vpop.xlane.xlu0 %1826
  %v1828 = vrcp.pop %v1818
  %v1829 = vrcp.pop %v1821
  %v1830 = vrcp.pop %v1824
  %v1831 = vrcp.pop %v1827
  %v1832 = vmul.f32 %v1809, %v1828
  %v1833 = vmul.f32 %v1811, %v1829
  %v1834 = vmul.f32 %v1813, %v1830
  %v1835 = vmul.f32 %v1815, %v1831
  %1836 = vrot.lane.b32.xlu0 %v564, 104
  %v1837 = vpop.permute.xlu0 %1836
  %1838 = vrot.lane.b32.xlu0 %v569, 104
  %v1839 = vpop.permute.xlu0 %1838
  %1840 = vrot.lane.b32.xlu0 %v574, 104
  %v1841 = vpop.permute.xlu0 %1840
  %1842 = vrot.lane.b32.xlu0 %v579, 104
  %v1843 = vpop.permute.xlu0 %1842
  %v1849 = vsel %vm133, %v1832, 0
  %v1852 = vsel %vm133, %v1833, 0
  %v1855 = vsel %vm133, %v1834, 0
  %v1858 = vsel %vm133, %v1835, 0
  %1860 = vmatprep.subr.mxu0 0.0
  %1861 = vmatpush1.msra.mxu0 %v1837
  %1862 = vmatprep.subr.mxu0 0.0
  %1863 = vmatpush1.msra.mxu0 %v1839
  %1864 = vmatprep.subr.mxu0 0.0
  %1865 = vmatpush1.msra.mxu0 %v1841
  %1866 = vmatprep.subr.mxu0 0.0
  %1867 = vmatpush1.msra.mxu0 %v1843
  %1868 = vmatprep.subr.mxu0 0.0
  %1869 = vmatpush1.msra.mxu0 0.0
  %1870 = vmatprep.subr.mxu0 0.0
  %1871 = vmatpush1.msra.mxu0 0.0
  %1872 = vmatprep.subr.mxu0 0.0
  %1873 = vmatpush1.msra.mxu0 0.0
  %1874 = vmatprep.subr.mxu0 0.0
  %1875 = vmatpush1.msra.mxu0 0.0
  %1876 = vmatprep.subr.mxu0 0.0
  %1877 = vmatpush1.msra.mxu0 0.0
  %1878 = vmatprep.subr.mxu0 0.0
  %1879 = vmatpush1.msra.mxu0 0.0
  %1880 = vmatprep.subr.mxu0 0.0
  %1881 = vmatpush1.msra.mxu0 0.0
  %1882 = vmatprep.subr.mxu0 0.0
  %1883 = vmatpush1.msra.mxu0 0.0
  %1884 = vmatprep.subr.mxu0 0.0
  %1885 = vmatpush1.msra.mxu0 0.0
  %1886 = vmatprep.subr.mxu0 0.0
  %1887 = vmatpush1.msra.mxu0 0.0
  %1888 = vmatprep.subr.mxu0 0.0
  %1889 = vmatpush1.msra.mxu0 0.0
  %1890 = vmatprep.subr.mxu0 0.0
  %1891 = vmatpush1.msra.mxu0 0.0
  %1892 = vmatprep.subr.mxu0 0.0
  %1893 = vmatpush1.msra.mxu0 0.0
  %1894 = vmatprep.subr.mxu0 0.0
  %1895 = vmatpush1.msra.mxu0 0.0
  %1896 = vmatprep.subr.mxu0 0.0
  %1897 = vmatpush1.msra.mxu0 0.0
  %1898 = vmatprep.subr.mxu0 0.0
  %1899 = vmatpush1.msra.mxu0 0.0
  %1900 = vmatprep.subr.mxu0 0.0
  %1901 = vmatpush1.msra.mxu0 0.0
  %1902 = vmatprep.subr.mxu0 0.0
  %1903 = vmatpush1.msra.mxu0 0.0
  %1904 = vmatprep.subr.mxu0 0.0
  %1905 = vmatpush1.msra.mxu0 0.0
  %1906 = vmatprep.subr.mxu0 0.0
  %1907 = vmatpush1.msra.mxu0 0.0
  %1908 = vmatprep.subr.mxu0 0.0
  %1909 = vmatpush1.msra.mxu0 0.0
  %1910 = vmatprep.subr.mxu0 0.0
  %1911 = vmatpush1.msra.mxu0 0.0
  %1912 = vmatprep.subr.mxu0 0.0
  %1913 = vmatpush1.msra.mxu0 0.0
  %1914 = vmatprep.subr.mxu0 0.0
  %1915 = vmatpush1.msra.mxu0 0.0
  %1916 = vmatprep.subr.mxu0 0.0
  %1917 = vmatpush1.msra.mxu0 0.0
  %1918 = vmatprep.subr.mxu0 0.0
  %1919 = vmatpush1.msra.mxu0 0.0
  %1920 = vmatprep.subr.mxu0 0.0
  %1921 = vmatpush1.msra.mxu0 0.0
  %1922 = vmatprep.subr.mxu0 0.0
  %1923 = vmatpush1.msra.mxu0 0.0
  %1924 = vmatprep.mubr.f32.mxu0 0.0
  %1925 = vmatmul.mubr.f32.gmra.mrb[0].mxu0 %v1849
  %v1926 = vpop.f32.mrb[0].mxu0
  %v1927 = vadd.f32 0.0, %v1926
  %v1928 = vpop.f32.mrb[0].mxu0
  %1929 = vmatprep.mubr.f32.mxu0 0.0
  %1930 = vmatmul.mubr.f32.gmra.mrb[0].mxu0 %v1852
  %v1931 = vpop.f32.mrb[0].mxu0
  %v1932 = vadd.f32 0.0, %v1931
  %v1933 = vpop.f32.mrb[0].mxu0
  %1934 = vmatprep.mubr.f32.mxu0 0.0
  %1935 = vmatmul.mubr.f32.gmra.mrb[0].mxu0 %v1855
  %v1936 = vpop.f32.mrb[0].mxu0
  %v1937 = vadd.f32 0.0, %v1936
  %v1938 = vpop.f32.mrb[0].mxu0
  %1939 = vmatprep.mubr.f32.mxu0 0.0
  %1940 = vmatmul.mubr.f32.gmra.mrb[0].mxu0 %v1858
  %v1941 = vpop.f32.mrb[0].mxu0
  %v1942 = vadd.f32 0.0, %v1941
  %v1943 = vpop.f32.mrb[0].mxu0
  %1944 = vdwg.mxu0
  %v1945 = vld [vmem:[%s1 + $0xc0] sm:$0xff]
  %v1947 = vsel %vm582, %v1927, 0
  %v1950 = vsel %vm582, %v1932, 0
  %v1953 = vsel %vm582, %v1937, 0
  %v1956 = vsel %vm582, %v1942, 0
  %1958 = vmatprep.subr.mxu0 0.0
  %1959 = vmatpush1.msra.mxu0 %v1945
  %1960 = vmatprep.subr.mxu0 0.0
  %1961 = vmatpush1.msra.mxu0 0.0
  %1962 = vmatprep.subr.mxu0 0.0
  %1963 = vmatpush1.msra.mxu0 0.0
  %1964 = vmatprep.subr.mxu0 0.0
  %1965 = vmatpush1.msra.mxu0 0.0
  %1966 = vmatprep.subr.mxu0 0.0
  %1967 = vmatpush1.msra.mxu0 0.0
  %1968 = vmatprep.subr.mxu0 0.0
  %1969 = vmatpush1.msra.mxu0 0.0
  %1970 = vmatprep.subr.mxu0 0.0
  %1971 = vmatpush1.msra.mxu0 0.0
  %1972 = vmatprep.subr.mxu0 0.0
  %1973 = vmatpush1.msra.mxu0 0.0
  %1974 = vmatprep.subr.mxu0 0.0
  %1975 = vmatpush1.msra.mxu0 0.0
  %1976 = vmatprep.subr.mxu0 0.0
  %1977 = vmatpush1.msra.mxu0 0.0
  %1978 = vmatprep.subr.mxu0 0.0
  %1979 = vmatpush1.msra.mxu0 0.0
  %1980 = vmatprep.subr.mxu0 0.0
  %1981 = vmatpush1.msra.mxu0 0.0
  %1982 = vmatprep.subr.mxu0 0.0
  %1983 = vmatpush1.msra.mxu0 0.0
  %1984 = vmatprep.subr.mxu0 0.0
  %1985 = vmatpush1.msra.mxu0 0.0
  %1986 = vmatprep.subr.mxu0 0.0
  %1987 = vmatpush1.msra.mxu0 0.0
  %1988 = vmatprep.subr.mxu0 0.0
  %1989 = vmatpush1.msra.mxu0 0.0
  %1990 = vmatprep.subr.mxu0 0.0
  %1991 = vmatpush1.msra.mxu0 0.0
  %1992 = vmatprep.subr.mxu0 0.0
  %1993 = vmatpush1.msra.mxu0 0.0
  %1994 = vmatprep.subr.mxu0 0.0
  %1995 = vmatpush1.msra.mxu0 0.0
  %1996 = vmatprep.subr.mxu0 0.0
  %1997 = vmatpush1.msra.mxu0 0.0
  %1998 = vmatprep.subr.mxu0 0.0
  %1999 = vmatpush1.msra.mxu0 0.0
  %2000 = vmatprep.subr.mxu0 0.0
  %2001 = vmatpush1.msra.mxu0 0.0
  %2002 = vmatprep.subr.mxu0 0.0
  %2003 = vmatpush1.msra.mxu0 0.0
  %2004 = vmatprep.subr.mxu0 0.0
  %2005 = vmatpush1.msra.mxu0 0.0
  %2006 = vmatprep.subr.mxu0 0.0
  %2007 = vmatpush1.msra.mxu0 0.0
  %2008 = vmatprep.subr.mxu0 0.0
  %2009 = vmatpush1.msra.mxu0 0.0
  %2010 = vmatprep.subr.mxu0 0.0
  %2011 = vmatpush1.msra.mxu0 0.0
  %2012 = vmatprep.subr.mxu0 0.0
  %2013 = vmatpush1.msra.mxu0 0.0
  %2014 = vmatprep.subr.mxu0 0.0
  %2015 = vmatpush1.msra.mxu0 0.0
  %2016 = vmatprep.subr.mxu0 0.0
  %2017 = vmatpush1.msra.mxu0 0.0
  %2018 = vmatprep.subr.mxu0 0.0
  %2019 = vmatpush1.msra.mxu0 0.0
  %2020 = vmatprep.subr.mxu0 0.0
  %2021 = vmatpush1.msra.mxu0 0.0
  %2022 = vmatprep.mubr.f32.mxu0 0.0
  %2023 = vmatmul.mubr.f32.gmra.mrb[0].mxu0 %v1947
  %v2024 = vpop.f32.mrb[0].mxu0
  %v2025 = vadd.f32 0.0, %v2024
  %v2026 = vpop.f32.mrb[0].mxu0
  %2027 = vmatprep.mubr.f32.mxu0 0.0
  %2028 = vmatmul.mubr.f32.gmra.mrb[0].mxu0 %v1950
  %v2029 = vpop.f32.mrb[0].mxu0
  %v2030 = vadd.f32 0.0, %v2029
  %v2031 = vpop.f32.mrb[0].mxu0
  %2032 = vmatprep.mubr.f32.mxu0 0.0
  %2033 = vmatmul.mubr.f32.gmra.mrb[0].mxu0 %v1953
  %v2034 = vpop.f32.mrb[0].mxu0
  %v2035 = vadd.f32 0.0, %v2034
  %v2036 = vpop.f32.mrb[0].mxu0
  %2037 = vmatprep.mubr.f32.mxu0 0.0
  %2038 = vmatmul.mubr.f32.gmra.mrb[0].mxu0 %v1956
  %v2039 = vpop.f32.mrb[0].mxu0
  %v2040 = vadd.f32 0.0, %v2039
  %v2041 = vpop.f32.mrb[0].mxu0
  %2042 = vdwg.mxu0
  %v2043 = vadd.f32 %v1671, %v2025
  %v2044 = vadd.f32 %v1672, %v2030
  %v2045 = vadd.f32 %v1673, %v2035
  %v2046 = vadd.f32 %v1674, %v2040
  %v2047 = vlaneseq
  %v2048 = vshrl.u32 %v2047, 7
  %v2049 = vsub.s32 0, %v2048
  %v2050 = vrot.slane %v281, %v2049
  %v2051 = vadd.f32 %v2043, %v2050
  %v2052 = vadd.f32 %v2044, %v2050
  %v2053 = vadd.f32 %v2045, %v2050
  %v2054 = vadd.f32 %v2046, %v2050
  %v2055 = vadd.f32 %v199, %v2051
  %v2056 = vadd.f32 %v200, %v2052
  %v2057 = vadd.f32 %v201, %v2053
  %v2058 = vadd.f32 %v202, %v2054
  %v2059 = vsel %vm133, %v2055, 0.0
  %2060 = vadd.xlane.f32.xlu0 %v2059
  %v2061 = vpop.xlane.xlu0 %2060
  %v2062 = vsel %vm133, %v2056, 0.0
  %2063 = vadd.xlane.f32.xlu0 %v2062
  %v2064 = vpop.xlane.xlu0 %2063
  %v2065 = vsel %vm133, %v2057, 0.0
  %2066 = vadd.xlane.f32.xlu0 %v2065
  %v2067 = vpop.xlane.xlu0 %2066
  %v2068 = vsel %vm133, %v2058, 0.0
  %2069 = vadd.xlane.f32.xlu0 %v2068
  %v2070 = vpop.xlane.xlu0 %2069
  %v2071 = vmul.f32 %v2061, %v146
  %v2072 = vmul.f32 %v2064, %v146
  %v2073 = vmul.f32 %v2067, %v146
  %v2074 = vmul.f32 %v2070, %v146
  %v2075 = vsub.f32 %v2055, %v2071
  %v2076 = vsub.f32 %v2056, %v2072
  %v2077 = vsub.f32 %v2057, %v2073
  %v2078 = vsub.f32 %v2058, %v2074
  %v2079 = vmul.f32 %v2075, %v2075
  %v2080 = vmul.f32 %v2076, %v2076
  %v2081 = vmul.f32 %v2077, %v2077
  %v2082 = vmul.f32 %v2078, %v2078
  %v2083 = vsel %vm133, %v2079, 0.0
  %2084 = vadd.xlane.f32.xlu0 %v2083
  %v2085 = vpop.xlane.xlu0 %2084
  %v2086 = vsel %vm133, %v2080, 0.0
  %2087 = vadd.xlane.f32.xlu0 %v2086
  %v2088 = vpop.xlane.xlu0 %2087
  %v2089 = vsel %vm133, %v2081, 0.0
  %2090 = vadd.xlane.f32.xlu0 %v2089
  %v2091 = vpop.xlane.xlu0 %2090
  %v2092 = vsel %vm133, %v2082, 0.0
  %2093 = vadd.xlane.f32.xlu0 %v2092
  %v2094 = vpop.xlane.xlu0 %2093
  %v2095 = vmul.f32 %v2085, %v146
  %v2096 = vmul.f32 %v2088, %v146
  %v2097 = vmul.f32 %v2091, %v146
  %v2098 = vmul.f32 %v2094, %v146
  %v2099 = vadd.f32 %v2095, 1e-05
  %v2100 = vadd.f32 %v2096, 1e-05
  %v2101 = vadd.f32 %v2097, 1e-05
  %v2102 = vadd.f32 %v2098, 1e-05
  %v2103 = vrsqrt.pop %v2099
  %v2104 = vrsqrt.pop %v2100
  %v2105 = vrsqrt.pop %v2101
  %v2106 = vrsqrt.pop %v2102
  %v2107 = vmul.f32 %v2075, %v2103
  %v2108 = vmul.f32 %v2076, %v2104
  %v2109 = vmul.f32 %v2077, %v2105
  %v2110 = vmul.f32 %v2078, %v2106
  %v2111 = vlaneseq
  %v2112 = vshrl.u32 %v2111, 7
  %v2113 = vsub.s32 0, %v2112
  %v2114 = vrot.slane %v283, %v2113
  %v2115 = vmul.f32 %v2107, %v2114
  %v2116 = vmul.f32 %v2108, %v2114
  %v2117 = vmul.f32 %v2109, %v2114
  %v2118 = vmul.f32 %v2110, %v2114
  %v2119 = vlaneseq
  %v2120 = vshrl.u32 %v2119, 7
  %v2121 = vsub.s32 0, %v2120
  %v2122 = vrot.slane %v284, %v2121
  %v2123 = vadd.f32 %v2115, %v2122
  %v2124 = vadd.f32 %v2116, %v2122
  %v2125 = vadd.f32 %v2117, %v2122
  %v2126 = vadd.f32 %v2118, %v2122
  %v2127 = vld [vmem:[%s2] sm:$0xff]
  %v2128 = vld [vmem:[%s2 + $0x8] sm:$0xff]
  %v2129 = vld [vmem:[%s2 + $0x10] sm:$0xff]
  %v2130 = vld [vmem:[%s2 + $0x18] sm:$0xff]
  %v2131 = vld [vmem:[%s2 + $0x20] sm:$0x1]
  %v2132 = vlaneseq
  %v2133 = vshrl.u32 %v2132, 7
  %v2134 = vsub.s32 0, %v2133
  %v2135 = vrot.slane %v2131, %v2134
  %v2137 = vsel %vm133, %v2123, 0
  %v2140 = vsel %vm133, %v2124, 0
  %v2143 = vsel %vm133, %v2125, 0
  %v2146 = vsel %vm133, %v2126, 0
  %2148 = vmatprep.subr.mxu0 0.0
  %2149 = vmatpush1.msra.mxu0 %v2127
  %2150 = vmatprep.subr.mxu0 0.0
  %2151 = vmatpush1.msra.mxu0 %v2128
  %2152 = vmatprep.subr.mxu0 0.0
  %2153 = vmatpush1.msra.mxu0 %v2129
  %2154 = vmatprep.subr.mxu0 0.0
  %2155 = vmatpush1.msra.mxu0 %v2130
  %2156 = vmatprep.subr.mxu0 0.0
  %2157 = vmatpush1.msra.mxu0 0.0
  %2158 = vmatprep.subr.mxu0 0.0
  %2159 = vmatpush1.msra.mxu0 0.0
  %2160 = vmatprep.subr.mxu0 0.0
  %2161 = vmatpush1.msra.mxu0 0.0
  %2162 = vmatprep.subr.mxu0 0.0
  %2163 = vmatpush1.msra.mxu0 0.0
  %2164 = vmatprep.subr.mxu0 0.0
  %2165 = vmatpush1.msra.mxu0 0.0
  %2166 = vmatprep.subr.mxu0 0.0
  %2167 = vmatpush1.msra.mxu0 0.0
  %2168 = vmatprep.subr.mxu0 0.0
  %2169 = vmatpush1.msra.mxu0 0.0
  %2170 = vmatprep.subr.mxu0 0.0
  %2171 = vmatpush1.msra.mxu0 0.0
  %2172 = vmatprep.subr.mxu0 0.0
  %2173 = vmatpush1.msra.mxu0 0.0
  %2174 = vmatprep.subr.mxu0 0.0
  %2175 = vmatpush1.msra.mxu0 0.0
  %2176 = vmatprep.subr.mxu0 0.0
  %2177 = vmatpush1.msra.mxu0 0.0
  %2178 = vmatprep.subr.mxu0 0.0
  %2179 = vmatpush1.msra.mxu0 0.0
  %2180 = vmatprep.subr.mxu0 0.0
  %2181 = vmatpush1.msra.mxu0 0.0
  %2182 = vmatprep.subr.mxu0 0.0
  %2183 = vmatpush1.msra.mxu0 0.0
  %2184 = vmatprep.subr.mxu0 0.0
  %2185 = vmatpush1.msra.mxu0 0.0
  %2186 = vmatprep.subr.mxu0 0.0
  %2187 = vmatpush1.msra.mxu0 0.0
  %2188 = vmatprep.subr.mxu0 0.0
  %2189 = vmatpush1.msra.mxu0 0.0
  %2190 = vmatprep.subr.mxu0 0.0
  %2191 = vmatpush1.msra.mxu0 0.0
  %2192 = vmatprep.subr.mxu0 0.0
  %2193 = vmatpush1.msra.mxu0 0.0
  %2194 = vmatprep.subr.mxu0 0.0
  %2195 = vmatpush1.msra.mxu0 0.0
  %2196 = vmatprep.subr.mxu0 0.0
  %2197 = vmatpush1.msra.mxu0 0.0
  %2198 = vmatprep.subr.mxu0 0.0
  %2199 = vmatpush1.msra.mxu0 0.0
  %2200 = vmatprep.subr.mxu0 0.0
  %2201 = vmatpush1.msra.mxu0 0.0
  %2202 = vmatprep.subr.mxu0 0.0
  %2203 = vmatpush1.msra.mxu0 0.0
  %2204 = vmatprep.subr.mxu0 0.0
  %2205 = vmatpush1.msra.mxu0 0.0
  %2206 = vmatprep.subr.mxu0 0.0
  %2207 = vmatpush1.msra.mxu0 0.0
  %2208 = vmatprep.subr.mxu0 0.0
  %2209 = vmatpush1.msra.mxu0 0.0
  %2210 = vmatprep.subr.mxu0 0.0
  %2211 = vmatpush1.msra.mxu0 0.0
  %2212 = vmatprep.mubr.f32.mxu0 0.0
  %2213 = vmatmul.mubr.f32.gmra.mrb[0].mxu0 %v2137
  %v2214 = vpop.f32.mrb[0].mxu0
  %v2215 = vadd.f32 %v2135, %v2214
  %v2216 = vpop.f32.mrb[0].mxu0
  %2217 = vmatprep.mubr.f32.mxu0 0.0
  %2218 = vmatmul.mubr.f32.gmra.mrb[0].mxu0 %v2140
  %v2219 = vpop.f32.mrb[0].mxu0
  %v2220 = vadd.f32 %v2135, %v2219
  %v2221 = vpop.f32.mrb[0].mxu0
  %2222 = vmatprep.mubr.f32.mxu0 0.0
  %2223 = vmatmul.mubr.f32.gmra.mrb[0].mxu0 %v2143
  %v2224 = vpop.f32.mrb[0].mxu0
  %v2225 = vadd.f32 %v2135, %v2224
  %v2226 = vpop.f32.mrb[0].mxu0
  %2227 = vmatprep.mubr.f32.mxu0 0.0
  %2228 = vmatmul.mubr.f32.gmra.mrb[0].mxu0 %v2146
  %v2229 = vpop.f32.mrb[0].mxu0
  %v2230 = vadd.f32 %v2135, %v2229
  %v2231 = vpop.f32.mrb[0].mxu0
  %2232 = vdwg.mxu0
  %v2233 = vmax.f32 %v2215, 0.0
  %v2234 = vmax.f32 %v2220, 0.0
  %v2235 = vmax.f32 %v2225, 0.0
  %v2236 = vmax.f32 %v2230, 0.0
  %v2237 = vld [vmem:[%s1 + $0xc8] sm:$0xff]
  %v2238 = vld [vmem:[%s1 + $0xd0] sm:$0xff]
  %v2239 = vld [vmem:[%s1 + $0xd8] sm:$0xff]
  %v2240 = vld [vmem:[%s1 + $0xe0] sm:$0xff]
  %v2241 = vld [vmem:[%s1 + $0xe8] sm:$0xff]
  %v2242 = vld [vmem:[%s1 + $0xf0] sm:$0xff]
  %v2243 = vld [vmem:[%s1 + $0xf8] sm:$0xff]
  %v2244 = vld [vmem:[%s1 + $0x100] sm:$0xff]
  %v2245 = vlaneseq
  %v2246 = vshrl.u32 %v2245, 7
  %v2247 = vsub.s32 0, %v2246
  %v2248 = vrot.slane %v282, %v2247
  %vm2249 = vcmask 523264
  %v2251 = vsel %vm2249, %v2233, 0
  %v2254 = vsel %vm2249, %v2234, 0
  %v2257 = vsel %vm2249, %v2235, 0
  %v2260 = vsel %vm2249, %v2236, 0
  %2262 = vmatprep.subr.mxu0 0.0
  %2263 = vmatpush1.msra.mxu0 %v2237
  %2264 = vmatprep.subr.mxu0 0.0
  %2265 = vmatpush1.msra.mxu0 %v2238
  %2266 = vmatprep.subr.mxu0 0.0
  %2267 = vmatpush1.msra.mxu0 %v2239
  %2268 = vmatprep.subr.mxu0 0.0
  %2269 = vmatpush1.msra.mxu0 %v2240
  %2270 = vmatprep.subr.mxu0 0.0
  %2271 = vmatpush1.msra.mxu0 %v2241
  %2272 = vmatprep.subr.mxu0 0.0
  %2273 = vmatpush1.msra.mxu0 %v2242
  %2274 = vmatprep.subr.mxu0 0.0
  %2275 = vmatpush1.msra.mxu0 %v2243
  %2276 = vmatprep.subr.mxu0 0.0
  %2277 = vmatpush1.msra.mxu0 %v2244
  %2278 = vmatprep.subr.mxu0 0.0
  %2279 = vmatpush1.msra.mxu0 0.0
  %2280 = vmatprep.subr.mxu0 0.0
  %2281 = vmatpush1.msra.mxu0 0.0
  %2282 = vmatprep.subr.mxu0 0.0
  %2283 = vmatpush1.msra.mxu0 0.0
  %2284 = vmatprep.subr.mxu0 0.0
  %2285 = vmatpush1.msra.mxu0 0.0
  %2286 = vmatprep.subr.mxu0 0.0
  %2287 = vmatpush1.msra.mxu0 0.0
  %2288 = vmatprep.subr.mxu0 0.0
  %2289 = vmatpush1.msra.mxu0 0.0
  %2290 = vmatprep.subr.mxu0 0.0
  %2291 = vmatpush1.msra.mxu0 0.0
  %2292 = vmatprep.subr.mxu0 0.0
  %2293 = vmatpush1.msra.mxu0 0.0
  %2294 = vmatprep.subr.mxu0 0.0
  %2295 = vmatpush1.msra.mxu0 0.0
  %2296 = vmatprep.subr.mxu0 0.0
  %2297 = vmatpush1.msra.mxu0 0.0
  %2298 = vmatprep.subr.mxu0 0.0
  %2299 = vmatpush1.msra.mxu0 0.0
  %2300 = vmatprep.subr.mxu0 0.0
  %2301 = vmatpush1.msra.mxu0 0.0
  %2302 = vmatprep.subr.mxu0 0.0
  %2303 = vmatpush1.msra.mxu0 0.0
  %2304 = vmatprep.subr.mxu0 0.0
  %2305 = vmatpush1.msra.mxu0 0.0
  %2306 = vmatprep.subr.mxu0 0.0
  %2307 = vmatpush1.msra.mxu0 0.0
  %2308 = vmatprep.subr.mxu0 0.0
  %2309 = vmatpush1.msra.mxu0 0.0
  %2310 = vmatprep.subr.mxu0 0.0
  %2311 = vmatpush1.msra.mxu0 0.0
  %2312 = vmatprep.subr.mxu0 0.0
  %2313 = vmatpush1.msra.mxu0 0.0
  %2314 = vmatprep.subr.mxu0 0.0
  %2315 = vmatpush1.msra.mxu0 0.0
  %2316 = vmatprep.subr.mxu0 0.0
  %2317 = vmatpush1.msra.mxu0 0.0
  %2318 = vmatprep.subr.mxu0 0.0
  %2319 = vmatpush1.msra.mxu0 0.0
  %2320 = vmatprep.subr.mxu0 0.0
  %2321 = vmatpush1.msra.mxu0 0.0
  %2322 = vmatprep.subr.mxu0 0.0
  %2323 = vmatpush1.msra.mxu0 0.0
  %2324 = vmatprep.subr.mxu0 0.0
  %2325 = vmatpush1.msra.mxu0 0.0
  %2326 = vmatprep.mubr.f32.mxu0 0.0
  %2327 = vmatmul.mubr.f32.gmra.mrb[0].mxu0 %v2251
  %v2328 = vpop.f32.mrb[0].mxu0
  %v2329 = vadd.f32 %v2248, %v2328
  %v2330 = vpop.f32.mrb[0].mxu0
  %2331 = vmatprep.mubr.f32.mxu0 0.0
  %2332 = vmatmul.mubr.f32.gmra.mrb[0].mxu0 %v2254
  %v2333 = vpop.f32.mrb[0].mxu0
  %v2334 = vadd.f32 %v2248, %v2333
  %v2335 = vpop.f32.mrb[0].mxu0
  %2336 = vmatprep.mubr.f32.mxu0 0.0
  %2337 = vmatmul.mubr.f32.gmra.mrb[0].mxu0 %v2257
  %v2338 = vpop.f32.mrb[0].mxu0
  %v2339 = vadd.f32 %v2248, %v2338
  %v2340 = vpop.f32.mrb[0].mxu0
  %2341 = vmatprep.mubr.f32.mxu0 0.0
  %2342 = vmatmul.mubr.f32.gmra.mrb[0].mxu0 %v2260
  %v2343 = vpop.f32.mrb[0].mxu0
  %v2344 = vadd.f32 %v2248, %v2343
  %v2345 = vpop.f32.mrb[0].mxu0
  %2346 = vdwg.mxu0
  %v2347 = vadd.f32 %v2123, %v2329
  %v2348 = vadd.f32 %v2124, %v2334
  %v2349 = vadd.f32 %v2125, %v2339
  %v2350 = vadd.f32 %v2126, %v2344
  %v2351 = vsel %vm133, %v2347, 0.0
  %2352 = vadd.xlane.f32.xlu0 %v2351
  %v2353 = vpop.xlane.xlu0 %2352
  %v2354 = vsel %vm133, %v2348, 0.0
  %2355 = vadd.xlane.f32.xlu0 %v2354
  %v2356 = vpop.xlane.xlu0 %2355
  %v2357 = vsel %vm133, %v2349, 0.0
  %2358 = vadd.xlane.f32.xlu0 %v2357
  %v2359 = vpop.xlane.xlu0 %2358
  %v2360 = vsel %vm133, %v2350, 0.0
  %2361 = vadd.xlane.f32.xlu0 %v2360
  %v2362 = vpop.xlane.xlu0 %2361
  %v2363 = vmul.f32 %v2353, %v146
  %v2364 = vmul.f32 %v2356, %v146
  %v2365 = vmul.f32 %v2359, %v146
  %v2366 = vmul.f32 %v2362, %v146
  %v2367 = vsub.f32 %v2347, %v2363
  %v2368 = vsub.f32 %v2348, %v2364
  %v2369 = vsub.f32 %v2349, %v2365
  %v2370 = vsub.f32 %v2350, %v2366
  %v2371 = vmul.f32 %v2367, %v2367
  %v2372 = vmul.f32 %v2368, %v2368
  %v2373 = vmul.f32 %v2369, %v2369
  %v2374 = vmul.f32 %v2370, %v2370
  %v2375 = vsel %vm133, %v2371, 0.0
  %2376 = vadd.xlane.f32.xlu0 %v2375
  %v2377 = vpop.xlane.xlu0 %2376
  %v2378 = vsel %vm133, %v2372, 0.0
  %2379 = vadd.xlane.f32.xlu0 %v2378
  %v2380 = vpop.xlane.xlu0 %2379
  %v2381 = vsel %vm133, %v2373, 0.0
  %2382 = vadd.xlane.f32.xlu0 %v2381
  %v2383 = vpop.xlane.xlu0 %2382
  %v2384 = vsel %vm133, %v2374, 0.0
  %2385 = vadd.xlane.f32.xlu0 %v2384
  %v2386 = vpop.xlane.xlu0 %2385
  %v2387 = vmul.f32 %v2377, %v146
  %v2388 = vmul.f32 %v2380, %v146
  %v2389 = vmul.f32 %v2383, %v146
  %v2390 = vmul.f32 %v2386, %v146
  %v2391 = vadd.f32 %v2387, 1e-05
  %v2392 = vadd.f32 %v2388, 1e-05
  %v2393 = vadd.f32 %v2389, 1e-05
  %v2394 = vadd.f32 %v2390, 1e-05
  %v2395 = vrsqrt.pop %v2391
  %v2396 = vrsqrt.pop %v2392
  %v2397 = vrsqrt.pop %v2393
  %v2398 = vrsqrt.pop %v2394
  %v2399 = vmul.f32 %v2367, %v2395
  %v2400 = vmul.f32 %v2368, %v2396
  %v2401 = vmul.f32 %v2369, %v2397
  %v2402 = vmul.f32 %v2370, %v2398
  %v2403 = vlaneseq
  %v2404 = vshrl.u32 %v2403, 7
  %v2405 = vsub.s32 0, %v2404
  %v2406 = vrot.slane %v285, %v2405
  %v2407 = vmul.f32 %v2399, %v2406
  %v2408 = vmul.f32 %v2400, %v2406
  %v2409 = vmul.f32 %v2401, %v2406
  %v2410 = vmul.f32 %v2402, %v2406
  %v2411 = vlaneseq
  %v2412 = vshrl.u32 %v2411, 7
  %v2413 = vsub.s32 0, %v2412
  %v2414 = vrot.slane %v286, %v2413
  %v2415 = vadd.f32 %v2407, %v2414
  %v2416 = vadd.f32 %v2408, %v2414
  %v2417 = vadd.f32 %v2409, %v2414
  %v2418 = vadd.f32 %v2410, %v2414
  %v2419 = vld [vmem:[%s1 + $0x3e] sm:$0x1]
  %v2420 = vld [vmem:[%s1 + $0x3f] sm:$0x1]
  %v2421 = vld [vmem:[%s1 + $0x40] sm:$0x1]
  %v2422 = vld [vmem:[%s1 + $0x41] sm:$0x1]
  %v2423 = vld [vmem:[%s1 + $0x42] sm:$0x1]
  %v2424 = vld [vmem:[%s1 + $0x43] sm:$0x1]
  %v2425 = vld [vmem:[%s1 + $0x44] sm:$0x1]
  %v2426 = vld [vmem:[%s1 + $0x45] sm:$0x1]
  %v2427 = vld [vmem:[%s1 + $0x46] sm:$0x1]
  %v2428 = vld [vmem:[%s1 + $0x108] sm:$0xff]
  %v2429 = vld [vmem:[%s1 + $0x110] sm:$0xff]
  %v2430 = vld [vmem:[%s1 + $0x118] sm:$0xff]
  %v2431 = vld [vmem:[%s1 + $0x120] sm:$0xff]
  %v2432 = vlaneseq
  %v2433 = vshrl.u32 %v2432, 7
  %v2434 = vsub.s32 0, %v2433
  %v2435 = vrot.slane %v2419, %v2434
  %v2437 = vsel %vm133, %v2415, 0
  %v2440 = vsel %vm133, %v2416, 0
  %v2443 = vsel %vm133, %v2417, 0
  %v2446 = vsel %vm133, %v2418, 0
  %2448 = vmatprep.subr.mxu0 0.0
  %2449 = vmatpush1.msra.mxu0 %v2428
  %2450 = vmatprep.subr.mxu0 0.0
  %2451 = vmatpush1.msra.mxu0 %v2429
  %2452 = vmatprep.subr.mxu0 0.0
  %2453 = vmatpush1.msra.mxu0 %v2430
  %2454 = vmatprep.subr.mxu0 0.0
  %2455 = vmatpush1.msra.mxu0 %v2431
  %2456 = vmatprep.subr.mxu0 0.0
  %2457 = vmatpush1.msra.mxu0 0.0
  %2458 = vmatprep.subr.mxu0 0.0
  %2459 = vmatpush1.msra.mxu0 0.0
  %2460 = vmatprep.subr.mxu0 0.0
  %2461 = vmatpush1.msra.mxu0 0.0
  %2462 = vmatprep.subr.mxu0 0.0
  %2463 = vmatpush1.msra.mxu0 0.0
  %2464 = vmatprep.subr.mxu0 0.0
  %2465 = vmatpush1.msra.mxu0 0.0
  %2466 = vmatprep.subr.mxu0 0.0
  %2467 = vmatpush1.msra.mxu0 0.0
  %2468 = vmatprep.subr.mxu0 0.0
  %2469 = vmatpush1.msra.mxu0 0.0
  %2470 = vmatprep.subr.mxu0 0.0
  %2471 = vmatpush1.msra.mxu0 0.0
  %2472 = vmatprep.subr.mxu0 0.0
  %2473 = vmatpush1.msra.mxu0 0.0
  %2474 = vmatprep.subr.mxu0 0.0
  %2475 = vmatpush1.msra.mxu0 0.0
  %2476 = vmatprep.subr.mxu0 0.0
  %2477 = vmatpush1.msra.mxu0 0.0
  %2478 = vmatprep.subr.mxu0 0.0
  %2479 = vmatpush1.msra.mxu0 0.0
  %2480 = vmatprep.subr.mxu0 0.0
  %2481 = vmatpush1.msra.mxu0 0.0
  %2482 = vmatprep.subr.mxu0 0.0
  %2483 = vmatpush1.msra.mxu0 0.0
  %2484 = vmatprep.subr.mxu0 0.0
  %2485 = vmatpush1.msra.mxu0 0.0
  %2486 = vmatprep.subr.mxu0 0.0
  %2487 = vmatpush1.msra.mxu0 0.0
  %2488 = vmatprep.subr.mxu0 0.0
  %2489 = vmatpush1.msra.mxu0 0.0
  %2490 = vmatprep.subr.mxu0 0.0
  %2491 = vmatpush1.msra.mxu0 0.0
  %2492 = vmatprep.subr.mxu0 0.0
  %2493 = vmatpush1.msra.mxu0 0.0
  %2494 = vmatprep.subr.mxu0 0.0
  %2495 = vmatpush1.msra.mxu0 0.0
  %2496 = vmatprep.subr.mxu0 0.0
  %2497 = vmatpush1.msra.mxu0 0.0
  %2498 = vmatprep.subr.mxu0 0.0
  %2499 = vmatpush1.msra.mxu0 0.0
  %2500 = vmatprep.subr.mxu0 0.0
  %2501 = vmatpush1.msra.mxu0 0.0
  %2502 = vmatprep.subr.mxu0 0.0
  %2503 = vmatpush1.msra.mxu0 0.0
  %2504 = vmatprep.subr.mxu0 0.0
  %2505 = vmatpush1.msra.mxu0 0.0
  %2506 = vmatprep.subr.mxu0 0.0
  %2507 = vmatpush1.msra.mxu0 0.0
  %2508 = vmatprep.subr.mxu0 0.0
  %2509 = vmatpush1.msra.mxu0 0.0
  %2510 = vmatprep.subr.mxu0 0.0
  %2511 = vmatpush1.msra.mxu0 0.0
  %2512 = vmatprep.mubr.f32.mxu0 0.0
  %2513 = vmatmul.mubr.f32.gmra.mrb[0].mxu0 %v2437
  %v2514 = vpop.f32.mrb[0].mxu0
  %v2515 = vadd.f32 %v2435, %v2514
  %v2516 = vpop.f32.mrb[0].mxu0
  %2517 = vmatprep.mubr.f32.mxu0 0.0
  %2518 = vmatmul.mubr.f32.gmra.mrb[0].mxu0 %v2440
  %v2519 = vpop.f32.mrb[0].mxu0
  %v2520 = vadd.f32 %v2435, %v2519
  %v2521 = vpop.f32.mrb[0].mxu0
  %2522 = vmatprep.mubr.f32.mxu0 0.0
  %2523 = vmatmul.mubr.f32.gmra.mrb[0].mxu0 %v2443
  %v2524 = vpop.f32.mrb[0].mxu0
  %v2525 = vadd.f32 %v2435, %v2524
  %v2526 = vpop.f32.mrb[0].mxu0
  %2527 = vmatprep.mubr.f32.mxu0 0.0
  %2528 = vmatmul.mubr.f32.gmra.mrb[0].mxu0 %v2446
  %v2529 = vpop.f32.mrb[0].mxu0
  %v2530 = vadd.f32 %v2435, %v2529
  %v2531 = vpop.f32.mrb[0].mxu0
  %2532 = vdwg.mxu0
  %v2533 = vmul.f32 %v2515, 0.35355338
  %v2534 = vmul.f32 %v2520, 0.35355338
  %v2535 = vmul.f32 %v2525, 0.35355338
  %v2536 = vmul.f32 %v2530, 0.35355338
  %v2537 = vld [vmem:[%s1 + $0x128] sm:$0xff]
  %v2538 = vld [vmem:[%s1 + $0x130] sm:$0xff]
  %v2539 = vld [vmem:[%s1 + $0x138] sm:$0xff]
  %v2540 = vld [vmem:[%s1 + $0x140] sm:$0xff]
  %v2541 = vlaneseq
  %v2542 = vshrl.u32 %v2541, 7
  %v2543 = vsub.s32 0, %v2542
  %v2544 = vrot.slane %v2420, %v2543
  %2545 = vmatprep.subr.mxu0 0.0
  %2546 = vmatpush1.msra.mxu0 %v2537
  %2547 = vmatprep.subr.mxu0 0.0
  %2548 = vmatpush1.msra.mxu0 %v2538
  %2549 = vmatprep.subr.mxu0 0.0
  %2550 = vmatpush1.msra.mxu0 %v2539
  %2551 = vmatprep.subr.mxu0 0.0
  %2552 = vmatpush1.msra.mxu0 %v2540
  %2553 = vmatprep.subr.mxu0 0.0
  %2554 = vmatpush1.msra.mxu0 0.0
  %2555 = vmatprep.subr.mxu0 0.0
  %2556 = vmatpush1.msra.mxu0 0.0
  %2557 = vmatprep.subr.mxu0 0.0
  %2558 = vmatpush1.msra.mxu0 0.0
  %2559 = vmatprep.subr.mxu0 0.0
  %2560 = vmatpush1.msra.mxu0 0.0
  %2561 = vmatprep.subr.mxu0 0.0
  %2562 = vmatpush1.msra.mxu0 0.0
  %2563 = vmatprep.subr.mxu0 0.0
  %2564 = vmatpush1.msra.mxu0 0.0
  %2565 = vmatprep.subr.mxu0 0.0
  %2566 = vmatpush1.msra.mxu0 0.0
  %2567 = vmatprep.subr.mxu0 0.0
  %2568 = vmatpush1.msra.mxu0 0.0
  %2569 = vmatprep.subr.mxu0 0.0
  %2570 = vmatpush1.msra.mxu0 0.0
  %2571 = vmatprep.subr.mxu0 0.0
  %2572 = vmatpush1.msra.mxu0 0.0
  %2573 = vmatprep.subr.mxu0 0.0
  %2574 = vmatpush1.msra.mxu0 0.0
  %2575 = vmatprep.subr.mxu0 0.0
  %2576 = vmatpush1.msra.mxu0 0.0
  %2577 = vmatprep.subr.mxu0 0.0
  %2578 = vmatpush1.msra.mxu0 0.0
  %2579 = vmatprep.subr.mxu0 0.0
  %2580 = vmatpush1.msra.mxu0 0.0
  %2581 = vmatprep.subr.mxu0 0.0
  %2582 = vmatpush1.msra.mxu0 0.0
  %2583 = vmatprep.subr.mxu0 0.0
  %2584 = vmatpush1.msra.mxu0 0.0
  %2585 = vmatprep.subr.mxu0 0.0
  %2586 = vmatpush1.msra.mxu0 0.0
  %2587 = vmatprep.subr.mxu0 0.0
  %2588 = vmatpush1.msra.mxu0 0.0
  %2589 = vmatprep.subr.mxu0 0.0
  %2590 = vmatpush1.msra.mxu0 0.0
  %2591 = vmatprep.subr.mxu0 0.0
  %2592 = vmatpush1.msra.mxu0 0.0
  %2593 = vmatprep.subr.mxu0 0.0
  %2594 = vmatpush1.msra.mxu0 0.0
  %2595 = vmatprep.subr.mxu0 0.0
  %2596 = vmatpush1.msra.mxu0 0.0
  %2597 = vmatprep.subr.mxu0 0.0
  %2598 = vmatpush1.msra.mxu0 0.0
  %2599 = vmatprep.subr.mxu0 0.0
  %2600 = vmatpush1.msra.mxu0 0.0
  %2601 = vmatprep.subr.mxu0 0.0
  %2602 = vmatpush1.msra.mxu0 0.0
  %2603 = vmatprep.subr.mxu0 0.0
  %2604 = vmatpush1.msra.mxu0 0.0
  %2605 = vmatprep.subr.mxu0 0.0
  %2606 = vmatpush1.msra.mxu0 0.0
  %2607 = vmatprep.subr.mxu0 0.0
  %2608 = vmatpush1.msra.mxu0 0.0
  %2609 = vmatprep.mubr.f32.mxu0 0.0
  %2610 = vmatmul.mubr.f32.gmra.mrb[0].mxu0 %v2437
  %v2611 = vpop.f32.mrb[0].mxu0
  %v2612 = vadd.f32 %v2544, %v2611
  %v2613 = vpop.f32.mrb[0].mxu0
  %2614 = vmatprep.mubr.f32.mxu0 0.0
  %2615 = vmatmul.mubr.f32.gmra.mrb[0].mxu0 %v2440
  %v2616 = vpop.f32.mrb[0].mxu0
  %v2617 = vadd.f32 %v2544, %v2616
  %v2618 = vpop.f32.mrb[0].mxu0
  %2619 = vmatprep.mubr.f32.mxu0 0.0
  %2620 = vmatmul.mubr.f32.gmra.mrb[0].mxu0 %v2443
  %v2621 = vpop.f32.mrb[0].mxu0
  %v2622 = vadd.f32 %v2544, %v2621
  %v2623 = vpop.f32.mrb[0].mxu0
  %2624 = vmatprep.mubr.f32.mxu0 0.0
  %2625 = vmatmul.mubr.f32.gmra.mrb[0].mxu0 %v2446
  %v2626 = vpop.f32.mrb[0].mxu0
  %v2627 = vadd.f32 %v2544, %v2626
  %v2628 = vpop.f32.mrb[0].mxu0
  %2629 = vdwg.mxu0
  %v2630 = vld [vmem:[%s1 + $0x148] sm:$0xff]
  %v2631 = vld [vmem:[%s1 + $0x150] sm:$0xff]
  %v2632 = vld [vmem:[%s1 + $0x158] sm:$0xff]
  %v2633 = vld [vmem:[%s1 + $0x160] sm:$0xff]
  %v2634 = vlaneseq
  %v2635 = vshrl.u32 %v2634, 7
  %v2636 = vsub.s32 0, %v2635
  %v2637 = vrot.slane %v2421, %v2636
  %2638 = vmatprep.subr.mxu0 0.0
  %2639 = vmatpush1.msra.mxu0 %v2630
  %2640 = vmatprep.subr.mxu0 0.0
  %2641 = vmatpush1.msra.mxu0 %v2631
  %2642 = vmatprep.subr.mxu0 0.0
  %2643 = vmatpush1.msra.mxu0 %v2632
  %2644 = vmatprep.subr.mxu0 0.0
  %2645 = vmatpush1.msra.mxu0 %v2633
  %2646 = vmatprep.subr.mxu0 0.0
  %2647 = vmatpush1.msra.mxu0 0.0
  %2648 = vmatprep.subr.mxu0 0.0
  %2649 = vmatpush1.msra.mxu0 0.0
  %2650 = vmatprep.subr.mxu0 0.0
  %2651 = vmatpush1.msra.mxu0 0.0
  %2652 = vmatprep.subr.mxu0 0.0
  %2653 = vmatpush1.msra.mxu0 0.0
  %2654 = vmatprep.subr.mxu0 0.0
  %2655 = vmatpush1.msra.mxu0 0.0
  %2656 = vmatprep.subr.mxu0 0.0
  %2657 = vmatpush1.msra.mxu0 0.0
  %2658 = vmatprep.subr.mxu0 0.0
  %2659 = vmatpush1.msra.mxu0 0.0
  %2660 = vmatprep.subr.mxu0 0.0
  %2661 = vmatpush1.msra.mxu0 0.0
  %2662 = vmatprep.subr.mxu0 0.0
  %2663 = vmatpush1.msra.mxu0 0.0
  %2664 = vmatprep.subr.mxu0 0.0
  %2665 = vmatpush1.msra.mxu0 0.0
  %2666 = vmatprep.subr.mxu0 0.0
  %2667 = vmatpush1.msra.mxu0 0.0
  %2668 = vmatprep.subr.mxu0 0.0
  %2669 = vmatpush1.msra.mxu0 0.0
  %2670 = vmatprep.subr.mxu0 0.0
  %2671 = vmatpush1.msra.mxu0 0.0
  %2672 = vmatprep.subr.mxu0 0.0
  %2673 = vmatpush1.msra.mxu0 0.0
  %2674 = vmatprep.subr.mxu0 0.0
  %2675 = vmatpush1.msra.mxu0 0.0
  %2676 = vmatprep.subr.mxu0 0.0
  %2677 = vmatpush1.msra.mxu0 0.0
  %2678 = vmatprep.subr.mxu0 0.0
  %2679 = vmatpush1.msra.mxu0 0.0
  %2680 = vmatprep.subr.mxu0 0.0
  %2681 = vmatpush1.msra.mxu0 0.0
  %2682 = vmatprep.subr.mxu0 0.0
  %2683 = vmatpush1.msra.mxu0 0.0
  %2684 = vmatprep.subr.mxu0 0.0
  %2685 = vmatpush1.msra.mxu0 0.0
  %2686 = vmatprep.subr.mxu0 0.0
  %2687 = vmatpush1.msra.mxu0 0.0
  %2688 = vmatprep.subr.mxu0 0.0
  %2689 = vmatpush1.msra.mxu0 0.0
  %2690 = vmatprep.subr.mxu0 0.0
  %2691 = vmatpush1.msra.mxu0 0.0
  %2692 = vmatprep.subr.mxu0 0.0
  %2693 = vmatpush1.msra.mxu0 0.0
  %2694 = vmatprep.subr.mxu0 0.0
  %2695 = vmatpush1.msra.mxu0 0.0
  %2696 = vmatprep.subr.mxu0 0.0
  %2697 = vmatpush1.msra.mxu0 0.0
  %2698 = vmatprep.subr.mxu0 0.0
  %2699 = vmatpush1.msra.mxu0 0.0
  %2700 = vmatprep.subr.mxu0 0.0
  %2701 = vmatpush1.msra.mxu0 0.0
  %2702 = vmatprep.mubr.f32.mxu0 0.0
  %2703 = vmatmul.mubr.f32.gmra.mrb[0].mxu0 %v2437
  %v2704 = vpop.f32.mrb[0].mxu0
  %v2705 = vadd.f32 %v2637, %v2704
  %v2706 = vpop.f32.mrb[0].mxu0
  %2707 = vmatprep.mubr.f32.mxu0 0.0
  %2708 = vmatmul.mubr.f32.gmra.mrb[0].mxu0 %v2440
  %v2709 = vpop.f32.mrb[0].mxu0
  %v2710 = vadd.f32 %v2637, %v2709
  %v2711 = vpop.f32.mrb[0].mxu0
  %2712 = vmatprep.mubr.f32.mxu0 0.0
  %2713 = vmatmul.mubr.f32.gmra.mrb[0].mxu0 %v2443
  %v2714 = vpop.f32.mrb[0].mxu0
  %v2715 = vadd.f32 %v2637, %v2714
  %v2716 = vpop.f32.mrb[0].mxu0
  %2717 = vmatprep.mubr.f32.mxu0 0.0
  %2718 = vmatmul.mubr.f32.gmra.mrb[0].mxu0 %v2446
  %v2719 = vpop.f32.mrb[0].mxu0
  %v2720 = vadd.f32 %v2637, %v2719
  %v2721 = vpop.f32.mrb[0].mxu0
  %2722 = vdwg.mxu0
  %v2724 = vsel %vm582, %v2533, 0
  %v2727 = vsel %vm582, %v2534, 0
  %v2730 = vsel %vm582, %v2535, 0
  %v2733 = vsel %vm582, %v2536, 0
  %v2736 = vsel %vm582, %v2612, 0
  %v2739 = vsel %vm582, %v2617, 0
  %v2742 = vsel %vm582, %v2622, 0
  %v2745 = vsel %vm582, %v2627, 0
  %2747 = vmatprep.subr.mxu0 0.0
  %2748 = vmatpush1.xpose.msra.mxu0 %v2736
  %2749 = vmatprep.subr.mxu0 0.0
  %2750 = vmatpush1.xpose.msra.mxu0 %v2739
  %2751 = vmatprep.subr.mxu0 0.0
  %2752 = vmatpush1.xpose.msra.mxu0 %v2742
  %2753 = vmatprep.subr.mxu0 0.0
  %2754 = vmatpush1.xpose.msra.mxu0 %v2745
  %2755 = vmatprep.subr.mxu0 0.0
  %2756 = vmatpush1.xpose.msra.mxu0 0.0
  %2757 = vmatprep.subr.mxu0 0.0
  %2758 = vmatpush1.xpose.msra.mxu0 0.0
  %2759 = vmatprep.subr.mxu0 0.0
  %2760 = vmatpush1.xpose.msra.mxu0 0.0
  %2761 = vmatprep.subr.mxu0 0.0
  %2762 = vmatpush1.xpose.msra.mxu0 0.0
  %2763 = vmatprep.subr.mxu0 0.0
  %2764 = vmatpush1.xpose.msra.mxu0 0.0
  %2765 = vmatprep.subr.mxu0 0.0
  %2766 = vmatpush1.xpose.msra.mxu0 0.0
  %2767 = vmatprep.subr.mxu0 0.0
  %2768 = vmatpush1.xpose.msra.mxu0 0.0
  %2769 = vmatprep.subr.mxu0 0.0
  %2770 = vmatpush1.xpose.msra.mxu0 0.0
  %2771 = vmatprep.subr.mxu0 0.0
  %2772 = vmatpush1.xpose.msra.mxu0 0.0
  %2773 = vmatprep.subr.mxu0 0.0
  %2774 = vmatpush1.xpose.msra.mxu0 0.0
  %2775 = vmatprep.subr.mxu0 0.0
  %2776 = vmatpush1.xpose.msra.mxu0 0.0
  %2777 = vmatprep.subr.mxu0 0.0
  %2778 = vmatpush1.xpose.msra.mxu0 0.0
  %2779 = vmatprep.subr.mxu0 0.0
  %2780 = vmatpush1.xpose.msra.mxu0 0.0
  %2781 = vmatprep.subr.mxu0 0.0
  %2782 = vmatpush1.xpose.msra.mxu0 0.0
  %2783 = vmatprep.subr.mxu0 0.0
  %2784 = vmatpush1.xpose.msra.mxu0 0.0
  %2785 = vmatprep.subr.mxu0 0.0
  %2786 = vmatpush1.xpose.msra.mxu0 0.0
  %2787 = vmatprep.subr.mxu0 0.0
  %2788 = vmatpush1.xpose.msra.mxu0 0.0
  %2789 = vmatprep.subr.mxu0 0.0
  %2790 = vmatpush1.xpose.msra.mxu0 0.0
  %2791 = vmatprep.subr.mxu0 0.0
  %2792 = vmatpush1.xpose.msra.mxu0 0.0
  %2793 = vmatprep.subr.mxu0 0.0
  %2794 = vmatpush1.xpose.msra.mxu0 0.0
  %2795 = vmatprep.subr.mxu0 0.0
  %2796 = vmatpush1.xpose.msra.mxu0 0.0
  %2797 = vmatprep.subr.mxu0 0.0
  %2798 = vmatpush1.xpose.msra.mxu0 0.0
  %2799 = vmatprep.subr.mxu0 0.0
  %2800 = vmatpush1.xpose.msra.mxu0 0.0
  %2801 = vmatprep.subr.mxu0 0.0
  %2802 = vmatpush1.xpose.msra.mxu0 0.0
  %2803 = vmatprep.subr.mxu0 0.0
  %2804 = vmatpush1.xpose.msra.mxu0 0.0
  %2805 = vmatprep.subr.mxu0 0.0
  %2806 = vmatpush1.xpose.msra.mxu0 0.0
  %2807 = vmatprep.subr.mxu0 0.0
  %2808 = vmatpush1.xpose.msra.mxu0 0.0
  %2809 = vmatprep.subr.mxu0 0.0
  %2810 = vmatpush1.xpose.msra.mxu0 0.0
  %2811 = vmatprep.mubr.f32.mxu0 0.0
  %2812 = vmatmul.mubr.f32.gmra.mrb[0].mxu0 %v2724
  %v2813 = vpop.f32.mrb[0].mxu0
  %v2814 = vadd.f32 %v274, %v2813
  %v2815 = vpop.f32.mrb[0].mxu0
  %2816 = vmatprep.mubr.f32.mxu0 0.0
  %2817 = vmatmul.mubr.f32.gmra.mrb[0].mxu0 %v2727
  %v2818 = vpop.f32.mrb[0].mxu0
  %v2819 = vadd.f32 %v275, %v2818
  %v2820 = vpop.f32.mrb[0].mxu0
  %2821 = vmatprep.mubr.f32.mxu0 0.0
  %2822 = vmatmul.mubr.f32.gmra.mrb[0].mxu0 %v2730
  %v2823 = vpop.f32.mrb[0].mxu0
  %v2824 = vadd.f32 %v276, %v2823
  %v2825 = vpop.f32.mrb[0].mxu0
  %2826 = vmatprep.mubr.f32.mxu0 0.0
  %2827 = vmatmul.mubr.f32.gmra.mrb[0].mxu0 %v2733
  %v2828 = vpop.f32.mrb[0].mxu0
  %v2829 = vadd.f32 %v277, %v2828
  %v2830 = vpop.f32.mrb[0].mxu0
  %2831 = vdwg.mxu0
  %v2832 = vsel %vm133, %v2814, -inf
  %2833 = vmax.xlane.f32.xlu0 %v2832
  %v2834 = vpop.xlane.xlu0 %2833
  %v2835 = vsel %vm133, %v2819, -inf
  %2836 = vmax.xlane.f32.xlu0 %v2835
  %v2837 = vpop.xlane.xlu0 %2836
  %v2838 = vsel %vm133, %v2824, -inf
  %2839 = vmax.xlane.f32.xlu0 %v2838
  %v2840 = vpop.xlane.xlu0 %2839
  %v2841 = vsel %vm133, %v2829, -inf
  %2842 = vmax.xlane.f32.xlu0 %v2841
  %v2843 = vpop.xlane.xlu0 %2842
  %v2844 = vsub.f32 %v2814, %v2834
  %v2845 = vsub.f32 %v2819, %v2837
  %v2846 = vsub.f32 %v2824, %v2840
  %v2847 = vsub.f32 %v2829, %v2843
  %v2848 = vmul.f32 %v2844, 1.442695
  %v2849 = vpow.pop %v2848
  %v2850 = vmul.f32 %v2845, 1.442695
  %v2851 = vpow.pop %v2850
  %v2852 = vmul.f32 %v2846, 1.442695
  %v2853 = vpow.pop %v2852
  %v2854 = vmul.f32 %v2847, 1.442695
  %v2855 = vpow.pop %v2854
  %v2856 = vsel %vm133, %v2849, 0.0
  %2857 = vadd.xlane.f32.xlu0 %v2856
  %v2858 = vpop.xlane.xlu0 %2857
  %v2859 = vsel %vm133, %v2851, 0.0
  %2860 = vadd.xlane.f32.xlu0 %v2859
  %v2861 = vpop.xlane.xlu0 %2860
  %v2862 = vsel %vm133, %v2853, 0.0
  %2863 = vadd.xlane.f32.xlu0 %v2862
  %v2864 = vpop.xlane.xlu0 %2863
  %v2865 = vsel %vm133, %v2855, 0.0
  %2866 = vadd.xlane.f32.xlu0 %v2865
  %v2867 = vpop.xlane.xlu0 %2866
  %v2868 = vrcp.pop %v2858
  %v2869 = vrcp.pop %v2861
  %v2870 = vrcp.pop %v2864
  %v2871 = vrcp.pop %v2867
  %v2872 = vmul.f32 %v2849, %v2868
  %v2873 = vmul.f32 %v2851, %v2869
  %v2874 = vmul.f32 %v2853, %v2870
  %v2875 = vmul.f32 %v2855, %v2871
  %v2877 = vsel %vm133, %v2872, 0
  %v2880 = vsel %vm133, %v2873, 0
  %v2883 = vsel %vm133, %v2874, 0
  %v2886 = vsel %vm133, %v2875, 0
  %2888 = vmatprep.subr.mxu0 0.0
  %2889 = vmatpush1.msra.mxu0 %v2705
  %2890 = vmatprep.subr.mxu0 0.0
  %2891 = vmatpush1.msra.mxu0 %v2710
  %2892 = vmatprep.subr.mxu0 0.0
  %2893 = vmatpush1.msra.mxu0 %v2715
  %2894 = vmatprep.subr.mxu0 0.0
  %2895 = vmatpush1.msra.mxu0 %v2720
  %2896 = vmatprep.subr.mxu0 0.0
  %2897 = vmatpush1.msra.mxu0 0.0
  %2898 = vmatprep.subr.mxu0 0.0
  %2899 = vmatpush1.msra.mxu0 0.0
  %2900 = vmatprep.subr.mxu0 0.0
  %2901 = vmatpush1.msra.mxu0 0.0
  %2902 = vmatprep.subr.mxu0 0.0
  %2903 = vmatpush1.msra.mxu0 0.0
  %2904 = vmatprep.subr.mxu0 0.0
  %2905 = vmatpush1.msra.mxu0 0.0
  %2906 = vmatprep.subr.mxu0 0.0
  %2907 = vmatpush1.msra.mxu0 0.0
  %2908 = vmatprep.subr.mxu0 0.0
  %2909 = vmatpush1.msra.mxu0 0.0
  %2910 = vmatprep.subr.mxu0 0.0
  %2911 = vmatpush1.msra.mxu0 0.0
  %2912 = vmatprep.subr.mxu0 0.0
  %2913 = vmatpush1.msra.mxu0 0.0
  %2914 = vmatprep.subr.mxu0 0.0
  %2915 = vmatpush1.msra.mxu0 0.0
  %2916 = vmatprep.subr.mxu0 0.0
  %2917 = vmatpush1.msra.mxu0 0.0
  %2918 = vmatprep.subr.mxu0 0.0
  %2919 = vmatpush1.msra.mxu0 0.0
  %2920 = vmatprep.subr.mxu0 0.0
  %2921 = vmatpush1.msra.mxu0 0.0
  %2922 = vmatprep.subr.mxu0 0.0
  %2923 = vmatpush1.msra.mxu0 0.0
  %2924 = vmatprep.subr.mxu0 0.0
  %2925 = vmatpush1.msra.mxu0 0.0
  %2926 = vmatprep.subr.mxu0 0.0
  %2927 = vmatpush1.msra.mxu0 0.0
  %2928 = vmatprep.subr.mxu0 0.0
  %2929 = vmatpush1.msra.mxu0 0.0
  %2930 = vmatprep.subr.mxu0 0.0
  %2931 = vmatpush1.msra.mxu0 0.0
  %2932 = vmatprep.subr.mxu0 0.0
  %2933 = vmatpush1.msra.mxu0 0.0
  %2934 = vmatprep.subr.mxu0 0.0
  %2935 = vmatpush1.msra.mxu0 0.0
  %2936 = vmatprep.subr.mxu0 0.0
  %2937 = vmatpush1.msra.mxu0 0.0
  %2938 = vmatprep.subr.mxu0 0.0
  %2939 = vmatpush1.msra.mxu0 0.0
  %2940 = vmatprep.subr.mxu0 0.0
  %2941 = vmatpush1.msra.mxu0 0.0
  %2942 = vmatprep.subr.mxu0 0.0
  %2943 = vmatpush1.msra.mxu0 0.0
  %2944 = vmatprep.subr.mxu0 0.0
  %2945 = vmatpush1.msra.mxu0 0.0
  %2946 = vmatprep.subr.mxu0 0.0
  %2947 = vmatpush1.msra.mxu0 0.0
  %2948 = vmatprep.subr.mxu0 0.0
  %2949 = vmatpush1.msra.mxu0 0.0
  %2950 = vmatprep.subr.mxu0 0.0
  %2951 = vmatpush1.msra.mxu0 0.0
  %2952 = vmatprep.mubr.f32.mxu0 0.0
  %2953 = vmatmul.mubr.f32.gmra.mrb[0].mxu0 %v2877
  %v2954 = vpop.f32.mrb[0].mxu0
  %v2955 = vadd.f32 0.0, %v2954
  %v2956 = vpop.f32.mrb[0].mxu0
  %2957 = vmatprep.mubr.f32.mxu0 0.0
  %2958 = vmatmul.mubr.f32.gmra.mrb[0].mxu0 %v2880
  %v2959 = vpop.f32.mrb[0].mxu0
  %v2960 = vadd.f32 0.0, %v2959
  %v2961 = vpop.f32.mrb[0].mxu0
  %2962 = vmatprep.mubr.f32.mxu0 0.0
  %2963 = vmatmul.mubr.f32.gmra.mrb[0].mxu0 %v2883
  %v2964 = vpop.f32.mrb[0].mxu0
  %v2965 = vadd.f32 0.0, %v2964
  %v2966 = vpop.f32.mrb[0].mxu0
  %2967 = vmatprep.mubr.f32.mxu0 0.0
  %2968 = vmatmul.mubr.f32.gmra.mrb[0].mxu0 %v2886
  %v2969 = vpop.f32.mrb[0].mxu0
  %v2970 = vadd.f32 0.0, %v2969
  %v2971 = vpop.f32.mrb[0].mxu0
  %2972 = vdwg.mxu0
  %v2973 = vld [vmem:[%s1 + $0x168] sm:$0xff]
  %2974 = vrot.lane.b32.xlu0 %v2533, 120
  %v2975 = vpop.permute.xlu0 %2974
  %2976 = vrot.lane.b32.xlu0 %v2534, 120
  %v2977 = vpop.permute.xlu0 %2976
  %2978 = vrot.lane.b32.xlu0 %v2535, 120
  %v2979 = vpop.permute.xlu0 %2978
  %2980 = vrot.lane.b32.xlu0 %v2536, 120
  %v2981 = vpop.permute.xlu0 %2980
  %2982 = vrot.lane.b32.xlu0 %v2612, 120
  %v2983 = vpop.permute.xlu0 %2982
  %2984 = vrot.lane.b32.xlu0 %v2617, 120
  %v2985 = vpop.permute.xlu0 %2984
  %2986 = vrot.lane.b32.xlu0 %v2622, 120
  %v2987 = vpop.permute.xlu0 %2986
  %2988 = vrot.lane.b32.xlu0 %v2627, 120
  %v2989 = vpop.permute.xlu0 %2988
  %v2990 = vsel %vm582, %v2975, 0
  %v2992 = vsel %vm582, %v2977, 0
  %v2994 = vsel %vm582, %v2979, 0
  %v2996 = vsel %vm582, %v2981, 0
  %v2998 = vsel %vm582, %v2983, 0
  %v3000 = vsel %vm582, %v2985, 0
  %v3002 = vsel %vm582, %v2987, 0
  %v3004 = vsel %vm582, %v2989, 0
  %3006 = vmatprep.subr.mxu0 0.0
  %3007 = vmatpush1.xpose.msra.mxu0 %v2998
  %3008 = vmatprep.subr.mxu0 0.0
  %3009 = vmatpush1.xpose.msra.mxu0 %v3000
  %3010 = vmatprep.subr.mxu0 0.0
  %3011 = vmatpush1.xpose.msra.mxu0 %v3002
  %3012 = vmatprep.subr.mxu0 0.0
  %3013 = vmatpush1.xpose.msra.mxu0 %v3004
  %3014 = vmatprep.subr.mxu0 0.0
  %3015 = vmatpush1.xpose.msra.mxu0 0.0
  %3016 = vmatprep.subr.mxu0 0.0
  %3017 = vmatpush1.xpose.msra.mxu0 0.0
  %3018 = vmatprep.subr.mxu0 0.0
  %3019 = vmatpush1.xpose.msra.mxu0 0.0
  %3020 = vmatprep.subr.mxu0 0.0
  %3021 = vmatpush1.xpose.msra.mxu0 0.0
  %3022 = vmatprep.subr.mxu0 0.0
  %3023 = vmatpush1.xpose.msra.mxu0 0.0
  %3024 = vmatprep.subr.mxu0 0.0
  %3025 = vmatpush1.xpose.msra.mxu0 0.0
  %3026 = vmatprep.subr.mxu0 0.0
  %3027 = vmatpush1.xpose.msra.mxu0 0.0
  %3028 = vmatprep.subr.mxu0 0.0
  %3029 = vmatpush1.xpose.msra.mxu0 0.0
  %3030 = vmatprep.subr.mxu0 0.0
  %3031 = vmatpush1.xpose.msra.mxu0 0.0
  %3032 = vmatprep.subr.mxu0 0.0
  %3033 = vmatpush1.xpose.msra.mxu0 0.0
  %3034 = vmatprep.subr.mxu0 0.0
  %3035 = vmatpush1.xpose.msra.mxu0 0.0
  %3036 = vmatprep.subr.mxu0 0.0
  %3037 = vmatpush1.xpose.msra.mxu0 0.0
  %3038 = vmatprep.subr.mxu0 0.0
  %3039 = vmatpush1.xpose.msra.mxu0 0.0
  %3040 = vmatprep.subr.mxu0 0.0
  %3041 = vmatpush1.xpose.msra.mxu0 0.0
  %3042 = vmatprep.subr.mxu0 0.0
  %3043 = vmatpush1.xpose.msra.mxu0 0.0
  %3044 = vmatprep.subr.mxu0 0.0
  %3045 = vmatpush1.xpose.msra.mxu0 0.0
  %3046 = vmatprep.subr.mxu0 0.0
  %3047 = vmatpush1.xpose.msra.mxu0 0.0
  %3048 = vmatprep.subr.mxu0 0.0
  %3049 = vmatpush1.xpose.msra.mxu0 0.0
  %3050 = vmatprep.subr.mxu0 0.0
  %3051 = vmatpush1.xpose.msra.mxu0 0.0
  %3052 = vmatprep.subr.mxu0 0.0
  %3053 = vmatpush1.xpose.msra.mxu0 0.0
  %3054 = vmatprep.subr.mxu0 0.0
  %3055 = vmatpush1.xpose.msra.mxu0 0.0
  %3056 = vmatprep.subr.mxu0 0.0
  %3057 = vmatpush1.xpose.msra.mxu0 0.0
  %3058 = vmatprep.subr.mxu0 0.0
  %3059 = vmatpush1.xpose.msra.mxu0 0.0
  %3060 = vmatprep.subr.mxu0 0.0
  %3061 = vmatpush1.xpose.msra.mxu0 0.0
  %3062 = vmatprep.subr.mxu0 0.0
  %3063 = vmatpush1.xpose.msra.mxu0 0.0
  %3064 = vmatprep.subr.mxu0 0.0
  %3065 = vmatpush1.xpose.msra.mxu0 0.0
  %3066 = vmatprep.subr.mxu0 0.0
  %3067 = vmatpush1.xpose.msra.mxu0 0.0
  %3068 = vmatprep.subr.mxu0 0.0
  %3069 = vmatpush1.xpose.msra.mxu0 0.0
  %3070 = vmatprep.mubr.f32.mxu0 0.0
  %3071 = vmatmul.mubr.f32.gmra.mrb[0].mxu0 %v2990
  %v3072 = vpop.f32.mrb[0].mxu0
  %v3073 = vadd.f32 %v274, %v3072
  %v3074 = vpop.f32.mrb[0].mxu0
  %3075 = vmatprep.mubr.f32.mxu0 0.0
  %3076 = vmatmul.mubr.f32.gmra.mrb[0].mxu0 %v2992
  %v3077 = vpop.f32.mrb[0].mxu0
  %v3078 = vadd.f32 %v275, %v3077
  %v3079 = vpop.f32.mrb[0].mxu0
  %3080 = vmatprep.mubr.f32.mxu0 0.0
  %3081 = vmatmul.mubr.f32.gmra.mrb[0].mxu0 %v2994
  %v3082 = vpop.f32.mrb[0].mxu0
  %v3083 = vadd.f32 %v276, %v3082
  %v3084 = vpop.f32.mrb[0].mxu0
  %3085 = vmatprep.mubr.f32.mxu0 0.0
  %3086 = vmatmul.mubr.f32.gmra.mrb[0].mxu0 %v2996
  %v3087 = vpop.f32.mrb[0].mxu0
  %v3088 = vadd.f32 %v277, %v3087
  %v3089 = vpop.f32.mrb[0].mxu0
  %3090 = vdwg.mxu0
  %v3091 = vsel %vm133, %v3073, -inf
  %3092 = vmax.xlane.f32.xlu0 %v3091
  %v3093 = vpop.xlane.xlu0 %3092
  %v3094 = vsel %vm133, %v3078, -inf
  %3095 = vmax.xlane.f32.xlu0 %v3094
  %v3096 = vpop.xlane.xlu0 %3095
  %v3097 = vsel %vm133, %v3083, -inf
  %3098 = vmax.xlane.f32.xlu0 %v3097
  %v3099 = vpop.xlane.xlu0 %3098
  %v3100 = vsel %vm133, %v3088, -inf
  %3101 = vmax.xlane.f32.xlu0 %v3100
  %v3102 = vpop.xlane.xlu0 %3101
  %v3103 = vsub.f32 %v3073, %v3093
  %v3104 = vsub.f32 %v3078, %v3096
  %v3105 = vsub.f32 %v3083, %v3099
  %v3106 = vsub.f32 %v3088, %v3102
  %v3107 = vmul.f32 %v3103, 1.442695
  %v3108 = vpow.pop %v3107
  %v3109 = vmul.f32 %v3104, 1.442695
  %v3110 = vpow.pop %v3109
  %v3111 = vmul.f32 %v3105, 1.442695
  %v3112 = vpow.pop %v3111
  %v3113 = vmul.f32 %v3106, 1.442695
  %v3114 = vpow.pop %v3113
  %v3115 = vsel %vm133, %v3108, 0.0
  %3116 = vadd.xlane.f32.xlu0 %v3115
  %v3117 = vpop.xlane.xlu0 %3116
  %v3118 = vsel %vm133, %v3110, 0.0
  %3119 = vadd.xlane.f32.xlu0 %v3118
  %v3120 = vpop.xlane.xlu0 %3119
  %v3121 = vsel %vm133, %v3112, 0.0
  %3122 = vadd.xlane.f32.xlu0 %v3121
  %v3123 = vpop.xlane.xlu0 %3122
  %v3124 = vsel %vm133, %v3114, 0.0
  %3125 = vadd.xlane.f32.xlu0 %v3124
  %v3126 = vpop.xlane.xlu0 %3125
  %v3127 = vrcp.pop %v3117
  %v3128 = vrcp.pop %v3120
  %v3129 = vrcp.pop %v3123
  %v3130 = vrcp.pop %v3126
  %v3131 = vmul.f32 %v3108, %v3127
  %v3132 = vmul.f32 %v3110, %v3128
  %v3133 = vmul.f32 %v3112, %v3129
  %v3134 = vmul.f32 %v3114, %v3130
  %3139 = vrot.lane.b32.xlu0 %v2705, 120
  %v3140 = vpop.permute.xlu0 %3139
  %3141 = vrot.lane.b32.xlu0 %v2710, 120
  %v3142 = vpop.permute.xlu0 %3141
  %3143 = vrot.lane.b32.xlu0 %v2715, 120
  %v3144 = vpop.permute.xlu0 %3143
  %3145 = vrot.lane.b32.xlu0 %v2720, 120
  %v3146 = vpop.permute.xlu0 %3145
  %v3152 = vsel %vm133, %v3131, 0
  %v3155 = vsel %vm133, %v3132, 0
  %v3158 = vsel %vm133, %v3133, 0
  %v3161 = vsel %vm133, %v3134, 0
  %3163 = vmatprep.subr.mxu0 0.0
  %3164 = vmatpush1.msra.mxu0 %v3140
  %3165 = vmatprep.subr.mxu0 0.0
  %3166 = vmatpush1.msra.mxu0 %v3142
  %3167 = vmatprep.subr.mxu0 0.0
  %3168 = vmatpush1.msra.mxu0 %v3144
  %3169 = vmatprep.subr.mxu0 0.0
  %3170 = vmatpush1.msra.mxu0 %v3146
  %3171 = vmatprep.subr.mxu0 0.0
  %3172 = vmatpush1.msra.mxu0 0.0
  %3173 = vmatprep.subr.mxu0 0.0
  %3174 = vmatpush1.msra.mxu0 0.0
  %3175 = vmatprep.subr.mxu0 0.0
  %3176 = vmatpush1.msra.mxu0 0.0
  %3177 = vmatprep.subr.mxu0 0.0
  %3178 = vmatpush1.msra.mxu0 0.0
  %3179 = vmatprep.subr.mxu0 0.0
  %3180 = vmatpush1.msra.mxu0 0.0
  %3181 = vmatprep.subr.mxu0 0.0
  %3182 = vmatpush1.msra.mxu0 0.0
  %3183 = vmatprep.subr.mxu0 0.0
  %3184 = vmatpush1.msra.mxu0 0.0
  %3185 = vmatprep.subr.mxu0 0.0
  %3186 = vmatpush1.msra.mxu0 0.0
  %3187 = vmatprep.subr.mxu0 0.0
  %3188 = vmatpush1.msra.mxu0 0.0
  %3189 = vmatprep.subr.mxu0 0.0
  %3190 = vmatpush1.msra.mxu0 0.0
  %3191 = vmatprep.subr.mxu0 0.0
  %3192 = vmatpush1.msra.mxu0 0.0
  %3193 = vmatprep.subr.mxu0 0.0
  %3194 = vmatpush1.msra.mxu0 0.0
  %3195 = vmatprep.subr.mxu0 0.0
  %3196 = vmatpush1.msra.mxu0 0.0
  %3197 = vmatprep.subr.mxu0 0.0
  %3198 = vmatpush1.msra.mxu0 0.0
  %3199 = vmatprep.subr.mxu0 0.0
  %3200 = vmatpush1.msra.mxu0 0.0
  %3201 = vmatprep.subr.mxu0 0.0
  %3202 = vmatpush1.msra.mxu0 0.0
  %3203 = vmatprep.subr.mxu0 0.0
  %3204 = vmatpush1.msra.mxu0 0.0
  %3205 = vmatprep.subr.mxu0 0.0
  %3206 = vmatpush1.msra.mxu0 0.0
  %3207 = vmatprep.subr.mxu0 0.0
  %3208 = vmatpush1.msra.mxu0 0.0
  %3209 = vmatprep.subr.mxu0 0.0
  %3210 = vmatpush1.msra.mxu0 0.0
  %3211 = vmatprep.subr.mxu0 0.0
  %3212 = vmatpush1.msra.mxu0 0.0
  %3213 = vmatprep.subr.mxu0 0.0
  %3214 = vmatpush1.msra.mxu0 0.0
  %3215 = vmatprep.subr.mxu0 0.0
  %3216 = vmatpush1.msra.mxu0 0.0
  %3217 = vmatprep.subr.mxu0 0.0
  %3218 = vmatpush1.msra.mxu0 0.0
  %3219 = vmatprep.subr.mxu0 0.0
  %3220 = vmatpush1.msra.mxu0 0.0
  %3221 = vmatprep.subr.mxu0 0.0
  %3222 = vmatpush1.msra.mxu0 0.0
  %3223 = vmatprep.subr.mxu0 0.0
  %3224 = vmatpush1.msra.mxu0 0.0
  %3225 = vmatprep.subr.mxu0 0.0
  %3226 = vmatpush1.msra.mxu0 0.0
  %3227 = vmatprep.mubr.f32.mxu0 0.0
  %3228 = vmatmul.mubr.f32.gmra.mrb[0].mxu0 %v3152
  %v3229 = vpop.f32.mrb[0].mxu0
  %v3230 = vadd.f32 0.0, %v3229
  %v3231 = vpop.f32.mrb[0].mxu0
  %3232 = vmatprep.mubr.f32.mxu0 0.0
  %3233 = vmatmul.mubr.f32.gmra.mrb[0].mxu0 %v3155
  %v3234 = vpop.f32.mrb[0].mxu0
  %v3235 = vadd.f32 0.0, %v3234
  %v3236 = vpop.f32.mrb[0].mxu0
  %3237 = vmatprep.mubr.f32.mxu0 0.0
  %3238 = vmatmul.mubr.f32.gmra.mrb[0].mxu0 %v3158
  %v3239 = vpop.f32.mrb[0].mxu0
  %v3240 = vadd.f32 0.0, %v3239
  %v3241 = vpop.f32.mrb[0].mxu0
  %3242 = vmatprep.mubr.f32.mxu0 0.0
  %3243 = vmatmul.mubr.f32.gmra.mrb[0].mxu0 %v3161
  %v3244 = vpop.f32.mrb[0].mxu0
  %v3245 = vadd.f32 0.0, %v3244
  %v3246 = vpop.f32.mrb[0].mxu0
  %3247 = vdwg.mxu0
  %v3248 = vld [vmem:[%s1 + $0x170] sm:$0xff]
  %v3250 = vsel %vm582, %v3230, 0
  %v3253 = vsel %vm582, %v3235, 0
  %v3256 = vsel %vm582, %v3240, 0
  %v3259 = vsel %vm582, %v3245, 0
  %3261 = vmatprep.subr.mxu0 0.0
  %3262 = vmatpush1.msra.mxu0 %v3248
  %3263 = vmatprep.subr.mxu0 0.0
  %3264 = vmatpush1.msra.mxu0 0.0
  %3265 = vmatprep.subr.mxu0 0.0
  %3266 = vmatpush1.msra.mxu0 0.0
  %3267 = vmatprep.subr.mxu0 0.0
  %3268 = vmatpush1.msra.mxu0 0.0
  %3269 = vmatprep.subr.mxu0 0.0
  %3270 = vmatpush1.msra.mxu0 0.0
  %3271 = vmatprep.subr.mxu0 0.0
  %3272 = vmatpush1.msra.mxu0 0.0
  %3273 = vmatprep.subr.mxu0 0.0
  %3274 = vmatpush1.msra.mxu0 0.0
  %3275 = vmatprep.subr.mxu0 0.0
  %3276 = vmatpush1.msra.mxu0 0.0
  %3277 = vmatprep.subr.mxu0 0.0
  %3278 = vmatpush1.msra.mxu0 0.0
  %3279 = vmatprep.subr.mxu0 0.0
  %3280 = vmatpush1.msra.mxu0 0.0
  %3281 = vmatprep.subr.mxu0 0.0
  %3282 = vmatpush1.msra.mxu0 0.0
  %3283 = vmatprep.subr.mxu0 0.0
  %3284 = vmatpush1.msra.mxu0 0.0
  %3285 = vmatprep.subr.mxu0 0.0
  %3286 = vmatpush1.msra.mxu0 0.0
  %3287 = vmatprep.subr.mxu0 0.0
  %3288 = vmatpush1.msra.mxu0 0.0
  %3289 = vmatprep.subr.mxu0 0.0
  %3290 = vmatpush1.msra.mxu0 0.0
  %3291 = vmatprep.subr.mxu0 0.0
  %3292 = vmatpush1.msra.mxu0 0.0
  %3293 = vmatprep.subr.mxu0 0.0
  %3294 = vmatpush1.msra.mxu0 0.0
  %3295 = vmatprep.subr.mxu0 0.0
  %3296 = vmatpush1.msra.mxu0 0.0
  %3297 = vmatprep.subr.mxu0 0.0
  %3298 = vmatpush1.msra.mxu0 0.0
  %3299 = vmatprep.subr.mxu0 0.0
  %3300 = vmatpush1.msra.mxu0 0.0
  %3301 = vmatprep.subr.mxu0 0.0
  %3302 = vmatpush1.msra.mxu0 0.0
  %3303 = vmatprep.subr.mxu0 0.0
  %3304 = vmatpush1.msra.mxu0 0.0
  %3305 = vmatprep.subr.mxu0 0.0
  %3306 = vmatpush1.msra.mxu0 0.0
  %3307 = vmatprep.subr.mxu0 0.0
  %3308 = vmatpush1.msra.mxu0 0.0
  %3309 = vmatprep.subr.mxu0 0.0
  %3310 = vmatpush1.msra.mxu0 0.0
  %3311 = vmatprep.subr.mxu0 0.0
  %3312 = vmatpush1.msra.mxu0 0.0
  %3313 = vmatprep.subr.mxu0 0.0
  %3314 = vmatpush1.msra.mxu0 0.0
  %3315 = vmatprep.subr.mxu0 0.0
  %3316 = vmatpush1.msra.mxu0 0.0
  %3317 = vmatprep.subr.mxu0 0.0
  %3318 = vmatpush1.msra.mxu0 0.0
  %3319 = vmatprep.subr.mxu0 0.0
  %3320 = vmatpush1.msra.mxu0 0.0
  %3321 = vmatprep.subr.mxu0 0.0
  %3322 = vmatpush1.msra.mxu0 0.0
  %3323 = vmatprep.subr.mxu0 0.0
  %3324 = vmatpush1.msra.mxu0 0.0
  %3325 = vmatprep.mubr.f32.mxu0 0.0
  %3326 = vmatmul.mubr.f32.gmra.mrb[0].mxu0 %v3250
  %v3327 = vpop.f32.mrb[0].mxu0
  %v3328 = vadd.f32 0.0, %v3327
  %v3329 = vpop.f32.mrb[0].mxu0
  %3330 = vmatprep.mubr.f32.mxu0 0.0
  %3331 = vmatmul.mubr.f32.gmra.mrb[0].mxu0 %v3253
  %v3332 = vpop.f32.mrb[0].mxu0
  %v3333 = vadd.f32 0.0, %v3332
  %v3334 = vpop.f32.mrb[0].mxu0
  %3335 = vmatprep.mubr.f32.mxu0 0.0
  %3336 = vmatmul.mubr.f32.gmra.mrb[0].mxu0 %v3256
  %v3337 = vpop.f32.mrb[0].mxu0
  %v3338 = vadd.f32 0.0, %v3337
  %v3339 = vpop.f32.mrb[0].mxu0
  %3340 = vmatprep.mubr.f32.mxu0 0.0
  %3341 = vmatmul.mubr.f32.gmra.mrb[0].mxu0 %v3259
  %v3342 = vpop.f32.mrb[0].mxu0
  %v3343 = vadd.f32 0.0, %v3342
  %v3344 = vpop.f32.mrb[0].mxu0
  %3345 = vdwg.mxu0
  %v3347 = vsel %vm582, %v2955, 0
  %v3350 = vsel %vm582, %v2960, 0
  %v3353 = vsel %vm582, %v2965, 0
  %v3356 = vsel %vm582, %v2970, 0
  %3358 = vmatprep.subr.mxu0 0.0
  %3359 = vmatpush1.msra.mxu0 %v2973
  %3360 = vmatprep.subr.mxu0 0.0
  %3361 = vmatpush1.msra.mxu0 0.0
  %3362 = vmatprep.subr.mxu0 0.0
  %3363 = vmatpush1.msra.mxu0 0.0
  %3364 = vmatprep.subr.mxu0 0.0
  %3365 = vmatpush1.msra.mxu0 0.0
  %3366 = vmatprep.subr.mxu0 0.0
  %3367 = vmatpush1.msra.mxu0 0.0
  %3368 = vmatprep.subr.mxu0 0.0
  %3369 = vmatpush1.msra.mxu0 0.0
  %3370 = vmatprep.subr.mxu0 0.0
  %3371 = vmatpush1.msra.mxu0 0.0
  %3372 = vmatprep.subr.mxu0 0.0
  %3373 = vmatpush1.msra.mxu0 0.0
  %3374 = vmatprep.subr.mxu0 0.0
  %3375 = vmatpush1.msra.mxu0 0.0
  %3376 = vmatprep.subr.mxu0 0.0
  %3377 = vmatpush1.msra.mxu0 0.0
  %3378 = vmatprep.subr.mxu0 0.0
  %3379 = vmatpush1.msra.mxu0 0.0
  %3380 = vmatprep.subr.mxu0 0.0
  %3381 = vmatpush1.msra.mxu0 0.0
  %3382 = vmatprep.subr.mxu0 0.0
  %3383 = vmatpush1.msra.mxu0 0.0
  %3384 = vmatprep.subr.mxu0 0.0
  %3385 = vmatpush1.msra.mxu0 0.0
  %3386 = vmatprep.subr.mxu0 0.0
  %3387 = vmatpush1.msra.mxu0 0.0
  %3388 = vmatprep.subr.mxu0 0.0
  %3389 = vmatpush1.msra.mxu0 0.0
  %3390 = vmatprep.subr.mxu0 0.0
  %3391 = vmatpush1.msra.mxu0 0.0
  %3392 = vmatprep.subr.mxu0 0.0
  %3393 = vmatpush1.msra.mxu0 0.0
  %3394 = vmatprep.subr.mxu0 0.0
  %3395 = vmatpush1.msra.mxu0 0.0
  %3396 = vmatprep.subr.mxu0 0.0
  %3397 = vmatpush1.msra.mxu0 0.0
  %3398 = vmatprep.subr.mxu0 0.0
  %3399 = vmatpush1.msra.mxu0 0.0
  %3400 = vmatprep.subr.mxu0 0.0
  %3401 = vmatpush1.msra.mxu0 0.0
  %3402 = vmatprep.subr.mxu0 0.0
  %3403 = vmatpush1.msra.mxu0 0.0
  %3404 = vmatprep.subr.mxu0 0.0
  %3405 = vmatpush1.msra.mxu0 0.0
  %3406 = vmatprep.subr.mxu0 0.0
  %3407 = vmatpush1.msra.mxu0 0.0
  %3408 = vmatprep.subr.mxu0 0.0
  %3409 = vmatpush1.msra.mxu0 0.0
  %3410 = vmatprep.subr.mxu0 0.0
  %3411 = vmatpush1.msra.mxu0 0.0
  %3412 = vmatprep.subr.mxu0 0.0
  %3413 = vmatpush1.msra.mxu0 0.0
  %3414 = vmatprep.subr.mxu0 0.0
  %3415 = vmatpush1.msra.mxu0 0.0
  %3416 = vmatprep.subr.mxu0 0.0
  %3417 = vmatpush1.msra.mxu0 0.0
  %3418 = vmatprep.subr.mxu0 0.0
  %3419 = vmatpush1.msra.mxu0 0.0
  %3420 = vmatprep.subr.mxu0 0.0
  %3421 = vmatpush1.msra.mxu0 0.0
  %3422 = vmatprep.mubr.f32.mxu0 0.0
  %3423 = vmatmul.mubr.f32.gmra.mrb[0].mxu0 %v3347
  %v3424 = vpop.f32.mrb[0].mxu0
  %v3425 = vadd.f32 %v3328, %v3424
  %v3426 = vpop.f32.mrb[0].mxu0
  %3427 = vmatprep.mubr.f32.mxu0 0.0
  %3428 = vmatmul.mubr.f32.gmra.mrb[0].mxu0 %v3350
  %v3429 = vpop.f32.mrb[0].mxu0
  %v3430 = vadd.f32 %v3333, %v3429
  %v3431 = vpop.f32.mrb[0].mxu0
  %3432 = vmatprep.mubr.f32.mxu0 0.0
  %3433 = vmatmul.mubr.f32.gmra.mrb[0].mxu0 %v3353
  %v3434 = vpop.f32.mrb[0].mxu0
  %v3435 = vadd.f32 %v3338, %v3434
  %v3436 = vpop.f32.mrb[0].mxu0
  %3437 = vmatprep.mubr.f32.mxu0 0.0
  %3438 = vmatmul.mubr.f32.gmra.mrb[0].mxu0 %v3356
  %v3439 = vpop.f32.mrb[0].mxu0
  %v3440 = vadd.f32 %v3343, %v3439
  %v3441 = vpop.f32.mrb[0].mxu0
  %3442 = vdwg.mxu0
  %3443 = vrot.lane.b32.xlu0 %v2533, 112
  %v3444 = vpop.permute.xlu0 %3443
  %3445 = vrot.lane.b32.xlu0 %v2534, 112
  %v3446 = vpop.permute.xlu0 %3445
  %3447 = vrot.lane.b32.xlu0 %v2535, 112
  %v3448 = vpop.permute.xlu0 %3447
  %3449 = vrot.lane.b32.xlu0 %v2536, 112
  %v3450 = vpop.permute.xlu0 %3449
  %3451 = vrot.lane.b32.xlu0 %v2612, 112
  %v3452 = vpop.permute.xlu0 %3451
  %3453 = vrot.lane.b32.xlu0 %v2617, 112
  %v3454 = vpop.permute.xlu0 %3453
  %3455 = vrot.lane.b32.xlu0 %v2622, 112
  %v3456 = vpop.permute.xlu0 %3455
  %3457 = vrot.lane.b32.xlu0 %v2627, 112
  %v3458 = vpop.permute.xlu0 %3457
  %v3459 = vsel %vm582, %v3444, 0
  %v3461 = vsel %vm582, %v3446, 0
  %v3463 = vsel %vm582, %v3448, 0
  %v3465 = vsel %vm582, %v3450, 0
  %v3467 = vsel %vm582, %v3452, 0
  %v3469 = vsel %vm582, %v3454, 0
  %v3471 = vsel %vm582, %v3456, 0
  %v3473 = vsel %vm582, %v3458, 0
  %3475 = vmatprep.subr.mxu0 0.0
  %3476 = vmatpush1.xpose.msra.mxu0 %v3467
  %3477 = vmatprep.subr.mxu0 0.0
  %3478 = vmatpush1.xpose.msra.mxu0 %v3469
  %3479 = vmatprep.subr.mxu0 0.0
  %3480 = vmatpush1.xpose.msra.mxu0 %v3471
  %3481 = vmatprep.subr.mxu0 0.0
  %3482 = vmatpush1.xpose.msra.mxu0 %v3473
  %3483 = vmatprep.subr.mxu0 0.0
  %3484 = vmatpush1.xpose.msra.mxu0 0.0
  %3485 = vmatprep.subr.mxu0 0.0
  %3486 = vmatpush1.xpose.msra.mxu0 0.0
  %3487 = vmatprep.subr.mxu0 0.0
  %3488 = vmatpush1.xpose.msra.mxu0 0.0
  %3489 = vmatprep.subr.mxu0 0.0
  %3490 = vmatpush1.xpose.msra.mxu0 0.0
  %3491 = vmatprep.subr.mxu0 0.0
  %3492 = vmatpush1.xpose.msra.mxu0 0.0
  %3493 = vmatprep.subr.mxu0 0.0
  %3494 = vmatpush1.xpose.msra.mxu0 0.0
  %3495 = vmatprep.subr.mxu0 0.0
  %3496 = vmatpush1.xpose.msra.mxu0 0.0
  %3497 = vmatprep.subr.mxu0 0.0
  %3498 = vmatpush1.xpose.msra.mxu0 0.0
  %3499 = vmatprep.subr.mxu0 0.0
  %3500 = vmatpush1.xpose.msra.mxu0 0.0
  %3501 = vmatprep.subr.mxu0 0.0
  %3502 = vmatpush1.xpose.msra.mxu0 0.0
  %3503 = vmatprep.subr.mxu0 0.0
  %3504 = vmatpush1.xpose.msra.mxu0 0.0
  %3505 = vmatprep.subr.mxu0 0.0
  %3506 = vmatpush1.xpose.msra.mxu0 0.0
  %3507 = vmatprep.subr.mxu0 0.0
  %3508 = vmatpush1.xpose.msra.mxu0 0.0
  %3509 = vmatprep.subr.mxu0 0.0
  %3510 = vmatpush1.xpose.msra.mxu0 0.0
  %3511 = vmatprep.subr.mxu0 0.0
  %3512 = vmatpush1.xpose.msra.mxu0 0.0
  %3513 = vmatprep.subr.mxu0 0.0
  %3514 = vmatpush1.xpose.msra.mxu0 0.0
  %3515 = vmatprep.subr.mxu0 0.0
  %3516 = vmatpush1.xpose.msra.mxu0 0.0
  %3517 = vmatprep.subr.mxu0 0.0
  %3518 = vmatpush1.xpose.msra.mxu0 0.0
  %3519 = vmatprep.subr.mxu0 0.0
  %3520 = vmatpush1.xpose.msra.mxu0 0.0
  %3521 = vmatprep.subr.mxu0 0.0
  %3522 = vmatpush1.xpose.msra.mxu0 0.0
  %3523 = vmatprep.subr.mxu0 0.0
  %3524 = vmatpush1.xpose.msra.mxu0 0.0
  %3525 = vmatprep.subr.mxu0 0.0
  %3526 = vmatpush1.xpose.msra.mxu0 0.0
  %3527 = vmatprep.subr.mxu0 0.0
  %3528 = vmatpush1.xpose.msra.mxu0 0.0
  %3529 = vmatprep.subr.mxu0 0.0
  %3530 = vmatpush1.xpose.msra.mxu0 0.0
  %3531 = vmatprep.subr.mxu0 0.0
  %3532 = vmatpush1.xpose.msra.mxu0 0.0
  %3533 = vmatprep.subr.mxu0 0.0
  %3534 = vmatpush1.xpose.msra.mxu0 0.0
  %3535 = vmatprep.subr.mxu0 0.0
  %3536 = vmatpush1.xpose.msra.mxu0 0.0
  %3537 = vmatprep.subr.mxu0 0.0
  %3538 = vmatpush1.xpose.msra.mxu0 0.0
  %3539 = vmatprep.mubr.f32.mxu0 0.0
  %3540 = vmatmul.mubr.f32.gmra.mrb[0].mxu0 %v3459
  %v3541 = vpop.f32.mrb[0].mxu0
  %v3542 = vadd.f32 %v274, %v3541
  %v3543 = vpop.f32.mrb[0].mxu0
  %3544 = vmatprep.mubr.f32.mxu0 0.0
  %3545 = vmatmul.mubr.f32.gmra.mrb[0].mxu0 %v3461
  %v3546 = vpop.f32.mrb[0].mxu0
  %v3547 = vadd.f32 %v275, %v3546
  %v3548 = vpop.f32.mrb[0].mxu0
  %3549 = vmatprep.mubr.f32.mxu0 0.0
  %3550 = vmatmul.mubr.f32.gmra.mrb[0].mxu0 %v3463
  %v3551 = vpop.f32.mrb[0].mxu0
  %v3552 = vadd.f32 %v276, %v3551
  %v3553 = vpop.f32.mrb[0].mxu0
  %3554 = vmatprep.mubr.f32.mxu0 0.0
  %3555 = vmatmul.mubr.f32.gmra.mrb[0].mxu0 %v3465
  %v3556 = vpop.f32.mrb[0].mxu0
  %v3557 = vadd.f32 %v277, %v3556
  %v3558 = vpop.f32.mrb[0].mxu0
  %3559 = vdwg.mxu0
  %v3560 = vsel %vm133, %v3542, -inf
  %3561 = vmax.xlane.f32.xlu0 %v3560
  %v3562 = vpop.xlane.xlu0 %3561
  %v3563 = vsel %vm133, %v3547, -inf
  %3564 = vmax.xlane.f32.xlu0 %v3563
  %v3565 = vpop.xlane.xlu0 %3564
  %v3566 = vsel %vm133, %v3552, -inf
  %3567 = vmax.xlane.f32.xlu0 %v3566
  %v3568 = vpop.xlane.xlu0 %3567
  %v3569 = vsel %vm133, %v3557, -inf
  %3570 = vmax.xlane.f32.xlu0 %v3569
  %v3571 = vpop.xlane.xlu0 %3570
  %v3572 = vsub.f32 %v3542, %v3562
  %v3573 = vsub.f32 %v3547, %v3565
  %v3574 = vsub.f32 %v3552, %v3568
  %v3575 = vsub.f32 %v3557, %v3571
  %v3576 = vmul.f32 %v3572, 1.442695
  %v3577 = vpow.pop %v3576
  %v3578 = vmul.f32 %v3573, 1.442695
  %v3579 = vpow.pop %v3578
  %v3580 = vmul.f32 %v3574, 1.442695
  %v3581 = vpow.pop %v3580
  %v3582 = vmul.f32 %v3575, 1.442695
  %v3583 = vpow.pop %v3582
  %v3584 = vsel %vm133, %v3577, 0.0
  %3585 = vadd.xlane.f32.xlu0 %v3584
  %v3586 = vpop.xlane.xlu0 %3585
  %v3587 = vsel %vm133, %v3579, 0.0
  %3588 = vadd.xlane.f32.xlu0 %v3587
  %v3589 = vpop.xlane.xlu0 %3588
  %v3590 = vsel %vm133, %v3581, 0.0
  %3591 = vadd.xlane.f32.xlu0 %v3590
  %v3592 = vpop.xlane.xlu0 %3591
  %v3593 = vsel %vm133, %v3583, 0.0
  %3594 = vadd.xlane.f32.xlu0 %v3593
  %v3595 = vpop.xlane.xlu0 %3594
  %v3596 = vrcp.pop %v3586
  %v3597 = vrcp.pop %v3589
  %v3598 = vrcp.pop %v3592
  %v3599 = vrcp.pop %v3595
  %v3600 = vmul.f32 %v3577, %v3596
  %v3601 = vmul.f32 %v3579, %v3597
  %v3602 = vmul.f32 %v3581, %v3598
  %v3603 = vmul.f32 %v3583, %v3599
  %3604 = vrot.lane.b32.xlu0 %v2705, 112
  %v3605 = vpop.permute.xlu0 %3604
  %3606 = vrot.lane.b32.xlu0 %v2710, 112
  %v3607 = vpop.permute.xlu0 %3606
  %3608 = vrot.lane.b32.xlu0 %v2715, 112
  %v3609 = vpop.permute.xlu0 %3608
  %3610 = vrot.lane.b32.xlu0 %v2720, 112
  %v3611 = vpop.permute.xlu0 %3610
  %v3617 = vsel %vm133, %v3600, 0
  %v3620 = vsel %vm133, %v3601, 0
  %v3623 = vsel %vm133, %v3602, 0
  %v3626 = vsel %vm133, %v3603, 0
  %3628 = vmatprep.subr.mxu0 0.0
  %3629 = vmatpush1.msra.mxu0 %v3605
  %3630 = vmatprep.subr.mxu0 0.0
  %3631 = vmatpush1.msra.mxu0 %v3607
  %3632 = vmatprep.subr.mxu0 0.0
  %3633 = vmatpush1.msra.mxu0 %v3609
  %3634 = vmatprep.subr.mxu0 0.0
  %3635 = vmatpush1.msra.mxu0 %v3611
  %3636 = vmatprep.subr.mxu0 0.0
  %3637 = vmatpush1.msra.mxu0 0.0
  %3638 = vmatprep.subr.mxu0 0.0
  %3639 = vmatpush1.msra.mxu0 0.0
  %3640 = vmatprep.subr.mxu0 0.0
  %3641 = vmatpush1.msra.mxu0 0.0
  %3642 = vmatprep.subr.mxu0 0.0
  %3643 = vmatpush1.msra.mxu0 0.0
  %3644 = vmatprep.subr.mxu0 0.0
  %3645 = vmatpush1.msra.mxu0 0.0
  %3646 = vmatprep.subr.mxu0 0.0
  %3647 = vmatpush1.msra.mxu0 0.0
  %3648 = vmatprep.subr.mxu0 0.0
  %3649 = vmatpush1.msra.mxu0 0.0
  %3650 = vmatprep.subr.mxu0 0.0
  %3651 = vmatpush1.msra.mxu0 0.0
  %3652 = vmatprep.subr.mxu0 0.0
  %3653 = vmatpush1.msra.mxu0 0.0
  %3654 = vmatprep.subr.mxu0 0.0
  %3655 = vmatpush1.msra.mxu0 0.0
  %3656 = vmatprep.subr.mxu0 0.0
  %3657 = vmatpush1.msra.mxu0 0.0
  %3658 = vmatprep.subr.mxu0 0.0
  %3659 = vmatpush1.msra.mxu0 0.0
  %3660 = vmatprep.subr.mxu0 0.0
  %3661 = vmatpush1.msra.mxu0 0.0
  %3662 = vmatprep.subr.mxu0 0.0
  %3663 = vmatpush1.msra.mxu0 0.0
  %3664 = vmatprep.subr.mxu0 0.0
  %3665 = vmatpush1.msra.mxu0 0.0
  %3666 = vmatprep.subr.mxu0 0.0
  %3667 = vmatpush1.msra.mxu0 0.0
  %3668 = vmatprep.subr.mxu0 0.0
  %3669 = vmatpush1.msra.mxu0 0.0
  %3670 = vmatprep.subr.mxu0 0.0
  %3671 = vmatpush1.msra.mxu0 0.0
  %3672 = vmatprep.subr.mxu0 0.0
  %3673 = vmatpush1.msra.mxu0 0.0
  %3674 = vmatprep.subr.mxu0 0.0
  %3675 = vmatpush1.msra.mxu0 0.0
  %3676 = vmatprep.subr.mxu0 0.0
  %3677 = vmatpush1.msra.mxu0 0.0
  %3678 = vmatprep.subr.mxu0 0.0
  %3679 = vmatpush1.msra.mxu0 0.0
  %3680 = vmatprep.subr.mxu0 0.0
  %3681 = vmatpush1.msra.mxu0 0.0
  %3682 = vmatprep.subr.mxu0 0.0
  %3683 = vmatpush1.msra.mxu0 0.0
  %3684 = vmatprep.subr.mxu0 0.0
  %3685 = vmatpush1.msra.mxu0 0.0
  %3686 = vmatprep.subr.mxu0 0.0
  %3687 = vmatpush1.msra.mxu0 0.0
  %3688 = vmatprep.subr.mxu0 0.0
  %3689 = vmatpush1.msra.mxu0 0.0
  %3690 = vmatprep.subr.mxu0 0.0
  %3691 = vmatpush1.msra.mxu0 0.0
  %3692 = vmatprep.mubr.f32.mxu0 0.0
  %3693 = vmatmul.mubr.f32.gmra.mrb[0].mxu0 %v3617
  %v3694 = vpop.f32.mrb[0].mxu0
  %v3695 = vadd.f32 0.0, %v3694
  %v3696 = vpop.f32.mrb[0].mxu0
  %3697 = vmatprep.mubr.f32.mxu0 0.0
  %3698 = vmatmul.mubr.f32.gmra.mrb[0].mxu0 %v3620
  %v3699 = vpop.f32.mrb[0].mxu0
  %v3700 = vadd.f32 0.0, %v3699
  %v3701 = vpop.f32.mrb[0].mxu0
  %3702 = vmatprep.mubr.f32.mxu0 0.0
  %3703 = vmatmul.mubr.f32.gmra.mrb[0].mxu0 %v3623
  %v3704 = vpop.f32.mrb[0].mxu0
  %v3705 = vadd.f32 0.0, %v3704
  %v3706 = vpop.f32.mrb[0].mxu0
  %3707 = vmatprep.mubr.f32.mxu0 0.0
  %3708 = vmatmul.mubr.f32.gmra.mrb[0].mxu0 %v3626
  %v3709 = vpop.f32.mrb[0].mxu0
  %v3710 = vadd.f32 0.0, %v3709
  %v3711 = vpop.f32.mrb[0].mxu0
  %3712 = vdwg.mxu0
  %v3713 = vld [vmem:[%s1 + $0x178] sm:$0xff]
  %v3715 = vsel %vm582, %v3695, 0
  %v3718 = vsel %vm582, %v3700, 0
  %v3721 = vsel %vm582, %v3705, 0
  %v3724 = vsel %vm582, %v3710, 0
  %3726 = vmatprep.subr.mxu0 0.0
  %3727 = vmatpush1.msra.mxu0 %v3713
  %3728 = vmatprep.subr.mxu0 0.0
  %3729 = vmatpush1.msra.mxu0 0.0
  %3730 = vmatprep.subr.mxu0 0.0
  %3731 = vmatpush1.msra.mxu0 0.0
  %3732 = vmatprep.subr.mxu0 0.0
  %3733 = vmatpush1.msra.mxu0 0.0
  %3734 = vmatprep.subr.mxu0 0.0
  %3735 = vmatpush1.msra.mxu0 0.0
  %3736 = vmatprep.subr.mxu0 0.0
  %3737 = vmatpush1.msra.mxu0 0.0
  %3738 = vmatprep.subr.mxu0 0.0
  %3739 = vmatpush1.msra.mxu0 0.0
  %3740 = vmatprep.subr.mxu0 0.0
  %3741 = vmatpush1.msra.mxu0 0.0
  %3742 = vmatprep.subr.mxu0 0.0
  %3743 = vmatpush1.msra.mxu0 0.0
  %3744 = vmatprep.subr.mxu0 0.0
  %3745 = vmatpush1.msra.mxu0 0.0
  %3746 = vmatprep.subr.mxu0 0.0
  %3747 = vmatpush1.msra.mxu0 0.0
  %3748 = vmatprep.subr.mxu0 0.0
  %3749 = vmatpush1.msra.mxu0 0.0
  %3750 = vmatprep.subr.mxu0 0.0
  %3751 = vmatpush1.msra.mxu0 0.0
  %3752 = vmatprep.subr.mxu0 0.0
  %3753 = vmatpush1.msra.mxu0 0.0
  %3754 = vmatprep.subr.mxu0 0.0
  %3755 = vmatpush1.msra.mxu0 0.0
  %3756 = vmatprep.subr.mxu0 0.0
  %3757 = vmatpush1.msra.mxu0 0.0
  %3758 = vmatprep.subr.mxu0 0.0
  %3759 = vmatpush1.msra.mxu0 0.0
  %3760 = vmatprep.subr.mxu0 0.0
  %3761 = vmatpush1.msra.mxu0 0.0
  %3762 = vmatprep.subr.mxu0 0.0
  %3763 = vmatpush1.msra.mxu0 0.0
  %3764 = vmatprep.subr.mxu0 0.0
  %3765 = vmatpush1.msra.mxu0 0.0
  %3766 = vmatprep.subr.mxu0 0.0
  %3767 = vmatpush1.msra.mxu0 0.0
  %3768 = vmatprep.subr.mxu0 0.0
  %3769 = vmatpush1.msra.mxu0 0.0
  %3770 = vmatprep.subr.mxu0 0.0
  %3771 = vmatpush1.msra.mxu0 0.0
  %3772 = vmatprep.subr.mxu0 0.0
  %3773 = vmatpush1.msra.mxu0 0.0
  %3774 = vmatprep.subr.mxu0 0.0
  %3775 = vmatpush1.msra.mxu0 0.0
  %3776 = vmatprep.subr.mxu0 0.0
  %3777 = vmatpush1.msra.mxu0 0.0
  %3778 = vmatprep.subr.mxu0 0.0
  %3779 = vmatpush1.msra.mxu0 0.0
  %3780 = vmatprep.subr.mxu0 0.0
  %3781 = vmatpush1.msra.mxu0 0.0
  %3782 = vmatprep.subr.mxu0 0.0
  %3783 = vmatpush1.msra.mxu0 0.0
  %3784 = vmatprep.subr.mxu0 0.0
  %3785 = vmatpush1.msra.mxu0 0.0
  %3786 = vmatprep.subr.mxu0 0.0
  %3787 = vmatpush1.msra.mxu0 0.0
  %3788 = vmatprep.subr.mxu0 0.0
  %3789 = vmatpush1.msra.mxu0 0.0
  %3790 = vmatprep.mubr.f32.mxu0 0.0
  %3791 = vmatmul.mubr.f32.gmra.mrb[0].mxu0 %v3715
  %v3792 = vpop.f32.mrb[0].mxu0
  %v3793 = vadd.f32 0.0, %v3792
  %v3794 = vpop.f32.mrb[0].mxu0
  %3795 = vmatprep.mubr.f32.mxu0 0.0
  %3796 = vmatmul.mubr.f32.gmra.mrb[0].mxu0 %v3718
  %v3797 = vpop.f32.mrb[0].mxu0
  %v3798 = vadd.f32 0.0, %v3797
  %v3799 = vpop.f32.mrb[0].mxu0
  %3800 = vmatprep.mubr.f32.mxu0 0.0
  %3801 = vmatmul.mubr.f32.gmra.mrb[0].mxu0 %v3721
  %v3802 = vpop.f32.mrb[0].mxu0
  %v3803 = vadd.f32 0.0, %v3802
  %v3804 = vpop.f32.mrb[0].mxu0
  %3805 = vmatprep.mubr.f32.mxu0 0.0
  %3806 = vmatmul.mubr.f32.gmra.mrb[0].mxu0 %v3724
  %v3807 = vpop.f32.mrb[0].mxu0
  %v3808 = vadd.f32 0.0, %v3807
  %v3809 = vpop.f32.mrb[0].mxu0
  %3810 = vdwg.mxu0
  %v3811 = vadd.f32 %v3425, %v3793
  %v3812 = vadd.f32 %v3430, %v3798
  %v3813 = vadd.f32 %v3435, %v3803
  %v3814 = vadd.f32 %v3440, %v3808
  %3815 = vrot.lane.b32.xlu0 %v2533, 104
  %v3816 = vpop.permute.xlu0 %3815
  %3817 = vrot.lane.b32.xlu0 %v2534, 104
  %v3818 = vpop.permute.xlu0 %3817
  %3819 = vrot.lane.b32.xlu0 %v2535, 104
  %v3820 = vpop.permute.xlu0 %3819
  %3821 = vrot.lane.b32.xlu0 %v2536, 104
  %v3822 = vpop.permute.xlu0 %3821
  %3823 = vrot.lane.b32.xlu0 %v2612, 104
  %v3824 = vpop.permute.xlu0 %3823
  %3825 = vrot.lane.b32.xlu0 %v2617, 104
  %v3826 = vpop.permute.xlu0 %3825
  %3827 = vrot.lane.b32.xlu0 %v2622, 104
  %v3828 = vpop.permute.xlu0 %3827
  %3829 = vrot.lane.b32.xlu0 %v2627, 104
  %v3830 = vpop.permute.xlu0 %3829
  %v3831 = vsel %vm582, %v3816, 0
  %v3833 = vsel %vm582, %v3818, 0
  %v3835 = vsel %vm582, %v3820, 0
  %v3837 = vsel %vm582, %v3822, 0
  %v3839 = vsel %vm582, %v3824, 0
  %v3841 = vsel %vm582, %v3826, 0
  %v3843 = vsel %vm582, %v3828, 0
  %v3845 = vsel %vm582, %v3830, 0
  %3847 = vmatprep.subr.mxu0 0.0
  %3848 = vmatpush1.xpose.msra.mxu0 %v3839
  %3849 = vmatprep.subr.mxu0 0.0
  %3850 = vmatpush1.xpose.msra.mxu0 %v3841
  %3851 = vmatprep.subr.mxu0 0.0
  %3852 = vmatpush1.xpose.msra.mxu0 %v3843
  %3853 = vmatprep.subr.mxu0 0.0
  %3854 = vmatpush1.xpose.msra.mxu0 %v3845
  %3855 = vmatprep.subr.mxu0 0.0
  %3856 = vmatpush1.xpose.msra.mxu0 0.0
  %3857 = vmatprep.subr.mxu0 0.0
  %3858 = vmatpush1.xpose.msra.mxu0 0.0
  %3859 = vmatprep.subr.mxu0 0.0
  %3860 = vmatpush1.xpose.msra.mxu0 0.0
  %3861 = vmatprep.subr.mxu0 0.0
  %3862 = vmatpush1.xpose.msra.mxu0 0.0
  %3863 = vmatprep.subr.mxu0 0.0
  %3864 = vmatpush1.xpose.msra.mxu0 0.0
  %3865 = vmatprep.subr.mxu0 0.0
  %3866 = vmatpush1.xpose.msra.mxu0 0.0
  %3867 = vmatprep.subr.mxu0 0.0
  %3868 = vmatpush1.xpose.msra.mxu0 0.0
  %3869 = vmatprep.subr.mxu0 0.0
  %3870 = vmatpush1.xpose.msra.mxu0 0.0
  %3871 = vmatprep.subr.mxu0 0.0
  %3872 = vmatpush1.xpose.msra.mxu0 0.0
  %3873 = vmatprep.subr.mxu0 0.0
  %3874 = vmatpush1.xpose.msra.mxu0 0.0
  %3875 = vmatprep.subr.mxu0 0.0
  %3876 = vmatpush1.xpose.msra.mxu0 0.0
  %3877 = vmatprep.subr.mxu0 0.0
  %3878 = vmatpush1.xpose.msra.mxu0 0.0
  %3879 = vmatprep.subr.mxu0 0.0
  %3880 = vmatpush1.xpose.msra.mxu0 0.0
  %3881 = vmatprep.subr.mxu0 0.0
  %3882 = vmatpush1.xpose.msra.mxu0 0.0
  %3883 = vmatprep.subr.mxu0 0.0
  %3884 = vmatpush1.xpose.msra.mxu0 0.0
  %3885 = vmatprep.subr.mxu0 0.0
  %3886 = vmatpush1.xpose.msra.mxu0 0.0
  %3887 = vmatprep.subr.mxu0 0.0
  %3888 = vmatpush1.xpose.msra.mxu0 0.0
  %3889 = vmatprep.subr.mxu0 0.0
  %3890 = vmatpush1.xpose.msra.mxu0 0.0
  %3891 = vmatprep.subr.mxu0 0.0
  %3892 = vmatpush1.xpose.msra.mxu0 0.0
  %3893 = vmatprep.subr.mxu0 0.0
  %3894 = vmatpush1.xpose.msra.mxu0 0.0
  %3895 = vmatprep.subr.mxu0 0.0
  %3896 = vmatpush1.xpose.msra.mxu0 0.0
  %3897 = vmatprep.subr.mxu0 0.0
  %3898 = vmatpush1.xpose.msra.mxu0 0.0
  %3899 = vmatprep.subr.mxu0 0.0
  %3900 = vmatpush1.xpose.msra.mxu0 0.0
  %3901 = vmatprep.subr.mxu0 0.0
  %3902 = vmatpush1.xpose.msra.mxu0 0.0
  %3903 = vmatprep.subr.mxu0 0.0
  %3904 = vmatpush1.xpose.msra.mxu0 0.0
  %3905 = vmatprep.subr.mxu0 0.0
  %3906 = vmatpush1.xpose.msra.mxu0 0.0
  %3907 = vmatprep.subr.mxu0 0.0
  %3908 = vmatpush1.xpose.msra.mxu0 0.0
  %3909 = vmatprep.subr.mxu0 0.0
  %3910 = vmatpush1.xpose.msra.mxu0 0.0
  %3911 = vmatprep.mubr.f32.mxu0 0.0
  %3912 = vmatmul.mubr.f32.gmra.mrb[0].mxu0 %v3831
  %v3913 = vpop.f32.mrb[0].mxu0
  %v3914 = vadd.f32 %v274, %v3913
  %v3915 = vpop.f32.mrb[0].mxu0
  %3916 = vmatprep.mubr.f32.mxu0 0.0
  %3917 = vmatmul.mubr.f32.gmra.mrb[0].mxu0 %v3833
  %v3918 = vpop.f32.mrb[0].mxu0
  %v3919 = vadd.f32 %v275, %v3918
  %v3920 = vpop.f32.mrb[0].mxu0
  %3921 = vmatprep.mubr.f32.mxu0 0.0
  %3922 = vmatmul.mubr.f32.gmra.mrb[0].mxu0 %v3835
  %v3923 = vpop.f32.mrb[0].mxu0
  %v3924 = vadd.f32 %v276, %v3923
  %v3925 = vpop.f32.mrb[0].mxu0
  %3926 = vmatprep.mubr.f32.mxu0 0.0
  %3927 = vmatmul.mubr.f32.gmra.mrb[0].mxu0 %v3837
  %v3928 = vpop.f32.mrb[0].mxu0
  %v3929 = vadd.f32 %v277, %v3928
  %v3930 = vpop.f32.mrb[0].mxu0
  %3931 = vdwg.mxu0
  %v3932 = vsel %vm133, %v3914, -inf
  %3933 = vmax.xlane.f32.xlu0 %v3932
  %v3934 = vpop.xlane.xlu0 %3933
  %v3935 = vsel %vm133, %v3919, -inf
  %3936 = vmax.xlane.f32.xlu0 %v3935
  %v3937 = vpop.xlane.xlu0 %3936
  %v3938 = vsel %vm133, %v3924, -inf
  %3939 = vmax.xlane.f32.xlu0 %v3938
  %v3940 = vpop.xlane.xlu0 %3939
  %v3941 = vsel %vm133, %v3929, -inf
  %3942 = vmax.xlane.f32.xlu0 %v3941
  %v3943 = vpop.xlane.xlu0 %3942
  %v3944 = vsub.f32 %v3914, %v3934
  %v3945 = vsub.f32 %v3919, %v3937
  %v3946 = vsub.f32 %v3924, %v3940
  %v3947 = vsub.f32 %v3929, %v3943
  %v3948 = vmul.f32 %v3944, 1.442695
  %v3949 = vpow.pop %v3948
  %v3950 = vmul.f32 %v3945, 1.442695
  %v3951 = vpow.pop %v3950
  %v3952 = vmul.f32 %v3946, 1.442695
  %v3953 = vpow.pop %v3952
  %v3954 = vmul.f32 %v3947, 1.442695
  %v3955 = vpow.pop %v3954
  %v3956 = vsel %vm133, %v3949, 0.0
  %3957 = vadd.xlane.f32.xlu0 %v3956
  %v3958 = vpop.xlane.xlu0 %3957
  %v3959 = vsel %vm133, %v3951, 0.0
  %3960 = vadd.xlane.f32.xlu0 %v3959
  %v3961 = vpop.xlane.xlu0 %3960
  %v3962 = vsel %vm133, %v3953, 0.0
  %3963 = vadd.xlane.f32.xlu0 %v3962
  %v3964 = vpop.xlane.xlu0 %3963
  %v3965 = vsel %vm133, %v3955, 0.0
  %3966 = vadd.xlane.f32.xlu0 %v3965
  %v3967 = vpop.xlane.xlu0 %3966
  %v3968 = vrcp.pop %v3958
  %v3969 = vrcp.pop %v3961
  %v3970 = vrcp.pop %v3964
  %v3971 = vrcp.pop %v3967
  %v3972 = vmul.f32 %v3949, %v3968
  %v3973 = vmul.f32 %v3951, %v3969
  %v3974 = vmul.f32 %v3953, %v3970
  %v3975 = vmul.f32 %v3955, %v3971
  %3976 = vrot.lane.b32.xlu0 %v2705, 104
  %v3977 = vpop.permute.xlu0 %3976
  %3978 = vrot.lane.b32.xlu0 %v2710, 104
  %v3979 = vpop.permute.xlu0 %3978
  %3980 = vrot.lane.b32.xlu0 %v2715, 104
  %v3981 = vpop.permute.xlu0 %3980
  %3982 = vrot.lane.b32.xlu0 %v2720, 104
  %v3983 = vpop.permute.xlu0 %3982
  %v3989 = vsel %vm133, %v3972, 0
  %v3992 = vsel %vm133, %v3973, 0
  %v3995 = vsel %vm133, %v3974, 0
  %v3998 = vsel %vm133, %v3975, 0
  %4000 = vmatprep.subr.mxu0 0.0
  %4001 = vmatpush1.msra.mxu0 %v3977
  %4002 = vmatprep.subr.mxu0 0.0
  %4003 = vmatpush1.msra.mxu0 %v3979
  %4004 = vmatprep.subr.mxu0 0.0
  %4005 = vmatpush1.msra.mxu0 %v3981
  %4006 = vmatprep.subr.mxu0 0.0
  %4007 = vmatpush1.msra.mxu0 %v3983
  %4008 = vmatprep.subr.mxu0 0.0
  %4009 = vmatpush1.msra.mxu0 0.0
  %4010 = vmatprep.subr.mxu0 0.0
  %4011 = vmatpush1.msra.mxu0 0.0
  %4012 = vmatprep.subr.mxu0 0.0
  %4013 = vmatpush1.msra.mxu0 0.0
  %4014 = vmatprep.subr.mxu0 0.0
  %4015 = vmatpush1.msra.mxu0 0.0
  %4016 = vmatprep.subr.mxu0 0.0
  %4017 = vmatpush1.msra.mxu0 0.0
  %4018 = vmatprep.subr.mxu0 0.0
  %4019 = vmatpush1.msra.mxu0 0.0
  %4020 = vmatprep.subr.mxu0 0.0
  %4021 = vmatpush1.msra.mxu0 0.0
  %4022 = vmatprep.subr.mxu0 0.0
  %4023 = vmatpush1.msra.mxu0 0.0
  %4024 = vmatprep.subr.mxu0 0.0
  %4025 = vmatpush1.msra.mxu0 0.0
  %4026 = vmatprep.subr.mxu0 0.0
  %4027 = vmatpush1.msra.mxu0 0.0
  %4028 = vmatprep.subr.mxu0 0.0
  %4029 = vmatpush1.msra.mxu0 0.0
  %4030 = vmatprep.subr.mxu0 0.0
  %4031 = vmatpush1.msra.mxu0 0.0
  %4032 = vmatprep.subr.mxu0 0.0
  %4033 = vmatpush1.msra.mxu0 0.0
  %4034 = vmatprep.subr.mxu0 0.0
  %4035 = vmatpush1.msra.mxu0 0.0
  %4036 = vmatprep.subr.mxu0 0.0
  %4037 = vmatpush1.msra.mxu0 0.0
  %4038 = vmatprep.subr.mxu0 0.0
  %4039 = vmatpush1.msra.mxu0 0.0
  %4040 = vmatprep.subr.mxu0 0.0
  %4041 = vmatpush1.msra.mxu0 0.0
  %4042 = vmatprep.subr.mxu0 0.0
  %4043 = vmatpush1.msra.mxu0 0.0
  %4044 = vmatprep.subr.mxu0 0.0
  %4045 = vmatpush1.msra.mxu0 0.0
  %4046 = vmatprep.subr.mxu0 0.0
  %4047 = vmatpush1.msra.mxu0 0.0
  %4048 = vmatprep.subr.mxu0 0.0
  %4049 = vmatpush1.msra.mxu0 0.0
  %4050 = vmatprep.subr.mxu0 0.0
  %4051 = vmatpush1.msra.mxu0 0.0
  %4052 = vmatprep.subr.mxu0 0.0
  %4053 = vmatpush1.msra.mxu0 0.0
  %4054 = vmatprep.subr.mxu0 0.0
  %4055 = vmatpush1.msra.mxu0 0.0
  %4056 = vmatprep.subr.mxu0 0.0
  %4057 = vmatpush1.msra.mxu0 0.0
  %4058 = vmatprep.subr.mxu0 0.0
  %4059 = vmatpush1.msra.mxu0 0.0
  %4060 = vmatprep.subr.mxu0 0.0
  %4061 = vmatpush1.msra.mxu0 0.0
  %4062 = vmatprep.subr.mxu0 0.0
  %4063 = vmatpush1.msra.mxu0 0.0
  %4064 = vmatprep.mubr.f32.mxu0 0.0
  %4065 = vmatmul.mubr.f32.gmra.mrb[0].mxu0 %v3989
  %v4066 = vpop.f32.mrb[0].mxu0
  %v4067 = vadd.f32 0.0, %v4066
  %v4068 = vpop.f32.mrb[0].mxu0
  %4069 = vmatprep.mubr.f32.mxu0 0.0
  %4070 = vmatmul.mubr.f32.gmra.mrb[0].mxu0 %v3992
  %v4071 = vpop.f32.mrb[0].mxu0
  %v4072 = vadd.f32 0.0, %v4071
  %v4073 = vpop.f32.mrb[0].mxu0
  %4074 = vmatprep.mubr.f32.mxu0 0.0
  %4075 = vmatmul.mubr.f32.gmra.mrb[0].mxu0 %v3995
  %v4076 = vpop.f32.mrb[0].mxu0
  %v4077 = vadd.f32 0.0, %v4076
  %v4078 = vpop.f32.mrb[0].mxu0
  %4079 = vmatprep.mubr.f32.mxu0 0.0
  %4080 = vmatmul.mubr.f32.gmra.mrb[0].mxu0 %v3998
  %v4081 = vpop.f32.mrb[0].mxu0
  %v4082 = vadd.f32 0.0, %v4081
  %v4083 = vpop.f32.mrb[0].mxu0
  %4084 = vdwg.mxu0
  %v4085 = vld [vmem:[%s1 + $0x180] sm:$0xff]
  %v4087 = vsel %vm582, %v4067, 0
  %v4090 = vsel %vm582, %v4072, 0
  %v4093 = vsel %vm582, %v4077, 0
  %v4096 = vsel %vm582, %v4082, 0
  %4098 = vmatprep.subr.mxu0 0.0
  %4099 = vmatpush1.msra.mxu0 %v4085
  %4100 = vmatprep.subr.mxu0 0.0
  %4101 = vmatpush1.msra.mxu0 0.0
  %4102 = vmatprep.subr.mxu0 0.0
  %4103 = vmatpush1.msra.mxu0 0.0
  %4104 = vmatprep.subr.mxu0 0.0
  %4105 = vmatpush1.msra.mxu0 0.0
  %4106 = vmatprep.subr.mxu0 0.0
  %4107 = vmatpush1.msra.mxu0 0.0
  %4108 = vmatprep.subr.mxu0 0.0
  %4109 = vmatpush1.msra.mxu0 0.0
  %4110 = vmatprep.subr.mxu0 0.0
  %4111 = vmatpush1.msra.mxu0 0.0
  %4112 = vmatprep.subr.mxu0 0.0
  %4113 = vmatpush1.msra.mxu0 0.0
  %4114 = vmatprep.subr.mxu0 0.0
  %4115 = vmatpush1.msra.mxu0 0.0
  %4116 = vmatprep.subr.mxu0 0.0
  %4117 = vmatpush1.msra.mxu0 0.0
  %4118 = vmatprep.subr.mxu0 0.0
  %4119 = vmatpush1.msra.mxu0 0.0
  %4120 = vmatprep.subr.mxu0 0.0
  %4121 = vmatpush1.msra.mxu0 0.0
  %4122 = vmatprep.subr.mxu0 0.0
  %4123 = vmatpush1.msra.mxu0 0.0
  %4124 = vmatprep.subr.mxu0 0.0
  %4125 = vmatpush1.msra.mxu0 0.0
  %4126 = vmatprep.subr.mxu0 0.0
  %4127 = vmatpush1.msra.mxu0 0.0
  %4128 = vmatprep.subr.mxu0 0.0
  %4129 = vmatpush1.msra.mxu0 0.0
  %4130 = vmatprep.subr.mxu0 0.0
  %4131 = vmatpush1.msra.mxu0 0.0
  %4132 = vmatprep.subr.mxu0 0.0
  %4133 = vmatpush1.msra.mxu0 0.0
  %4134 = vmatprep.subr.mxu0 0.0
  %4135 = vmatpush1.msra.mxu0 0.0
  %4136 = vmatprep.subr.mxu0 0.0
  %4137 = vmatpush1.msra.mxu0 0.0
  %4138 = vmatprep.subr.mxu0 0.0
  %4139 = vmatpush1.msra.mxu0 0.0
  %4140 = vmatprep.subr.mxu0 0.0
  %4141 = vmatpush1.msra.mxu0 0.0
  %4142 = vmatprep.subr.mxu0 0.0
  %4143 = vmatpush1.msra.mxu0 0.0
  %4144 = vmatprep.subr.mxu0 0.0
  %4145 = vmatpush1.msra.mxu0 0.0
  %4146 = vmatprep.subr.mxu0 0.0
  %4147 = vmatpush1.msra.mxu0 0.0
  %4148 = vmatprep.subr.mxu0 0.0
  %4149 = vmatpush1.msra.mxu0 0.0
  %4150 = vmatprep.subr.mxu0 0.0
  %4151 = vmatpush1.msra.mxu0 0.0
  %4152 = vmatprep.subr.mxu0 0.0
  %4153 = vmatpush1.msra.mxu0 0.0
  %4154 = vmatprep.subr.mxu0 0.0
  %4155 = vmatpush1.msra.mxu0 0.0
  %4156 = vmatprep.subr.mxu0 0.0
  %4157 = vmatpush1.msra.mxu0 0.0
  %4158 = vmatprep.subr.mxu0 0.0
  %4159 = vmatpush1.msra.mxu0 0.0
  %4160 = vmatprep.subr.mxu0 0.0
  %4161 = vmatpush1.msra.mxu0 0.0
  %4162 = vmatprep.mubr.f32.mxu0 0.0
  %4163 = vmatmul.mubr.f32.gmra.mrb[0].mxu0 %v4087
  %v4164 = vpop.f32.mrb[0].mxu0
  %v4165 = vadd.f32 0.0, %v4164
  %v4166 = vpop.f32.mrb[0].mxu0
  %4167 = vmatprep.mubr.f32.mxu0 0.0
  %4168 = vmatmul.mubr.f32.gmra.mrb[0].mxu0 %v4090
  %v4169 = vpop.f32.mrb[0].mxu0
  %v4170 = vadd.f32 0.0, %v4169
  %v4171 = vpop.f32.mrb[0].mxu0
  %4172 = vmatprep.mubr.f32.mxu0 0.0
  %4173 = vmatmul.mubr.f32.gmra.mrb[0].mxu0 %v4093
  %v4174 = vpop.f32.mrb[0].mxu0
  %v4175 = vadd.f32 0.0, %v4174
  %v4176 = vpop.f32.mrb[0].mxu0
  %4177 = vmatprep.mubr.f32.mxu0 0.0
  %4178 = vmatmul.mubr.f32.gmra.mrb[0].mxu0 %v4096
  %v4179 = vpop.f32.mrb[0].mxu0
  %v4180 = vadd.f32 0.0, %v4179
  %v4181 = vpop.f32.mrb[0].mxu0
  %4182 = vdwg.mxu0
  %v4183 = vadd.f32 %v3811, %v4165
  %v4184 = vadd.f32 %v3812, %v4170
  %v4185 = vadd.f32 %v3813, %v4175
  %v4186 = vadd.f32 %v3814, %v4180
  %v4187 = vlaneseq
  %v4188 = vshrl.u32 %v4187, 7
  %v4189 = vsub.s32 0, %v4188
  %v4190 = vrot.slane %v2422, %v4189
  %v4191 = vadd.f32 %v4183, %v4190
  %v4192 = vadd.f32 %v4184, %v4190
  %v4193 = vadd.f32 %v4185, %v4190
  %v4194 = vadd.f32 %v4186, %v4190
  %v4195 = vadd.f32 %v2415, %v4191
  %v4196 = vadd.f32 %v2416, %v4192
  %v4197 = vadd.f32 %v2417, %v4193
  %v4198 = vadd.f32 %v2418, %v4194
  %v4199 = vsel %vm133, %v4195, 0.0
  %4200 = vadd.xlane.f32.xlu0 %v4199
  %v4201 = vpop.xlane.xlu0 %4200
  %v4202 = vsel %vm133, %v4196, 0.0
  %4203 = vadd.xlane.f32.xlu0 %v4202
  %v4204 = vpop.xlane.xlu0 %4203
  %v4205 = vsel %vm133, %v4197, 0.0
  %4206 = vadd.xlane.f32.xlu0 %v4205
  %v4207 = vpop.xlane.xlu0 %4206
  %v4208 = vsel %vm133, %v4198, 0.0
  %4209 = vadd.xlane.f32.xlu0 %v4208
  %v4210 = vpop.xlane.xlu0 %4209
  %v4211 = vmul.f32 %v4201, %v146
  %v4212 = vmul.f32 %v4204, %v146
  %v4213 = vmul.f32 %v4207, %v146
  %v4214 = vmul.f32 %v4210, %v146
  %v4215 = vsub.f32 %v4195, %v4211
  %v4216 = vsub.f32 %v4196, %v4212
  %v4217 = vsub.f32 %v4197, %v4213
  %v4218 = vsub.f32 %v4198, %v4214
  %v4219 = vmul.f32 %v4215, %v4215
  %v4220 = vmul.f32 %v4216, %v4216
  %v4221 = vmul.f32 %v4217, %v4217
  %v4222 = vmul.f32 %v4218, %v4218
  %v4223 = vsel %vm133, %v4219, 0.0
  %4224 = vadd.xlane.f32.xlu0 %v4223
  %v4225 = vpop.xlane.xlu0 %4224
  %v4226 = vsel %vm133, %v4220, 0.0
  %4227 = vadd.xlane.f32.xlu0 %v4226
  %v4228 = vpop.xlane.xlu0 %4227
  %v4229 = vsel %vm133, %v4221, 0.0
  %4230 = vadd.xlane.f32.xlu0 %v4229
  %v4231 = vpop.xlane.xlu0 %4230
  %v4232 = vsel %vm133, %v4222, 0.0
  %4233 = vadd.xlane.f32.xlu0 %v4232
  %v4234 = vpop.xlane.xlu0 %4233
  %v4235 = vmul.f32 %v4225, %v146
  %v4236 = vmul.f32 %v4228, %v146
  %v4237 = vmul.f32 %v4231, %v146
  %v4238 = vmul.f32 %v4234, %v146
  %v4239 = vadd.f32 %v4235, 1e-05
  %v4240 = vadd.f32 %v4236, 1e-05
  %v4241 = vadd.f32 %v4237, 1e-05
  %v4242 = vadd.f32 %v4238, 1e-05
  %v4243 = vrsqrt.pop %v4239
  %v4244 = vrsqrt.pop %v4240
  %v4245 = vrsqrt.pop %v4241
  %v4246 = vrsqrt.pop %v4242
  %v4247 = vmul.f32 %v4215, %v4243
  %v4248 = vmul.f32 %v4216, %v4244
  %v4249 = vmul.f32 %v4217, %v4245
  %v4250 = vmul.f32 %v4218, %v4246
  %v4251 = vlaneseq
  %v4252 = vshrl.u32 %v4251, 7
  %v4253 = vsub.s32 0, %v4252
  %v4254 = vrot.slane %v2424, %v4253
  %v4255 = vmul.f32 %v4247, %v4254
  %v4256 = vmul.f32 %v4248, %v4254
  %v4257 = vmul.f32 %v4249, %v4254
  %v4258 = vmul.f32 %v4250, %v4254
  %v4259 = vlaneseq
  %v4260 = vshrl.u32 %v4259, 7
  %v4261 = vsub.s32 0, %v4260
  %v4262 = vrot.slane %v2425, %v4261
  %v4263 = vadd.f32 %v4255, %v4262
  %v4264 = vadd.f32 %v4256, %v4262
  %v4265 = vadd.f32 %v4257, %v4262
  %v4266 = vadd.f32 %v4258, %v4262
  %v4267 = vld [vmem:[%s2 + $0x28] sm:$0xff]
  %v4268 = vld [vmem:[%s2 + $0x30] sm:$0xff]
  %v4269 = vld [vmem:[%s2 + $0x38] sm:$0xff]
  %v4270 = vld [vmem:[%s2 + $0x40] sm:$0xff]
  %v4271 = vld [vmem:[%s2 + $0x48] sm:$0x1]
  %v4272 = vlaneseq
  %v4273 = vshrl.u32 %v4272, 7
  %v4274 = vsub.s32 0, %v4273
  %v4275 = vrot.slane %v4271, %v4274
  %v4277 = vsel %vm133, %v4263, 0
  %v4280 = vsel %vm133, %v4264, 0
  %v4283 = vsel %vm133, %v4265, 0
  %v4286 = vsel %vm133, %v4266, 0
  %4288 = vmatprep.subr.mxu0 0.0
  %4289 = vmatpush1.msra.mxu0 %v4267
  %4290 = vmatprep.subr.mxu0 0.0
  %4291 = vmatpush1.msra.mxu0 %v4268
  %4292 = vmatprep.subr.mxu0 0.0
  %4293 = vmatpush1.msra.mxu0 %v4269
  %4294 = vmatprep.subr.mxu0 0.0
  %4295 = vmatpush1.msra.mxu0 %v4270
  %4296 = vmatprep.subr.mxu0 0.0
  %4297 = vmatpush1.msra.mxu0 0.0
  %4298 = vmatprep.subr.mxu0 0.0
  %4299 = vmatpush1.msra.mxu0 0.0
  %4300 = vmatprep.subr.mxu0 0.0
  %4301 = vmatpush1.msra.mxu0 0.0
  %4302 = vmatprep.subr.mxu0 0.0
  %4303 = vmatpush1.msra.mxu0 0.0
  %4304 = vmatprep.subr.mxu0 0.0
  %4305 = vmatpush1.msra.mxu0 0.0
  %4306 = vmatprep.subr.mxu0 0.0
  %4307 = vmatpush1.msra.mxu0 0.0
  %4308 = vmatprep.subr.mxu0 0.0
  %4309 = vmatpush1.msra.mxu0 0.0
  %4310 = vmatprep.subr.mxu0 0.0
  %4311 = vmatpush1.msra.mxu0 0.0
  %4312 = vmatprep.subr.mxu0 0.0
  %4313 = vmatpush1.msra.mxu0 0.0
  %4314 = vmatprep.subr.mxu0 0.0
  %4315 = vmatpush1.msra.mxu0 0.0
  %4316 = vmatprep.subr.mxu0 0.0
  %4317 = vmatpush1.msra.mxu0 0.0
  %4318 = vmatprep.subr.mxu0 0.0
  %4319 = vmatpush1.msra.mxu0 0.0
  %4320 = vmatprep.subr.mxu0 0.0
  %4321 = vmatpush1.msra.mxu0 0.0
  %4322 = vmatprep.subr.mxu0 0.0
  %4323 = vmatpush1.msra.mxu0 0.0
  %4324 = vmatprep.subr.mxu0 0.0
  %4325 = vmatpush1.msra.mxu0 0.0
  %4326 = vmatprep.subr.mxu0 0.0
  %4327 = vmatpush1.msra.mxu0 0.0
  %4328 = vmatprep.subr.mxu0 0.0
  %4329 = vmatpush1.msra.mxu0 0.0
  %4330 = vmatprep.subr.mxu0 0.0
  %4331 = vmatpush1.msra.mxu0 0.0
  %4332 = vmatprep.subr.mxu0 0.0
  %4333 = vmatpush1.msra.mxu0 0.0
  %4334 = vmatprep.subr.mxu0 0.0
  %4335 = vmatpush1.msra.mxu0 0.0
  %4336 = vmatprep.subr.mxu0 0.0
  %4337 = vmatpush1.msra.mxu0 0.0
  %4338 = vmatprep.subr.mxu0 0.0
  %4339 = vmatpush1.msra.mxu0 0.0
  %4340 = vmatprep.subr.mxu0 0.0
  %4341 = vmatpush1.msra.mxu0 0.0
  %4342 = vmatprep.subr.mxu0 0.0
  %4343 = vmatpush1.msra.mxu0 0.0
  %4344 = vmatprep.subr.mxu0 0.0
  %4345 = vmatpush1.msra.mxu0 0.0
  %4346 = vmatprep.subr.mxu0 0.0
  %4347 = vmatpush1.msra.mxu0 0.0
  %4348 = vmatprep.subr.mxu0 0.0
  %4349 = vmatpush1.msra.mxu0 0.0
  %4350 = vmatprep.subr.mxu0 0.0
  %4351 = vmatpush1.msra.mxu0 0.0
  %4352 = vmatprep.mubr.f32.mxu0 0.0
  %4353 = vmatmul.mubr.f32.gmra.mrb[0].mxu0 %v4277
  %v4354 = vpop.f32.mrb[0].mxu0
  %v4355 = vadd.f32 %v4275, %v4354
  %v4356 = vpop.f32.mrb[0].mxu0
  %4357 = vmatprep.mubr.f32.mxu0 0.0
  %4358 = vmatmul.mubr.f32.gmra.mrb[0].mxu0 %v4280
  %v4359 = vpop.f32.mrb[0].mxu0
  %v4360 = vadd.f32 %v4275, %v4359
  %v4361 = vpop.f32.mrb[0].mxu0
  %4362 = vmatprep.mubr.f32.mxu0 0.0
  %4363 = vmatmul.mubr.f32.gmra.mrb[0].mxu0 %v4283
  %v4364 = vpop.f32.mrb[0].mxu0
  %v4365 = vadd.f32 %v4275, %v4364
  %v4366 = vpop.f32.mrb[0].mxu0
  %4367 = vmatprep.mubr.f32.mxu0 0.0
  %4368 = vmatmul.mubr.f32.gmra.mrb[0].mxu0 %v4286
  %v4369 = vpop.f32.mrb[0].mxu0
  %v4370 = vadd.f32 %v4275, %v4369
  %v4371 = vpop.f32.mrb[0].mxu0
  %4372 = vdwg.mxu0
  %v4373 = vmax.f32 %v4355, 0.0
  %v4374 = vmax.f32 %v4360, 0.0
  %v4375 = vmax.f32 %v4365, 0.0
  %v4376 = vmax.f32 %v4370, 0.0
  %v4377 = vld [vmem:[%s1 + $0x188] sm:$0xff]
  %v4378 = vld [vmem:[%s1 + $0x190] sm:$0xff]
  %v4379 = vld [vmem:[%s1 + $0x198] sm:$0xff]
  %v4380 = vld [vmem:[%s1 + $0x1a0] sm:$0xff]
  %v4381 = vld [vmem:[%s1 + $0x1a8] sm:$0xff]
  %v4382 = vld [vmem:[%s1 + $0x1b0] sm:$0xff]
  %v4383 = vld [vmem:[%s1 + $0x1b8] sm:$0xff]
  %v4384 = vld [vmem:[%s1 + $0x1c0] sm:$0xff]
  %v4385 = vlaneseq
  %v4386 = vshrl.u32 %v4385, 7
  %v4387 = vsub.s32 0, %v4386
  %v4388 = vrot.slane %v2423, %v4387
  %v4390 = vsel %vm2249, %v4373, 0
  %v4393 = vsel %vm2249, %v4374, 0
  %v4396 = vsel %vm2249, %v4375, 0
  %v4399 = vsel %vm2249, %v4376, 0
  %4401 = vmatprep.subr.mxu0 0.0
  %4402 = vmatpush1.msra.mxu0 %v4377
  %4403 = vmatprep.subr.mxu0 0.0
  %4404 = vmatpush1.msra.mxu0 %v4378
  %4405 = vmatprep.subr.mxu0 0.0
  %4406 = vmatpush1.msra.mxu0 %v4379
  %4407 = vmatprep.subr.mxu0 0.0
  %4408 = vmatpush1.msra.mxu0 %v4380
  %4409 = vmatprep.subr.mxu0 0.0
  %4410 = vmatpush1.msra.mxu0 %v4381
  %4411 = vmatprep.subr.mxu0 0.0
  %4412 = vmatpush1.msra.mxu0 %v4382
  %4413 = vmatprep.subr.mxu0 0.0
  %4414 = vmatpush1.msra.mxu0 %v4383
  %4415 = vmatprep.subr.mxu0 0.0
  %4416 = vmatpush1.msra.mxu0 %v4384
  %4417 = vmatprep.subr.mxu0 0.0
  %4418 = vmatpush1.msra.mxu0 0.0
  %4419 = vmatprep.subr.mxu0 0.0
  %4420 = vmatpush1.msra.mxu0 0.0
  %4421 = vmatprep.subr.mxu0 0.0
  %4422 = vmatpush1.msra.mxu0 0.0
  %4423 = vmatprep.subr.mxu0 0.0
  %4424 = vmatpush1.msra.mxu0 0.0
  %4425 = vmatprep.subr.mxu0 0.0
  %4426 = vmatpush1.msra.mxu0 0.0
  %4427 = vmatprep.subr.mxu0 0.0
  %4428 = vmatpush1.msra.mxu0 0.0
  %4429 = vmatprep.subr.mxu0 0.0
  %4430 = vmatpush1.msra.mxu0 0.0
  %4431 = vmatprep.subr.mxu0 0.0
  %4432 = vmatpush1.msra.mxu0 0.0
  %4433 = vmatprep.subr.mxu0 0.0
  %4434 = vmatpush1.msra.mxu0 0.0
  %4435 = vmatprep.subr.mxu0 0.0
  %4436 = vmatpush1.msra.mxu0 0.0
  %4437 = vmatprep.subr.mxu0 0.0
  %4438 = vmatpush1.msra.mxu0 0.0
  %4439 = vmatprep.subr.mxu0 0.0
  %4440 = vmatpush1.msra.mxu0 0.0
  %4441 = vmatprep.subr.mxu0 0.0
  %4442 = vmatpush1.msra.mxu0 0.0
  %4443 = vmatprep.subr.mxu0 0.0
  %4444 = vmatpush1.msra.mxu0 0.0
  %4445 = vmatprep.subr.mxu0 0.0
  %4446 = vmatpush1.msra.mxu0 0.0
  %4447 = vmatprep.subr.mxu0 0.0
  %4448 = vmatpush1.msra.mxu0 0.0
  %4449 = vmatprep.subr.mxu0 0.0
  %4450 = vmatpush1.msra.mxu0 0.0
  %4451 = vmatprep.subr.mxu0 0.0
  %4452 = vmatpush1.msra.mxu0 0.0
  %4453 = vmatprep.subr.mxu0 0.0
  %4454 = vmatpush1.msra.mxu0 0.0
  %4455 = vmatprep.subr.mxu0 0.0
  %4456 = vmatpush1.msra.mxu0 0.0
  %4457 = vmatprep.subr.mxu0 0.0
  %4458 = vmatpush1.msra.mxu0 0.0
  %4459 = vmatprep.subr.mxu0 0.0
  %4460 = vmatpush1.msra.mxu0 0.0
  %4461 = vmatprep.subr.mxu0 0.0
  %4462 = vmatpush1.msra.mxu0 0.0
  %4463 = vmatprep.subr.mxu0 0.0
  %4464 = vmatpush1.msra.mxu0 0.0
  %4465 = vmatprep.mubr.f32.mxu0 0.0
  %4466 = vmatmul.mubr.f32.gmra.mrb[0].mxu0 %v4390
  %v4467 = vpop.f32.mrb[0].mxu0
  %v4468 = vadd.f32 %v4388, %v4467
  %v4469 = vpop.f32.mrb[0].mxu0
  %4470 = vmatprep.mubr.f32.mxu0 0.0
  %4471 = vmatmul.mubr.f32.gmra.mrb[0].mxu0 %v4393
  %v4472 = vpop.f32.mrb[0].mxu0
  %v4473 = vadd.f32 %v4388, %v4472
  %v4474 = vpop.f32.mrb[0].mxu0
  %4475 = vmatprep.mubr.f32.mxu0 0.0
  %4476 = vmatmul.mubr.f32.gmra.mrb[0].mxu0 %v4396
  %v4477 = vpop.f32.mrb[0].mxu0
  %v4478 = vadd.f32 %v4388, %v4477
  %v4479 = vpop.f32.mrb[0].mxu0
  %4480 = vmatprep.mubr.f32.mxu0 0.0
  %4481 = vmatmul.mubr.f32.gmra.mrb[0].mxu0 %v4399
  %v4482 = vpop.f32.mrb[0].mxu0
  %v4483 = vadd.f32 %v4388, %v4482
  %v4484 = vpop.f32.mrb[0].mxu0
  %4485 = vdwg.mxu0
  %v4486 = vadd.f32 %v4263, %v4468
  %v4487 = vadd.f32 %v4264, %v4473
  %v4488 = vadd.f32 %v4265, %v4478
  %v4489 = vadd.f32 %v4266, %v4483
  %v4490 = vsel %vm133, %v4486, 0.0
  %4491 = vadd.xlane.f32.xlu0 %v4490
  %v4492 = vpop.xlane.xlu0 %4491
  %v4493 = vsel %vm133, %v4487, 0.0
  %4494 = vadd.xlane.f32.xlu0 %v4493
  %v4495 = vpop.xlane.xlu0 %4494
  %v4496 = vsel %vm133, %v4488, 0.0
  %4497 = vadd.xlane.f32.xlu0 %v4496
  %v4498 = vpop.xlane.xlu0 %4497
  %v4499 = vsel %vm133, %v4489, 0.0
  %4500 = vadd.xlane.f32.xlu0 %v4499
  %v4501 = vpop.xlane.xlu0 %4500
  %v4502 = vmul.f32 %v4492, %v146
  %v4503 = vmul.f32 %v4495, %v146
  %v4504 = vmul.f32 %v4498, %v146
  %v4505 = vmul.f32 %v4501, %v146
  %v4506 = vsub.f32 %v4486, %v4502
  %v4507 = vsub.f32 %v4487, %v4503
  %v4508 = vsub.f32 %v4488, %v4504
  %v4509 = vsub.f32 %v4489, %v4505
  %v4510 = vmul.f32 %v4506, %v4506
  %v4511 = vmul.f32 %v4507, %v4507
  %v4512 = vmul.f32 %v4508, %v4508
  %v4513 = vmul.f32 %v4509, %v4509
  %v4514 = vsel %vm133, %v4510, 0.0
  %4515 = vadd.xlane.f32.xlu0 %v4514
  %v4516 = vpop.xlane.xlu0 %4515
  %v4517 = vsel %vm133, %v4511, 0.0
  %4518 = vadd.xlane.f32.xlu0 %v4517
  %v4519 = vpop.xlane.xlu0 %4518
  %v4520 = vsel %vm133, %v4512, 0.0
  %4521 = vadd.xlane.f32.xlu0 %v4520
  %v4522 = vpop.xlane.xlu0 %4521
  %v4523 = vsel %vm133, %v4513, 0.0
  %4524 = vadd.xlane.f32.xlu0 %v4523
  %v4525 = vpop.xlane.xlu0 %4524
  %v4526 = vmul.f32 %v4516, %v146
  %v4527 = vmul.f32 %v4519, %v146
  %v4528 = vmul.f32 %v4522, %v146
  %v4529 = vmul.f32 %v4525, %v146
  %v4530 = vadd.f32 %v4526, 1e-05
  %v4531 = vadd.f32 %v4527, 1e-05
  %v4532 = vadd.f32 %v4528, 1e-05
  %v4533 = vadd.f32 %v4529, 1e-05
  %v4534 = vrsqrt.pop %v4530
  %v4535 = vrsqrt.pop %v4531
  %v4536 = vrsqrt.pop %v4532
  %v4537 = vrsqrt.pop %v4533
  %v4538 = vmul.f32 %v4506, %v4534
  %v4539 = vmul.f32 %v4507, %v4535
  %v4540 = vmul.f32 %v4508, %v4536
  %v4541 = vmul.f32 %v4509, %v4537
  %v4542 = vlaneseq
  %v4543 = vshrl.u32 %v4542, 7
  %v4544 = vsub.s32 0, %v4543
  %v4545 = vrot.slane %v2426, %v4544
  %v4546 = vmul.f32 %v4538, %v4545
  %v4547 = vmul.f32 %v4539, %v4545
  %v4548 = vmul.f32 %v4540, %v4545
  %v4549 = vmul.f32 %v4541, %v4545
  %v4550 = vlaneseq
  %v4551 = vshrl.u32 %v4550, 7
  %v4552 = vsub.s32 0, %v4551
  %v4553 = vrot.slane %v2427, %v4552
  %v4554 = vadd.f32 %v4546, %v4553
  %v4555 = vadd.f32 %v4547, %v4553
  %v4556 = vadd.f32 %v4548, %v4553
  %v4557 = vadd.f32 %v4549, %v4553
  %v4558 = vsel %vm133, %v4554, 0.0
  %v4559 = vrot.slane %v4558, 4
  %v4560 = vadd.f32 %v4558, %v4559
  %v4561 = vrot.slane %v4560, 2
  %v4562 = vadd.f32 %v4560, %v4561
  %v4563 = vrot.slane %v4562, 1
  %v4564 = vadd.f32 %v4562, %v4563
  %v4565 = vsel %vm133, %v4555, 0.0
  %v4566 = vrot.slane %v4565, 4
  %v4567 = vadd.f32 %v4565, %v4566
  %v4568 = vrot.slane %v4567, 2
  %v4569 = vadd.f32 %v4567, %v4568
  %v4570 = vrot.slane %v4569, 1
  %v4571 = vadd.f32 %v4569, %v4570
  %v4572 = vsel %vm133, %v4556, 0.0
  %v4573 = vrot.slane %v4572, 4
  %v4574 = vadd.f32 %v4572, %v4573
  %v4575 = vrot.slane %v4574, 2
  %v4576 = vadd.f32 %v4574, %v4575
  %v4577 = vrot.slane %v4576, 1
  %v4578 = vadd.f32 %v4576, %v4577
  %v4579 = vsel %vm133, %v4557, 0.0
  %v4580 = vrot.slane %v4579, 4
  %v4581 = vadd.f32 %v4579, %v4580
  %v4582 = vrot.slane %v4581, 2
  %v4583 = vadd.f32 %v4581, %v4582
  %v4584 = vrot.slane %v4583, 1
  %v4585 = vadd.f32 %v4583, %v4584
  %v4586 = vrcp.pop 8.0
  %v4587 = vmul.f32 %v4564, %v4586
  %v4588 = vmul.f32 %v4571, %v4586
  %v4589 = vmul.f32 %v4578, %v4586
  %v4590 = vmul.f32 %v4585, %v4586
  %v4591 = vld [vmem:[%s1 + $0x1c8] sm:$0xff]
  %v4592 = vld [vmem:[%s1 + $0x1d0] sm:$0xff]
  %v4593 = vld [vmem:[%s1 + $0x1d8] sm:$0xff]
  %v4594 = vld [vmem:[%s1 + $0x1e0] sm:$0xff]
  %v4595 = vld [vmem:[%s1 + $0x33] sm:$0x1]
  %v4596 = vlaneseq
  %v4597 = vshrl.u32 %v4596, 7
  %v4598 = vsub.s32 0, %v4597
  %v4599 = vrot.slane %v4595, %v4598
  %vm4604 = vcmask 1041409
  %v4605 = vsel %vm4604, %v4588, %v4587
  %vm4606 = vcmask 1042434
  %v4607 = vsel %vm4606, %v4589, %v4605
  %vm4608 = vcmask 1043459
  %v4609 = vsel %vm4608, %v4590, %v4607
  %v4610 = vsel %vm133, %v4609, 0
  %4612 = vmatprep.subr.mxu0 0.0
  %4613 = vmatpush1.msra.mxu0 %v4591
  %4614 = vmatprep.subr.mxu0 0.0
  %4615 = vmatpush1.msra.mxu0 %v4592
  %4616 = vmatprep.subr.mxu0 0.0
  %4617 = vmatpush1.msra.mxu0 %v4593
  %4618 = vmatprep.subr.mxu0 0.0
  %4619 = vmatpush1.msra.mxu0 %v4594
  %4620 = vmatprep.subr.mxu0 0.0
  %4621 = vmatpush1.msra.mxu0 0.0
  %4622 = vmatprep.subr.mxu0 0.0
  %4623 = vmatpush1.msra.mxu0 0.0
  %4624 = vmatprep.subr.mxu0 0.0
  %4625 = vmatpush1.msra.mxu0 0.0
  %4626 = vmatprep.subr.mxu0 0.0
  %4627 = vmatpush1.msra.mxu0 0.0
  %4628 = vmatprep.subr.mxu0 0.0
  %4629 = vmatpush1.msra.mxu0 0.0
  %4630 = vmatprep.subr.mxu0 0.0
  %4631 = vmatpush1.msra.mxu0 0.0
  %4632 = vmatprep.subr.mxu0 0.0
  %4633 = vmatpush1.msra.mxu0 0.0
  %4634 = vmatprep.subr.mxu0 0.0
  %4635 = vmatpush1.msra.mxu0 0.0
  %4636 = vmatprep.subr.mxu0 0.0
  %4637 = vmatpush1.msra.mxu0 0.0
  %4638 = vmatprep.subr.mxu0 0.0
  %4639 = vmatpush1.msra.mxu0 0.0
  %4640 = vmatprep.subr.mxu0 0.0
  %4641 = vmatpush1.msra.mxu0 0.0
  %4642 = vmatprep.subr.mxu0 0.0
  %4643 = vmatpush1.msra.mxu0 0.0
  %4644 = vmatprep.subr.mxu0 0.0
  %4645 = vmatpush1.msra.mxu0 0.0
  %4646 = vmatprep.subr.mxu0 0.0
  %4647 = vmatpush1.msra.mxu0 0.0
  %4648 = vmatprep.subr.mxu0 0.0
  %4649 = vmatpush1.msra.mxu0 0.0
  %4650 = vmatprep.subr.mxu0 0.0
  %4651 = vmatpush1.msra.mxu0 0.0
  %4652 = vmatprep.subr.mxu0 0.0
  %4653 = vmatpush1.msra.mxu0 0.0
  %4654 = vmatprep.subr.mxu0 0.0
  %4655 = vmatpush1.msra.mxu0 0.0
  %4656 = vmatprep.subr.mxu0 0.0
  %4657 = vmatpush1.msra.mxu0 0.0
  %4658 = vmatprep.subr.mxu0 0.0
  %4659 = vmatpush1.msra.mxu0 0.0
  %4660 = vmatprep.subr.mxu0 0.0
  %4661 = vmatpush1.msra.mxu0 0.0
  %4662 = vmatprep.subr.mxu0 0.0
  %4663 = vmatpush1.msra.mxu0 0.0
  %4664 = vmatprep.subr.mxu0 0.0
  %4665 = vmatpush1.msra.mxu0 0.0
  %4666 = vmatprep.subr.mxu0 0.0
  %4667 = vmatpush1.msra.mxu0 0.0
  %4668 = vmatprep.subr.mxu0 0.0
  %4669 = vmatpush1.msra.mxu0 0.0
  %4670 = vmatprep.subr.mxu0 0.0
  %4671 = vmatpush1.msra.mxu0 0.0
  %4672 = vmatprep.subr.mxu0 0.0
  %4673 = vmatpush1.msra.mxu0 0.0
  %4674 = vmatprep.subr.mxu0 0.0
  %4675 = vmatpush1.msra.mxu0 0.0
  %4676 = vmatprep.mubr.f32.mxu0 0.0
  %4677 = vmatmul.mubr.f32.gmra.mrb[0].mxu0 %v4610
  %v4678 = vpop.f32.mrb[0].mxu0
  %v4679 = vadd.f32 %v4599, %v4678
  %v4680 = vpop.f32.mrb[0].mxu0
  %4681 = vdwg.mxu0
  %v4682 = vmax.f32 %v4679, 0.0
  %v4683 = vld [vmem:[%s1 + $0x1e8] sm:$0xff]
  %v4684 = vld [vmem:[%s1 + $0x1f0] sm:$0xff]
  %v4685 = vld [vmem:[%s1 + $0x1f8] sm:$0xff]
  %v4686 = vld [vmem:[%s1 + $0x200] sm:$0xff]
  %v4687 = vld [vmem:[%s1 + $0x34] sm:$0x1]
  %v4688 = vlaneseq
  %v4689 = vshrl.u32 %v4688, 7
  %v4690 = vsub.s32 0, %v4689
  %v4691 = vrot.slane %v4687, %v4690
  %v4693 = vsel %vm133, %v4682, 0
  %4695 = vmatprep.subr.mxu0 0.0
  %4696 = vmatpush1.msra.mxu0 %v4683
  %4697 = vmatprep.subr.mxu0 0.0
  %4698 = vmatpush1.msra.mxu0 %v4684
  %4699 = vmatprep.subr.mxu0 0.0
  %4700 = vmatpush1.msra.mxu0 %v4685
  %4701 = vmatprep.subr.mxu0 0.0
  %4702 = vmatpush1.msra.mxu0 %v4686
  %4703 = vmatprep.subr.mxu0 0.0
  %4704 = vmatpush1.msra.mxu0 0.0
  %4705 = vmatprep.subr.mxu0 0.0
  %4706 = vmatpush1.msra.mxu0 0.0
  %4707 = vmatprep.subr.mxu0 0.0
  %4708 = vmatpush1.msra.mxu0 0.0
  %4709 = vmatprep.subr.mxu0 0.0
  %4710 = vmatpush1.msra.mxu0 0.0
  %4711 = vmatprep.subr.mxu0 0.0
  %4712 = vmatpush1.msra.mxu0 0.0
  %4713 = vmatprep.subr.mxu0 0.0
  %4714 = vmatpush1.msra.mxu0 0.0
  %4715 = vmatprep.subr.mxu0 0.0
  %4716 = vmatpush1.msra.mxu0 0.0
  %4717 = vmatprep.subr.mxu0 0.0
  %4718 = vmatpush1.msra.mxu0 0.0
  %4719 = vmatprep.subr.mxu0 0.0
  %4720 = vmatpush1.msra.mxu0 0.0
  %4721 = vmatprep.subr.mxu0 0.0
  %4722 = vmatpush1.msra.mxu0 0.0
  %4723 = vmatprep.subr.mxu0 0.0
  %4724 = vmatpush1.msra.mxu0 0.0
  %4725 = vmatprep.subr.mxu0 0.0
  %4726 = vmatpush1.msra.mxu0 0.0
  %4727 = vmatprep.subr.mxu0 0.0
  %4728 = vmatpush1.msra.mxu0 0.0
  %4729 = vmatprep.subr.mxu0 0.0
  %4730 = vmatpush1.msra.mxu0 0.0
  %4731 = vmatprep.subr.mxu0 0.0
  %4732 = vmatpush1.msra.mxu0 0.0
  %4733 = vmatprep.subr.mxu0 0.0
  %4734 = vmatpush1.msra.mxu0 0.0
  %4735 = vmatprep.subr.mxu0 0.0
  %4736 = vmatpush1.msra.mxu0 0.0
  %4737 = vmatprep.subr.mxu0 0.0
  %4738 = vmatpush1.msra.mxu0 0.0
  %4739 = vmatprep.subr.mxu0 0.0
  %4740 = vmatpush1.msra.mxu0 0.0
  %4741 = vmatprep.subr.mxu0 0.0
  %4742 = vmatpush1.msra.mxu0 0.0
  %4743 = vmatprep.subr.mxu0 0.0
  %4744 = vmatpush1.msra.mxu0 0.0
  %4745 = vmatprep.subr.mxu0 0.0
  %4746 = vmatpush1.msra.mxu0 0.0
  %4747 = vmatprep.subr.mxu0 0.0
  %4748 = vmatpush1.msra.mxu0 0.0
  %4749 = vmatprep.subr.mxu0 0.0
  %4750 = vmatpush1.msra.mxu0 0.0
  %4751 = vmatprep.subr.mxu0 0.0
  %4752 = vmatpush1.msra.mxu0 0.0
  %4753 = vmatprep.subr.mxu0 0.0
  %4754 = vmatpush1.msra.mxu0 0.0
  %4755 = vmatprep.subr.mxu0 0.0
  %4756 = vmatpush1.msra.mxu0 0.0
  %4757 = vmatprep.subr.mxu0 0.0
  %4758 = vmatpush1.msra.mxu0 0.0
  %4759 = vmatprep.mubr.f32.mxu0 0.0
  %4760 = vmatmul.mubr.f32.gmra.mrb[0].mxu0 %v4693
  %v4761 = vpop.f32.mrb[0].mxu0
  %v4762 = vadd.f32 %v4691, %v4761
  %v4763 = vpop.f32.mrb[0].mxu0
  %4764 = vdwg.mxu0
  %vm4765 = vcmask 11264
  %4766 = vst.msk [vmem:[%s3] sm:$0xf] %vm4765, %v4762
  // Predicated region
  $region14: #{nicu_model.1} parent=0 // pred_check
    _
  $region15: #{nicu_model.1} parent=0 // pred_check_branch
    %4768 = sbr.rel (0) target = $region17
  $region16: #{nicu_model.1} parent=0 // pred_region
    _
  $region17: #{nicu_model.1} parent=0 // pred_fallthru
    _
  // Predicated region
  $region18: #{nicu_model.1} parent=0 // pred_check
    _
  $region19: #{nicu_model.1} parent=0 // pred_check_branch
    %4770 = sbr.rel (0) target = $region21
  $region20: #{nicu_model.1} parent=0 // pred_region
    _
  $region21: #{nicu_model.1} parent=0 // pred_fallthru
    _

</llo_original>
